<compile_context>
chip_gen: v5e
topology: v5e:2x2
jax: 0.10.0
libtpu: 0.0.40
codegen_flags: <defaults>
</compile_context>

<pallas_src>
import functools

import jax
import jax.numpy as jnp
from jax import lax
from jax.experimental import pallas as pl
from jax.experimental.pallas import tpu as pltpu

LANE = 128  # TPU lane width: output-channel / embedding dims padded to this


def _round_up(x, m):
    return ((x + m - 1) // m) * m


# ----------------------------------------------------------------------------
# Pallas kernel: full base-network forward for ONE siamese input per grid step.
#   x_ref    : [Rx, Cp]          f32  padded channels-last input, one row per
#                                     padded pixel (flattened over N, Hp, Wp)
#   pmat_ref : [out_rows, Rfeat] f32  pooling matrix (valid-row select * 1/HW),
#                                     host-built, resident (constant index_map)
#   w1_ref   : [k*k*Cp, C1p]     f32  per-shift conv weights, rows = (di,dj,c)
#   b1_ref   : [1, C1p]          f32  conv bias
#   w2_ref   : [C1p, Dp]         f32  linear weight
#   b2_ref   : [1, Dp]           f32  linear bias
#   out_ref  : [out_rows, Dp]    f32  rows >= batch are padding (sliced away)
# ----------------------------------------------------------------------------
def siamese_base_kernel(x_ref, pmat_ref, w1_ref, b1_ref, w2_ref, b2_ref,
                        out_ref, *, rfeat, cpad, wp, ksize):
    c1p = w1_ref.shape[1]

    # Conv as 9 shifted matmuls (in-kernel im2col), accumulated in f32.
    # Shift s = di*Wp + dj picks, for every padded pixel r, the pixel at
    # padded offset (di, dj) of its receptive field; the matching [Cp, C1p]
    # weight slice is rows [ (di*k+dj)*Cp : +Cp ] of w1.
    feat = None
    for di in range(ksize):
        for dj in range(ksize):
            s = di * wp + dj
            xs = x_ref[pl.ds(s, rfeat), :]                            # [rfeat, Cp]
            ws = w1_ref[pl.ds((di * ksize + dj) * cpad, cpad), :]     # [Cp, C1p]
            contrib = jnp.dot(xs, ws, preferred_element_type=jnp.float32)
            feat = contrib if feat is None else feat + contrib
    feat = jnp.maximum(feat + b1_ref[...], 0.0)                       # [rfeat, C1p]

    # Global average pool + valid-row selection as ONE resident-matrix matmul
    # (1/HW is folded into pmat; rows of the padded grid that are not valid
    #  output pixels have zero columns and contribute nothing).
    pooled = jnp.dot(pmat_ref[...], feat,
                     preferred_element_type=jnp.float32)              # [out_rows, C1p]

    # Final linear projection.
    emb = jnp.dot(pooled, w2_ref[...],
                  preferred_element_type=jnp.float32) + b2_ref[...]   # [out_rows, Dp]
    out_ref[...] = emb                                                # lane-dense store


# ----------------------------------------------------------------------------
# Host-side wrapper: one jit, one pallas_call for all siamese inputs.
# ----------------------------------------------------------------------------
@jax.jit
def siamese_forward(params, *args):
    """SiameseNetwork.forward: shared base network over every input, fused
    into a single Pallas kernel launch.  (PyTorch returns a generator; we
    return a tuple of the same elements.)"""
    w_conv, b_conv, w_fc, b_fc = params          # PyTorch-native layouts
    num_inputs = len(args)
    N, C, H, W = args[0].shape
    K, PAD = 3, 1
    Hp, Wp = H + 2 * PAD, W + 2 * PAD
    HW = H * W
    C1 = w_conv.shape[0]
    D = w_fc.shape[0]

    Cp = _round_up(C, 8)                 # input-channel pad (sublane-friendly)
    C1p = _round_up(C1, LANE)            # conv output channels -> lane-dense
    Dp = _round_up(D, LANE)              # embedding dim -> lane-dense
    out_rows = _round_up(N, 8)           # sublane-aligned output rows per input

    Rfeat = N * Hp * Wp                  # one feature row per padded pixel
    max_shift = (K - 1) * Wp + (K - 1)
    Rx = _round_up(Rfeat + max_shift, 8)  # extra rows so every shift is in-bounds

    # ---- compact channels-last, spatially zero-padded input ----------------
    x = jnp.stack(args, axis=0)                                   # [P, N, C, H, W]
    xp = jnp.pad(x, ((0, 0), (0, 0), (0, 0), (PAD, PAD), (PAD, PAD)))
    x2d = xp.transpose(0, 1, 3, 4, 2).reshape(num_inputs, Rfeat, C)
    x2d = jnp.pad(x2d, ((0, 0), (0, Rx - Rfeat), (0, Cp - C))).astype(jnp.float32)

    # ---- per-shift conv weights [K*K*Cp, C1p], rows ordered (di, dj, c) -----
    w1 = w_conv.transpose(2, 3, 1, 0)                             # [kh, kw, Cin, Cout]
    w1 = jnp.pad(w1, ((0, 0), (0, 0), (0, Cp - C), (0, C1p - C1)))
    w1 = w1.reshape(K * K * Cp, C1p).astype(jnp.float32)
    b1 = jnp.pad(b_conv.reshape(1, C1), ((0, 0), (0, C1p - C1))).astype(jnp.float32)
    w2 = jnp.pad(w_fc.T, ((0, C1p - C1), (0, Dp - D))).astype(jnp.float32)
    b2 = jnp.pad(b_fc.reshape(1, D), ((0, 0), (0, Dp - D))).astype(jnp.float32)

    # ---- pooling matrix (host-built, resident; exact 1/HW folded in) -------
    r = jnp.arange(Rfeat)
    n_of_r = r // (Hp * Wp)
    ii = (r % (Hp * Wp)) // Wp
    jj = r % Wp
    valid = (ii < H) & (jj < W)                                   # valid output pixel
    b_idx = jnp.arange(out_rows)
    pmat = (((b_idx[:, None] == n_of_r[None, :]) & valid[None, :])
            .astype(jnp.float32) / HW)                            # [out_rows, Rfeat]

    kernel = functools.partial(siamese_base_kernel,
                               rfeat=Rfeat, cpad=Cp, wp=Wp, ksize=K)

    flops = num_inputs * (2 * Rfeat * Cp * C1p * (K * K)
                          + 2 * out_rows * Rfeat * C1p
                          + 2 * out_rows * C1p * Dp)
    bytes_accessed = 4 * (num_inputs * Rx * Cp + out_rows * Rfeat
                          + K * K * Cp * C1p + C1p + C1p * Dp + Dp
                          + num_inputs * out_rows * Dp)
    cost = pl.CostEstimate(flops=flops, transcendentals=0,
                           bytes_accessed=bytes_accessed)

    out = pl.pallas_call(
        kernel,
        out_shape=jax.ShapeDtypeStruct((num_inputs * out_rows, Dp), jnp.float32),
        grid_spec=pltpu.PrefetchScalarGridSpec(
            num_scalar_prefetch=0,
            grid=(num_inputs,),
            in_specs=[
                # one siamese input per grid step; leading size-1 axis squeezed
                pl.BlockSpec((pl.Squeezed(), Rx, Cp), lambda p: (p, 0, 0)),
                # shared pooling matrix / weights: constant index_map -> resident
                pl.BlockSpec((out_rows, Rfeat), lambda p: (0, 0)),
                pl.BlockSpec((K * K * Cp, C1p), lambda p: (0, 0)),
                pl.BlockSpec((1, C1p), lambda p: (0, 0)),
                pl.BlockSpec((C1p, Dp), lambda p: (0, 0)),
                pl.BlockSpec((1, Dp), lambda p: (0, 0)),
            ],
            out_specs=pl.BlockSpec((out_rows, Dp), lambda p: (p, 0)),
        ),
        compiler_params=pltpu.CompilerParams(
            dimension_semantics=("parallel",),        # 2 inputs -> 2 TCs on v7x
            vmem_limit_bytes=32 * 1024 * 1024),
        cost_estimate=cost,
    )(x2d, pmat, w1, b1, w2, b2)

    # strip row / lane padding and split back into per-input embeddings
    out = out.reshape(num_inputs, out_rows, Dp)[:, :N, :D]
    return tuple(out[i] for i in range(num_inputs))


# ----------------------------------------------------------------------------
# Pure-JAX f32 reference of the base network (for a correctness check).
# ----------------------------------------------------------------------------
def base_network_ref(params, x):
    w_conv, b_conv, w_fc, b_fc = params
    y = lax.conv_general_dilated(x, w_conv, window_strides=(1, 1),
                                 padding=((1, 1), (1, 1)),
                                 dimension_numbers=("NCHW", "OIHW", "NCHW"))
    y = jnp.maximum(y + b_conv.reshape(1, -1, 1, 1), 0.0)
    pooled = y.mean(axis=(2, 3))                                  # [N, C1]
    return pooled @ w_fc.T + b_fc


def init_params(key, cin=4, c1=16, k=3, d=32):
    """Deterministic parameter init in PyTorch-native layouts."""
    k1, k2, k3, k4 = jax.random.split(key, 4)
    w_conv = jax.random.normal(k1, (c1, cin, k, k), jnp.float32) * 0.1   # [Cout,Cin,kh,kw]
    b_conv = jax.random.normal(k2, (c1,), jnp.float32) * 0.1
    w_fc = jax.random.normal(k3, (d, c1), jnp.float32) * 0.1             # [D, C1]
    b_fc = jax.random.normal(k4, (d,), jnp.float32) * 0.1
    return (w_conv, b_conv, w_fc, b_fc)


if __name__ == "__main__":
    key = jax.random.PRNGKey(0)
    kp, kx1, kx2 = jax.random.split(key, 3)

    params = init_params(kp)

    # Two inputs to the siamese network, NCHW like PyTorch.
    x1 = jax.random.normal(kx1, (2, 4, 16, 16), jnp.float32)
    x2 = jax.random.normal(kx2, (2, 4, 16, 16), jnp.float32)

    emb1, emb2 = siamese_forward(params, x1, x2)
    jax.block_until_ready((emb1, emb2))

    assert emb1.shape == (2, 32) and emb2.shape == (2, 32)

    ref1 = base_network_ref(params, x1)
    ref2 = base_network_ref(params, x2)
    assert bool(jnp.allclose(emb1, ref1, rtol=5e-2, atol=5e-3)), "mismatch vs reference (input 1)"
    assert bool(jnp.allclose(emb2, ref2, rtol=5e-2, atol=5e-3)), "mismatch vs reference (input 2)"

    print("KERNEL_OK")
</pallas_src>

<mosaic_0001>
module attributes {stable_mosaic.version = 11 : i64} {
  func.func @siamese_base_kernel(%arg0: i32, %arg1: memref<1x688x8xf32, #tpu.memory_space<vmem>>, %arg2: memref<8x648xf32, #tpu.memory_space<vmem>>, %arg3: memref<72x128xf32, #tpu.memory_space<vmem>>, %arg4: memref<1x128xf32, #tpu.memory_space<vmem>>, %arg5: memref<128x128xf32, #tpu.memory_space<vmem>>, %arg6: memref<1x128xf32, #tpu.memory_space<vmem>>, %arg7: memref<8x128xf32, #tpu.memory_space<vmem>>) attributes {dimension_semantics = [#tpu.dimension_semantics<parallel>], iteration_bounds = array<i64: 2>, scalar_prefetch = 0 : i64, scratch_operands = 0 : i64, tpu.core_type = #tpu.core_type<tc>, window_params = [{transform_indices = @transform_0, window_bounds = array<i64: 1, 688, 8>}, {pipeline_mode = #tpu.pipeline_mode<synchronous>, transform_indices = @transform_1, window_bounds = array<i64: 8, 648>}, {pipeline_mode = #tpu.pipeline_mode<synchronous>, transform_indices = @transform_2, window_bounds = array<i64: 72, 128>}, {pipeline_mode = #tpu.pipeline_mode<synchronous>, transform_indices = @transform_3, window_bounds = array<i64: 1, 128>}, {pipeline_mode = #tpu.pipeline_mode<synchronous>, transform_indices = @transform_4, window_bounds = array<i64: 128, 128>}, {pipeline_mode = #tpu.pipeline_mode<synchronous>, transform_indices = @transform_5, window_bounds = array<i64: 1, 128>}, {transform_indices = @transform_6, window_bounds = array<i64: 8, 128>}]} {
    %c0 = arith.constant 0 : index
    %c0_0 = arith.constant 0 : index
    %c0_1 = arith.constant 0 : index
    %0 = vector.load %arg1[%c0, %c0_0, %c0_1] : memref<1x688x8xf32, #tpu.memory_space<vmem>>, vector<1x648x8xf32>
    %1 = vector.shape_cast %0 : vector<1x648x8xf32> to vector<648x8xf32>
    %c0_2 = arith.constant 0 : index
    %c0_3 = arith.constant 0 : index
    %2 = vector.load %arg3[%c0_2, %c0_3] : memref<72x128xf32, #tpu.memory_space<vmem>>, vector<8x128xf32>
    %cst = arith.constant dense<0.000000e+00> : vector<648x128xf32>
    %3 = tpu.matmul %1, %2, %cst {dimension_numbers = #tpu.dot_dimension_numbers<[1], [0], [0], [1], [0, 0, 1, 1], [], []>} : vector<648x8xf32>, vector<8x128xf32>, vector<648x128xf32> -> vector<648x128xf32>
    %c0_4 = arith.constant 0 : index
    %c1 = arith.constant 1 : index
    %c0_5 = arith.constant 0 : index
    %4 = vector.load %arg1[%c0_4, %c1, %c0_5] : memref<1x688x8xf32, #tpu.memory_space<vmem>>, vector<1x648x8xf32>
    %5 = vector.shape_cast %4 : vector<1x648x8xf32> to vector<648x8xf32>
    %c8 = arith.constant 8 : index
    %c0_6 = arith.constant 0 : index
    %6 = vector.load %arg3[%c8, %c0_6] : memref<72x128xf32, #tpu.memory_space<vmem>>, vector<8x128xf32>
    %cst_7 = arith.constant dense<0.000000e+00> : vector<648x128xf32>
    %7 = tpu.matmul %5, %6, %cst_7 {dimension_numbers = #tpu.dot_dimension_numbers<[1], [0], [0], [1], [0, 0, 1, 1], [], []>} : vector<648x8xf32>, vector<8x128xf32>, vector<648x128xf32> -> vector<648x128xf32>
    %8 = arith.addf %3, %7 : vector<648x128xf32>
    %c0_8 = arith.constant 0 : index
    %c2 = arith.constant 2 : index
    %c0_9 = arith.constant 0 : index
    %9 = vector.load %arg1[%c0_8, %c2, %c0_9] : memref<1x688x8xf32, #tpu.memory_space<vmem>>, vector<1x648x8xf32>
    %10 = vector.shape_cast %9 : vector<1x648x8xf32> to vector<648x8xf32>
    %c16 = arith.constant 16 : index
    %c0_10 = arith.constant 0 : index
    %11 = vector.load %arg3[%c16, %c0_10] : memref<72x128xf32, #tpu.memory_space<vmem>>, vector<8x128xf32>
    %cst_11 = arith.constant dense<0.000000e+00> : vector<648x128xf32>
    %12 = tpu.matmul %10, %11, %cst_11 {dimension_numbers = #tpu.dot_dimension_numbers<[1], [0], [0], [1], [0, 0, 1, 1], [], []>} : vector<648x8xf32>, vector<8x128xf32>, vector<648x128xf32> -> vector<648x128xf32>
    %13 = arith.addf %8, %12 : vector<648x128xf32>
    %c0_12 = arith.constant 0 : index
    %c18 = arith.constant 18 : index
    %c0_13 = arith.constant 0 : index
    %14 = vector.load %arg1[%c0_12, %c18, %c0_13] : memref<1x688x8xf32, #tpu.memory_space<vmem>>, vector<1x648x8xf32>
    %15 = vector.shape_cast %14 : vector<1x648x8xf32> to vector<648x8xf32>
    %c24 = arith.constant 24 : index
    %c0_14 = arith.constant 0 : index
    %16 = vector.load %arg3[%c24, %c0_14] : memref<72x128xf32, #tpu.memory_space<vmem>>, vector<8x128xf32>
    %cst_15 = arith.constant dense<0.000000e+00> : vector<648x128xf32>
    %17 = tpu.matmul %15, %16, %cst_15 {dimension_numbers = #tpu.dot_dimension_numbers<[1], [0], [0], [1], [0, 0, 1, 1], [], []>} : vector<648x8xf32>, vector<8x128xf32>, vector<648x128xf32> -> vector<648x128xf32>
    %18 = arith.addf %13, %17 : vector<648x128xf32>
    %c0_16 = arith.constant 0 : index
    %c19 = arith.constant 19 : index
    %c0_17 = arith.constant 0 : index
    %19 = vector.load %arg1[%c0_16, %c19, %c0_17] : memref<1x688x8xf32, #tpu.memory_space<vmem>>, vector<1x648x8xf32>
    %20 = vector.shape_cast %19 : vector<1x648x8xf32> to vector<648x8xf32>
    %c32 = arith.constant 32 : index
    %c0_18 = arith.constant 0 : index
    %21 = vector.load %arg3[%c32, %c0_18] : memref<72x128xf32, #tpu.memory_space<vmem>>, vector<8x128xf32>
    %cst_19 = arith.constant dense<0.000000e+00> : vector<648x128xf32>
    %22 = tpu.matmul %20, %21, %cst_19 {dimension_numbers = #tpu.dot_dimension_numbers<[1], [0], [0], [1], [0, 0, 1, 1], [], []>} : vector<648x8xf32>, vector<8x128xf32>, vector<648x128xf32> -> vector<648x128xf32>
    %23 = arith.addf %18, %22 : vector<648x128xf32>
    %c0_20 = arith.constant 0 : index
    %c20 = arith.constant 20 : index
    %c0_21 = arith.constant 0 : index
    %24 = vector.load %arg1[%c0_20, %c20, %c0_21] : memref<1x688x8xf32, #tpu.memory_space<vmem>>, vector<1x648x8xf32>
    %25 = vector.shape_cast %24 : vector<1x648x8xf32> to vector<648x8xf32>
    %c40 = arith.constant 40 : index
    %c0_22 = arith.constant 0 : index
    %26 = vector.load %arg3[%c40, %c0_22] : memref<72x128xf32, #tpu.memory_space<vmem>>, vector<8x128xf32>
    %cst_23 = arith.constant dense<0.000000e+00> : vector<648x128xf32>
    %27 = tpu.matmul %25, %26, %cst_23 {dimension_numbers = #tpu.dot_dimension_numbers<[1], [0], [0], [1], [0, 0, 1, 1], [], []>} : vector<648x8xf32>, vector<8x128xf32>, vector<648x128xf32> -> vector<648x128xf32>
    %28 = arith.addf %23, %27 : vector<648x128xf32>
    %c0_24 = arith.constant 0 : index
    %c36 = arith.constant 36 : index
    %c0_25 = arith.constant 0 : index
    %29 = vector.load %arg1[%c0_24, %c36, %c0_25] : memref<1x688x8xf32, #tpu.memory_space<vmem>>, vector<1x648x8xf32>
    %30 = vector.shape_cast %29 : vector<1x648x8xf32> to vector<648x8xf32>
    %c48 = arith.constant 48 : index
    %c0_26 = arith.constant 0 : index
    %31 = vector.load %arg3[%c48, %c0_26] : memref<72x128xf32, #tpu.memory_space<vmem>>, vector<8x128xf32>
    %cst_27 = arith.constant dense<0.000000e+00> : vector<648x128xf32>
    %32 = tpu.matmul %30, %31, %cst_27 {dimension_numbers = #tpu.dot_dimension_numbers<[1], [0], [0], [1], [0, 0, 1, 1], [], []>} : vector<648x8xf32>, vector<8x128xf32>, vector<648x128xf32> -> vector<648x128xf32>
    %33 = arith.addf %28, %32 : vector<648x128xf32>
    %c0_28 = arith.constant 0 : index
    %c37 = arith.constant 37 : index
    %c0_29 = arith.constant 0 : index
    %34 = vector.load %arg1[%c0_28, %c37, %c0_29] : memref<1x688x8xf32, #tpu.memory_space<vmem>>, vector<1x648x8xf32>
    %35 = vector.shape_cast %34 : vector<1x648x8xf32> to vector<648x8xf32>
    %c56 = arith.constant 56 : index
    %c0_30 = arith.constant 0 : index
    %36 = vector.load %arg3[%c56, %c0_30] : memref<72x128xf32, #tpu.memory_space<vmem>>, vector<8x128xf32>
    %cst_31 = arith.constant dense<0.000000e+00> : vector<648x128xf32>
    %37 = tpu.matmul %35, %36, %cst_31 {dimension_numbers = #tpu.dot_dimension_numbers<[1], [0], [0], [1], [0, 0, 1, 1], [], []>} : vector<648x8xf32>, vector<8x128xf32>, vector<648x128xf32> -> vector<648x128xf32>
    %38 = arith.addf %33, %37 : vector<648x128xf32>
    %c0_32 = arith.constant 0 : index
    %c38 = arith.constant 38 : index
    %c0_33 = arith.constant 0 : index
    %39 = vector.load %arg1[%c0_32, %c38, %c0_33] : memref<1x688x8xf32, #tpu.memory_space<vmem>>, vector<1x648x8xf32>
    %40 = vector.shape_cast %39 : vector<1x648x8xf32> to vector<648x8xf32>
    %c64 = arith.constant 64 : index
    %c0_34 = arith.constant 0 : index
    %41 = vector.load %arg3[%c64, %c0_34] : memref<72x128xf32, #tpu.memory_space<vmem>>, vector<8x128xf32>
    %cst_35 = arith.constant dense<0.000000e+00> : vector<648x128xf32>
    %42 = tpu.matmul %40, %41, %cst_35 {dimension_numbers = #tpu.dot_dimension_numbers<[1], [0], [0], [1], [0, 0, 1, 1], [], []>} : vector<648x8xf32>, vector<8x128xf32>, vector<648x128xf32> -> vector<648x128xf32>
    %43 = arith.addf %38, %42 : vector<648x128xf32>
    %c0_36 = arith.constant 0 : index
    %c0_37 = arith.constant 0 : index
    %44 = vector.load %arg4[%c0_36, %c0_37] : memref<1x128xf32, #tpu.memory_space<vmem>>, vector<1x128xf32>
    %45 = vector.broadcast %44 : vector<1x128xf32> to vector<648x128xf32>
    %46 = arith.addf %43, %45 : vector<648x128xf32>
    %cst_38 = arith.constant 0.000000e+00 : f32
    %47 = vector.broadcast %cst_38 : f32 to vector<648x128xf32>
    %48 = arith.maximumf %46, %47 : vector<648x128xf32>
    %c0_39 = arith.constant 0 : index
    %c0_40 = arith.constant 0 : index
    %49 = vector.load %arg2[%c0_39, %c0_40] : memref<8x648xf32, #tpu.memory_space<vmem>>, vector<8x648xf32>
    %cst_41 = arith.constant dense<0.000000e+00> : vector<8x128xf32>
    %50 = tpu.matmul %49, %48, %cst_41 {dimension_numbers = #tpu.dot_dimension_numbers<[1], [0], [0], [1], [0, 0, 1, 1], [], []>} : vector<8x648xf32>, vector<648x128xf32>, vector<8x128xf32> -> vector<8x128xf32>
    %c0_42 = arith.constant 0 : index
    %c0_43 = arith.constant 0 : index
    %51 = vector.load %arg5[%c0_42, %c0_43] : memref<128x128xf32, #tpu.memory_space<vmem>>, vector<128x128xf32>
    %cst_44 = arith.constant dense<0.000000e+00> : vector<8x128xf32>
    %52 = tpu.matmul %50, %51, %cst_44 {dimension_numbers = #tpu.dot_dimension_numbers<[1], [0], [0], [1], [0, 0, 1, 1], [], []>} : vector<8x128xf32>, vector<128x128xf32>, vector<8x128xf32> -> vector<8x128xf32>
    %c0_45 = arith.constant 0 : index
    %c0_46 = arith.constant 0 : index
    %53 = vector.load %arg6[%c0_45, %c0_46] : memref<1x128xf32, #tpu.memory_space<vmem>>, vector<1x128xf32>
    %54 = vector.broadcast %53 : vector<1x128xf32> to vector<8x128xf32>
    %55 = arith.addf %52, %54 : vector<8x128xf32>
    %c0_47 = arith.constant 0 : index
    %c0_48 = arith.constant 0 : index
    %56 = vector.load %arg7[%c0_47, %c0_48] : memref<8x128xf32, #tpu.memory_space<vmem>>, vector<8x128xf32>
    tpu.vector_store %arg7[%c0_47, %c0_48], %55 {strides = array<i32>} : memref<8x128xf32, #tpu.memory_space<vmem>>, vector<8x128xf32>,
    return
  }
  func.func @transform_0(%arg0: i32) -> (i32, i32, i32) {
    %c0_i32 = arith.constant 0 : i32
    %c0_i32_0 = arith.constant 0 : i32
    %c0_i32_1 = arith.constant 0 : i32
    return %arg0, %c0_i32, %c0_i32_0 : i32, i32, i32
  }
  func.func @transform_1(%arg0: i32) -> (i32, i32) {
    %c0_i32 = arith.constant 0 : i32
    %c0_i32_0 = arith.constant 0 : i32
    %c0_i32_1 = arith.constant 0 : i32
    return %c0_i32, %c0_i32_0 : i32, i32
  }
  func.func @transform_2(%arg0: i32) -> (i32, i32) {
    %c0_i32 = arith.constant 0 : i32
    %c0_i32_0 = arith.constant 0 : i32
    %c0_i32_1 = arith.constant 0 : i32
    return %c0_i32, %c0_i32_0 : i32, i32
  }
  func.func @transform_3(%arg0: i32) -> (i32, i32) {
    %c0_i32 = arith.constant 0 : i32
    %c0_i32_0 = arith.constant 0 : i32
    %c0_i32_1 = arith.constant 0 : i32
    return %c0_i32, %c0_i32_0 : i32, i32
  }
  func.func @transform_4(%arg0: i32) -> (i32, i32) {
    %c0_i32 = arith.constant 0 : i32
    %c0_i32_0 = arith.constant 0 : i32
    %c0_i32_1 = arith.constant 0 : i32
    return %c0_i32, %c0_i32_0 : i32, i32
  }
  func.func @transform_5(%arg0: i32) -> (i32, i32) {
    %c0_i32 = arith.constant 0 : i32
    %c0_i32_0 = arith.constant 0 : i32
    %c0_i32_1 = arith.constant 0 : i32
    return %c0_i32, %c0_i32_0 : i32, i32
  }
  func.func @transform_6(%arg0: i32) -> (i32, i32) {
    %c0_i32 = arith.constant 0 : i32
    %c0_i32_0 = arith.constant 0 : i32
    return %arg0, %c0_i32 : i32, i32
  }
}

</mosaic_0001>

<llo_original>
// kernel: siamese_forward.1
$region0: #{siamese_forward.1}
  #allocation0 [shape = 'u32[]', space=smem, size = 0x4, offset = 0x4, fixed_abs, tag = 'smem constant byte address 0x4 - core index']
  #allocation1 [shape = 'u32[72,128]{1,0:T(1,128)}', space=vmem, size = 0x9000, scoped, tag = 'internal scratch']
  %s0 = inlined_call_operand.vmem [shape: f32[2,688,8], index: 0, kind: input, shape index: {}]
  %s1 = inlined_call_operand.vmem [shape: f32[8,648], index: 1, kind: input, shape index: {}]
  %s2 = inlined_call_operand.vmem [shape: f32[72,128], index: 2, kind: input, shape index: {}]
  %s3 = inlined_call_operand.vmem [shape: f32[1,128], index: 3, kind: input, shape index: {}]
  %s4 = inlined_call_operand.vmem [shape: f32[128,128], index: 4, kind: input, shape index: {}]
  %s5 = inlined_call_operand.vmem [shape: f32[1,128], index: 5, kind: input, shape index: {}]
  %s6 = inlined_call_operand.vmem [shape: f32[16,128], index: 6, kind: output, shape index: {}]
  %s7 = sld [smem:[#allocation0]]
  $region57: #{siamese_forward.1} parent=0
    _
  %s9 = ssub.s32 1, %s7
  %s10 = scalar_select 0, %s9, %s7
  loop: start=0, step=1, limit=4
  $region2: #{siamese_forward.1} parent=0 // loop_pre_header
    _
  $region3: #{siamese_forward.1} parent=0 // loop_header
    %s12 = sphi 0, %s16
    %p13 = scmp.ge.s32.totalorder %s12, 4
    %s22 = sphi 0, %s24
    %s25 = sphi 0, %s22
    %s26 = sphi 0, %s25
    %s42 = sphi 0, %s26
    %s46 = sphi 0, %s46
    %s48 = sphi 0, %s46
    %s49 = sphi 0, %s48
    %s63 = sphi 0, %s49
    %s67 = sphi 0, %s67
    %s69 = sphi 0, %s67
    %s70 = sphi 0, %s69
    %s84 = sphi 0, %s70
    %s88 = sphi 0, %s88
    %s90 = sphi 0, %s88
    %s91 = sphi 0, %s90
    %s105 = sphi 0, %s91
    %s109 = sphi 0, %s109
    %s111 = sphi 0, %s109
    %s112 = sphi 0, %s111
    %s126 = sphi 0, %s112
    %s130 = sphi 0, %s130
    %s132 = sphi 0, %s130
    %s133 = sphi 0, %s132
    %s147 = sphi 0, %s133
    %s153 = sphi 0, %s155
    %s156 = sphi 0, %s153
    %s157 = sphi 0, %s156
    %s173 = sphi 0, %s157
  $region4: #{siamese_forward.1} parent=0 // loop_header_branch
    %15 = sbr.rel (%p13) target = $region8
  $region5: #{siamese_forward.1} parent=0 // loop_body
    %s17 = ssub.s32 %s12, 1
    %s18 = ssub.s32 %s12, 2
    %s19 = sadd.s32 %s12, 1
    %s20 = ssub.s32 %s12, %s19
    %p21 = scmp.eq.s32.totalorder %s20, 0
    %s23 = sadd.s32 %s22, 1
    %s24 = scalar_select %p21, %s22, %s23
    %p27 = pneg %p21
    %p28 = scmp.eq.s32.totalorder %s12, 1
    %p29 = por %p27, %p28
    %p30 = scmp.ne.s32.totalorder %s22, %s25
    %p31 = scmp.eq.s32.totalorder %s12, 0
    %p32 = por %p30, %p31
    %p33 = scmp.ne.s32.totalorder %s22, %s25
    %p34 = scmp.eq.s32.totalorder %s17, 1
    %p35 = por %p33, %p34
    %p36 = scmp.ne.s32.totalorder %s25, %s26
    %p37 = scmp.eq.s32.totalorder %s17, 0
    %p38 = por %p36, %p37
    %p39 = scmp.ne.s32.totalorder %s25, %s26
    %p40 = scmp.eq.s32.totalorder %s18, 1
    %p41 = por %p39, %p40
    %p43 = scmp.ne.s32.totalorder %s26, %s42
    %p44 = scmp.eq.s32.totalorder %s18, 0
    %p45 = por %p43, %p44
    %s47 = sadd.s32 %s46, 1
    %p50 = scmp.eq.s32.totalorder %s12, 1
    %p51 = scmp.ne.s32.totalorder %s46, %s48
    %p52 = scmp.eq.s32.totalorder %s12, 0
    %p53 = por %p51, %p52
    %p54 = scmp.ne.s32.totalorder %s46, %s48
    %p55 = scmp.eq.s32.totalorder %s17, 1
    %p56 = por %p54, %p55
    %p57 = scmp.ne.s32.totalorder %s48, %s49
    %p58 = scmp.eq.s32.totalorder %s17, 0
    %p59 = por %p57, %p58
    %p60 = scmp.ne.s32.totalorder %s48, %s49
    %p61 = scmp.eq.s32.totalorder %s18, 1
    %p62 = por %p60, %p61
    %p64 = scmp.ne.s32.totalorder %s49, %s63
    %p65 = scmp.eq.s32.totalorder %s18, 0
    %p66 = por %p64, %p65
    %s68 = sadd.s32 %s67, 1
    %p71 = scmp.eq.s32.totalorder %s12, 1
    %p72 = scmp.ne.s32.totalorder %s67, %s69
    %p73 = scmp.eq.s32.totalorder %s12, 0
    %p74 = por %p72, %p73
    %p75 = scmp.ne.s32.totalorder %s67, %s69
    %p76 = scmp.eq.s32.totalorder %s17, 1
    %p77 = por %p75, %p76
    %p78 = scmp.ne.s32.totalorder %s69, %s70
    %p79 = scmp.eq.s32.totalorder %s17, 0
    %p80 = por %p78, %p79
    %p81 = scmp.ne.s32.totalorder %s69, %s70
    %p82 = scmp.eq.s32.totalorder %s18, 1
    %p83 = por %p81, %p82
    %p85 = scmp.ne.s32.totalorder %s70, %s84
    %p86 = scmp.eq.s32.totalorder %s18, 0
    %p87 = por %p85, %p86
    %s89 = sadd.s32 %s88, 1
    %p92 = scmp.eq.s32.totalorder %s12, 1
    %p93 = scmp.ne.s32.totalorder %s88, %s90
    %p94 = scmp.eq.s32.totalorder %s12, 0
    %p95 = por %p93, %p94
    %p96 = scmp.ne.s32.totalorder %s88, %s90
    %p97 = scmp.eq.s32.totalorder %s17, 1
    %p98 = por %p96, %p97
    %p99 = scmp.ne.s32.totalorder %s90, %s91
    %p100 = scmp.eq.s32.totalorder %s17, 0
    %p101 = por %p99, %p100
    %p102 = scmp.ne.s32.totalorder %s90, %s91
    %p103 = scmp.eq.s32.totalorder %s18, 1
    %p104 = por %p102, %p103
    %p106 = scmp.ne.s32.totalorder %s91, %s105
    %p107 = scmp.eq.s32.totalorder %s18, 0
    %p108 = por %p106, %p107
    %s110 = sadd.s32 %s109, 1
    %p113 = scmp.eq.s32.totalorder %s12, 1
    %p114 = scmp.ne.s32.totalorder %s109, %s111
    %p115 = scmp.eq.s32.totalorder %s12, 0
    %p116 = por %p114, %p115
    %p117 = scmp.ne.s32.totalorder %s109, %s111
    %p118 = scmp.eq.s32.totalorder %s17, 1
    %p119 = por %p117, %p118
    %p120 = scmp.ne.s32.totalorder %s111, %s112
    %p121 = scmp.eq.s32.totalorder %s17, 0
    %p122 = por %p120, %p121
    %p123 = scmp.ne.s32.totalorder %s111, %s112
    %p124 = scmp.eq.s32.totalorder %s18, 1
    %p125 = por %p123, %p124
    %p127 = scmp.ne.s32.totalorder %s112, %s126
    %p128 = scmp.eq.s32.totalorder %s18, 0
    %p129 = por %p127, %p128
    %s131 = sadd.s32 %s130, 1
    %p134 = scmp.eq.s32.totalorder %s12, 1
    %p135 = scmp.ne.s32.totalorder %s130, %s132
    %p136 = scmp.eq.s32.totalorder %s12, 0
    %p137 = por %p135, %p136
    %p138 = scmp.ne.s32.totalorder %s130, %s132
    %p139 = scmp.eq.s32.totalorder %s17, 1
    %p140 = por %p138, %p139
    %p141 = scmp.ne.s32.totalorder %s132, %s133
    %p142 = scmp.eq.s32.totalorder %s17, 0
    %p143 = por %p141, %p142
    %p144 = scmp.ne.s32.totalorder %s132, %s133
    %p145 = scmp.eq.s32.totalorder %s18, 1
    %p146 = por %p144, %p145
    %p148 = scmp.ne.s32.totalorder %s133, %s147
    %p149 = scmp.eq.s32.totalorder %s18, 0
    %p150 = por %p148, %p149
    %s151 = ssub.s32 %s12, %s19
    %p152 = scmp.eq.s32.totalorder %s151, 0
    %s154 = sadd.s32 %s153, 1
    %s155 = scalar_select %p152, %s153, %s154
    %p158 = pneg %p152
    %p159 = scmp.eq.s32.totalorder %s12, 1
    %p160 = por %p158, %p159
    %p161 = scmp.ne.s32.totalorder %s153, %s156
    %p162 = scmp.eq.s32.totalorder %s12, 0
    %p163 = por %p161, %p162
    %p164 = scmp.ne.s32.totalorder %s153, %s156
    %p165 = scmp.eq.s32.totalorder %s17, 1
    %p166 = por %p164, %p165
    %p167 = scmp.ne.s32.totalorder %s156, %s157
    %p168 = scmp.eq.s32.totalorder %s17, 0
    %p169 = por %p167, %p168
    %p170 = scmp.ne.s32.totalorder %s156, %s157
    %p171 = scmp.eq.s32.totalorder %s18, 1
    %p172 = por %p170, %p171
    %p174 = scmp.ne.s32.totalorder %s157, %s173
    %p175 = scmp.eq.s32.totalorder %s18, 0
    %p176 = por %p174, %p175
    %p177 = scmp.le.s32.totalorder 1, %s12
    %p178 = scmp.lt.s32.totalorder %s12, 3
    %p179 = pnand %p177, %p178
    %p180 = pneg %p179
    // Predicated region
    $region9: #{siamese_forward.1} parent=5 // pred_check
      _
    $region10: #{siamese_forward.1} parent=5 // pred_check_branch
      %182 = sbr.rel (%p179) target = $region12
    $region11: #{siamese_forward.1} parent=5 // pred_region
      %s183 = ssub.s32 %s12, 1
      // Predicated region
      $region13: #{siamese_forward.1} parent=11 // pred_check
        %p184 = pneg %p59
      $region14: #{siamese_forward.1} parent=11 // pred_check_branch
        %186 = sbr.rel (%p184) target = $region16
      $region15: #{siamese_forward.1} parent=11 // pred_region
        _
      $region16: #{siamese_forward.1} parent=11 // pred_fallthru
        _
      // Predicated region
      $region17: #{siamese_forward.1} parent=11 // pred_check
        %p187 = pneg %p80
      $region18: #{siamese_forward.1} parent=11 // pred_check_branch
        %189 = sbr.rel (%p187) target = $region20
      $region19: #{siamese_forward.1} parent=11 // pred_region
        _
      $region20: #{siamese_forward.1} parent=11 // pred_fallthru
        _
      // Predicated region
      $region21: #{siamese_forward.1} parent=11 // pred_check
        %p190 = pneg %p101
      $region22: #{siamese_forward.1} parent=11 // pred_check_branch
        %192 = sbr.rel (%p190) target = $region24
      $region23: #{siamese_forward.1} parent=11 // pred_region
        _
      $region24: #{siamese_forward.1} parent=11 // pred_fallthru
        _
      // Predicated region
      $region25: #{siamese_forward.1} parent=11 // pred_check
        %p193 = pneg %p122
      $region26: #{siamese_forward.1} parent=11 // pred_check_branch
        %195 = sbr.rel (%p193) target = $region28
      $region27: #{siamese_forward.1} parent=11 // pred_region
        _
      $region28: #{siamese_forward.1} parent=11 // pred_fallthru
        _
      // Predicated region
      $region29: #{siamese_forward.1} parent=11 // pred_check
        %p196 = pneg %p143
      $region30: #{siamese_forward.1} parent=11 // pred_check_branch
        %198 = sbr.rel (%p196) target = $region32
      $region31: #{siamese_forward.1} parent=11 // pred_region
        _
      $region32: #{siamese_forward.1} parent=11 // pred_fallthru
        _
    $region12: #{siamese_forward.1} parent=5 // pred_fallthru
      _
    %p199 = scmp.lt.s32.totalorder %s12, 2
    // Predicated region
    $region33: #{siamese_forward.1} parent=5 // pred_check
      %p200 = pneg %p199
    $region34: #{siamese_forward.1} parent=5 // pred_check_branch
      %202 = sbr.rel (%p200) target = $region36
    $region35: #{siamese_forward.1} parent=5 // pred_region
      // Predicated region
      $region37: #{siamese_forward.1} parent=35 // pred_check
        %p203 = pneg %p32
      $region38: #{siamese_forward.1} parent=35 // pred_check_branch
        %205 = sbr.rel (%p203) target = $region40
      $region39: #{siamese_forward.1} parent=35 // pred_region
        %p206 = scmp.lt.s32.totalorder %s12, 1
        %s207 = scalar_select %p206, %s12, 1
        %s208 = smul.addr %s207, 86
        %s209 = smul.addr %s208, 8
        %s210 = scalar_lea.vmem %s0, %s209
      $region40: #{siamese_forward.1} parent=35 // pred_fallthru
        _
    $region36: #{siamese_forward.1} parent=5 // pred_fallthru
      _
    %p211 = scmp.le.s32.totalorder 1, %s12
    %p212 = scmp.lt.s32.totalorder %s12, 3
    %p213 = pnand %p211, %p212
    %p214 = pneg %p213
    // Predicated region
    $region41: #{siamese_forward.1} parent=5 // pred_check
      _
    $region42: #{siamese_forward.1} parent=5 // pred_check_branch
      %216 = sbr.rel (%p213) target = $region44
    $region43: #{siamese_forward.1} parent=5 // pred_region
      %s217 = ssub.s32 %s12, 1
      %p218 = scmp.lt.s32.totalorder %s17, 1
      %s219 = scalar_select %p218, %s17, 1
      %s220 = smul.addr %s219, 86
      %s221 = smul.addr %s220, 8
      %s222 = scalar_lea.vmem %s0, %s221
      %p223 = pneg %p38
      %p224 = pneg %p35
      %p225 = pneg %p59
      %p226 = pneg %p56
      %p227 = pneg %p80
      %p228 = pneg %p77
      %p229 = pneg %p101
      %p230 = pneg %p98
      %p231 = pneg %p122
      %p232 = pneg %p119
      %p233 = pneg %p143
      %p234 = pneg %p140
      %p235 = pneg %p169
      %p236 = pneg %p166
      %p237 = scmp.lt.s32.totalorder %s17, 1
      %s238 = scalar_select %p237, %s17, 1
      %s239 = smul.addr %s238, 8
      %s240 = scalar_lea.vmem %s6, %s239
      %p241 = scmp.lt.s32.totalorder %s17, 1
      %s242 = scalar_select %p241, %s17, 1
      %s243 = smul.addr %s242, 86
      %s244 = smul.addr %s243, 8
      %s245 = scalar_lea.vmem %s0, %s244
      %p246 = scmp.lt.s32.totalorder %s17, 1
      %s247 = scalar_select %p246, %s17, 1
      %s248 = smul.addr %s247, 8
      %s249 = scalar_lea.vmem %s6, %s248
      %v250 = vld [vmem:[%s245] sm:$0xff]
      %v251 = vld [vmem:[%s245 + $0x8] sm:$0xff]
      %v252 = vld [vmem:[%s245 + $0x10] sm:$0xff]
      %v253 = vld [vmem:[%s245 + $0x18] sm:$0xff]
      %v254 = vld [vmem:[%s245 + $0x20] sm:$0xff]
      %v255 = vld [vmem:[%s245 + $0x28] sm:$0xff]
      %v256 = vld [vmem:[%s245 + $0x30] sm:$0xff]
      %v257 = vld [vmem:[%s245 + $0x38] sm:$0xff]
      %v258 = vld [vmem:[%s245 + $0x40] sm:$0xff]
      %v259 = vld [vmem:[%s245 + $0x48] sm:$0xff]
      %v260 = vld [vmem:[%s245 + $0x50] sm:$0xff]
      %v261 = vld [vmem:[%s245 + $0x58] sm:$0xff]
      %v262 = vld [vmem:[%s245 + $0x60] sm:$0xff]
      %v263 = vld [vmem:[%s245 + $0x68] sm:$0xff]
      %v264 = vld [vmem:[%s245 + $0x70] sm:$0xff]
      %v265 = vld [vmem:[%s245 + $0x78] sm:$0xff]
      %v266 = vld [vmem:[%s245 + $0x80] sm:$0xff]
      %v267 = vld [vmem:[%s245 + $0x88] sm:$0xff]
      %v268 = vld [vmem:[%s245 + $0x90] sm:$0xff]
      %v269 = vld [vmem:[%s245 + $0x98] sm:$0xff]
      %v270 = vld [vmem:[%s245 + $0xa0] sm:$0xff]
      %v271 = vld [vmem:[%s245 + $0xa8] sm:$0xff]
      %v272 = vld [vmem:[%s245 + $0xb0] sm:$0xff]
      %v273 = vld [vmem:[%s245 + $0xb8] sm:$0xff]
      %v274 = vld [vmem:[%s245 + $0xc0] sm:$0xff]
      %v275 = vld [vmem:[%s245 + $0xc8] sm:$0xff]
      %v276 = vld [vmem:[%s245 + $0xd0] sm:$0xff]
      %v277 = vld [vmem:[%s245 + $0xd8] sm:$0xff]
      %v278 = vld [vmem:[%s245 + $0xe0] sm:$0xff]
      %v279 = vld [vmem:[%s245 + $0xe8] sm:$0xff]
      %v280 = vld [vmem:[%s245 + $0xf0] sm:$0xff]
      %v281 = vld [vmem:[%s245 + $0xf8] sm:$0xff]
      %v282 = vld [vmem:[%s245 + $0x100] sm:$0xff]
      %v283 = vld [vmem:[%s245 + $0x108] sm:$0xff]
      %v284 = vld [vmem:[%s245 + $0x110] sm:$0xff]
      %v285 = vld [vmem:[%s245 + $0x118] sm:$0xff]
      %v286 = vld [vmem:[%s245 + $0x120] sm:$0xff]
      %v287 = vld [vmem:[%s245 + $0x128] sm:$0xff]
      %v288 = vld [vmem:[%s245 + $0x130] sm:$0xff]
      %v289 = vld [vmem:[%s245 + $0x138] sm:$0xff]
      %v290 = vld [vmem:[%s245 + $0x140] sm:$0xff]
      %v291 = vld [vmem:[%s245 + $0x148] sm:$0xff]
      %v292 = vld [vmem:[%s245 + $0x150] sm:$0xff]
      %v293 = vld [vmem:[%s245 + $0x158] sm:$0xff]
      %v294 = vld [vmem:[%s245 + $0x160] sm:$0xff]
      %v295 = vld [vmem:[%s245 + $0x168] sm:$0xff]
      %v296 = vld [vmem:[%s245 + $0x170] sm:$0xff]
      %v297 = vld [vmem:[%s245 + $0x178] sm:$0xff]
      %v298 = vld [vmem:[%s245 + $0x180] sm:$0xff]
      %v299 = vld [vmem:[%s245 + $0x188] sm:$0xff]
      %v300 = vld [vmem:[%s245 + $0x190] sm:$0xff]
      %v301 = vld [vmem:[%s245 + $0x198] sm:$0xff]
      %v302 = vld [vmem:[%s245 + $0x1a0] sm:$0xff]
      %v303 = vld [vmem:[%s245 + $0x1a8] sm:$0xff]
      %v304 = vld [vmem:[%s245 + $0x1b0] sm:$0xff]
      %v305 = vld [vmem:[%s245 + $0x1b8] sm:$0xff]
      %v306 = vld [vmem:[%s245 + $0x1c0] sm:$0xff]
      %v307 = vld [vmem:[%s245 + $0x1c8] sm:$0xff]
      %v308 = vld [vmem:[%s245 + $0x1d0] sm:$0xff]
      %v309 = vld [vmem:[%s245 + $0x1d8] sm:$0xff]
      %v310 = vld [vmem:[%s245 + $0x1e0] sm:$0xff]
      %v311 = vld [vmem:[%s245 + $0x1e8] sm:$0xff]
      %v312 = vld [vmem:[%s245 + $0x1f0] sm:$0xff]
      %v313 = vld [vmem:[%s245 + $0x1f8] sm:$0xff]
      %v314 = vld [vmem:[%s245 + $0x200] sm:$0xff]
      %v315 = vld [vmem:[%s245 + $0x208] sm:$0xff]
      %v316 = vld [vmem:[%s245 + $0x210] sm:$0xff]
      %v317 = vld [vmem:[%s245 + $0x218] sm:$0xff]
      %v318 = vld [vmem:[%s245 + $0x220] sm:$0xff]
      %v319 = vld [vmem:[%s245 + $0x228] sm:$0xff]
      %v320 = vld [vmem:[%s245 + $0x230] sm:$0xff]
      %v321 = vld [vmem:[%s245 + $0x238] sm:$0xff]
      %v322 = vld [vmem:[%s245 + $0x240] sm:$0xff]
      %v323 = vld [vmem:[%s245 + $0x248] sm:$0xff]
      %v324 = vld [vmem:[%s245 + $0x250] sm:$0xff]
      %v325 = vld [vmem:[%s245 + $0x258] sm:$0xff]
      %v326 = vld [vmem:[%s245 + $0x260] sm:$0xff]
      %v327 = vld [vmem:[%s245 + $0x268] sm:$0xff]
      %v328 = vld [vmem:[%s245 + $0x270] sm:$0xff]
      %v329 = vld [vmem:[%s245 + $0x278] sm:$0xff]
      %v330 = vld [vmem:[%s245 + $0x280] sm:$0xff]
      %v331 = vld [vmem:[%s2] sm:$0xff]
      %v332 = vld [vmem:[%s245 + $0x1] sm:$0xff]
      %v333 = vld [vmem:[%s245 + $0x9] sm:$0xff]
      %v334 = vld [vmem:[%s245 + $0x11] sm:$0xff]
      %v335 = vld [vmem:[%s245 + $0x19] sm:$0xff]
      %v336 = vld [vmem:[%s245 + $0x21] sm:$0xff]
      %v337 = vld [vmem:[%s245 + $0x29] sm:$0xff]
      %v338 = vld [vmem:[%s245 + $0x31] sm:$0xff]
      %v339 = vld [vmem:[%s245 + $0x39] sm:$0xff]
      %v340 = vld [vmem:[%s245 + $0x41] sm:$0xff]
      %v341 = vld [vmem:[%s245 + $0x49] sm:$0xff]
      %v342 = vld [vmem:[%s245 + $0x51] sm:$0xff]
      %v343 = vld [vmem:[%s245 + $0x59] sm:$0xff]
      %v344 = vld [vmem:[%s245 + $0x61] sm:$0xff]
      %v345 = vld [vmem:[%s245 + $0x69] sm:$0xff]
      %v346 = vld [vmem:[%s245 + $0x71] sm:$0xff]
      %v347 = vld [vmem:[%s245 + $0x79] sm:$0xff]
      %v348 = vld [vmem:[%s245 + $0x81] sm:$0xff]
      %v349 = vld [vmem:[%s245 + $0x89] sm:$0xff]
      %v350 = vld [vmem:[%s245 + $0x91] sm:$0xff]
      %v351 = vld [vmem:[%s245 + $0x99] sm:$0xff]
      %v352 = vld [vmem:[%s245 + $0xa1] sm:$0xff]
      %v353 = vld [vmem:[%s245 + $0xa9] sm:$0xff]
      %v354 = vld [vmem:[%s245 + $0xb1] sm:$0xff]
      %v355 = vld [vmem:[%s245 + $0xb9] sm:$0xff]
      %v356 = vld [vmem:[%s245 + $0xc1] sm:$0xff]
      %v357 = vld [vmem:[%s245 + $0xc9] sm:$0xff]
      %v358 = vld [vmem:[%s245 + $0xd1] sm:$0xff]
      %v359 = vld [vmem:[%s245 + $0xd9] sm:$0xff]
      %v360 = vld [vmem:[%s245 + $0xe1] sm:$0xff]
      %v361 = vld [vmem:[%s245 + $0xe9] sm:$0xff]
      %v362 = vld [vmem:[%s245 + $0xf1] sm:$0xff]
      %v363 = vld [vmem:[%s245 + $0xf9] sm:$0xff]
      %v364 = vld [vmem:[%s245 + $0x101] sm:$0xff]
      %v365 = vld [vmem:[%s245 + $0x109] sm:$0xff]
      %v366 = vld [vmem:[%s245 + $0x111] sm:$0xff]
      %v367 = vld [vmem:[%s245 + $0x119] sm:$0xff]
      %v368 = vld [vmem:[%s245 + $0x121] sm:$0xff]
      %v369 = vld [vmem:[%s245 + $0x129] sm:$0xff]
      %v370 = vld [vmem:[%s245 + $0x131] sm:$0xff]
      %v371 = vld [vmem:[%s245 + $0x139] sm:$0xff]
      %v372 = vld [vmem:[%s245 + $0x141] sm:$0xff]
      %v373 = vld [vmem:[%s245 + $0x149] sm:$0xff]
      %v374 = vld [vmem:[%s245 + $0x151] sm:$0xff]
      %v375 = vld [vmem:[%s245 + $0x159] sm:$0xff]
      %v376 = vld [vmem:[%s245 + $0x161] sm:$0xff]
      %v377 = vld [vmem:[%s245 + $0x169] sm:$0xff]
      %v378 = vld [vmem:[%s245 + $0x171] sm:$0xff]
      %v379 = vld [vmem:[%s245 + $0x179] sm:$0xff]
      %v380 = vld [vmem:[%s245 + $0x181] sm:$0xff]
      %v381 = vld [vmem:[%s245 + $0x189] sm:$0xff]
      %v382 = vld [vmem:[%s245 + $0x191] sm:$0xff]
      %v383 = vld [vmem:[%s245 + $0x199] sm:$0xff]
      %v384 = vld [vmem:[%s245 + $0x1a1] sm:$0xff]
      %v385 = vld [vmem:[%s245 + $0x1a9] sm:$0xff]
      %v386 = vld [vmem:[%s245 + $0x1b1] sm:$0xff]
      %v387 = vld [vmem:[%s245 + $0x1b9] sm:$0xff]
      %v388 = vld [vmem:[%s245 + $0x1c1] sm:$0xff]
      %v389 = vld [vmem:[%s245 + $0x1c9] sm:$0xff]
      %v390 = vld [vmem:[%s245 + $0x1d1] sm:$0xff]
      %v391 = vld [vmem:[%s245 + $0x1d9] sm:$0xff]
      %v392 = vld [vmem:[%s245 + $0x1e1] sm:$0xff]
      %v393 = vld [vmem:[%s245 + $0x1e9] sm:$0xff]
      %v394 = vld [vmem:[%s245 + $0x1f1] sm:$0xff]
      %v395 = vld [vmem:[%s245 + $0x1f9] sm:$0xff]
      %v396 = vld [vmem:[%s245 + $0x201] sm:$0xff]
      %v397 = vld [vmem:[%s245 + $0x209] sm:$0xff]
      %v398 = vld [vmem:[%s245 + $0x211] sm:$0xff]
      %v399 = vld [vmem:[%s245 + $0x219] sm:$0xff]
      %v400 = vld [vmem:[%s245 + $0x221] sm:$0xff]
      %v401 = vld [vmem:[%s245 + $0x229] sm:$0xff]
      %v402 = vld [vmem:[%s245 + $0x231] sm:$0xff]
      %v403 = vld [vmem:[%s245 + $0x239] sm:$0xff]
      %v404 = vld [vmem:[%s245 + $0x241] sm:$0xff]
      %v405 = vld [vmem:[%s245 + $0x249] sm:$0xff]
      %v406 = vld [vmem:[%s245 + $0x251] sm:$0xff]
      %v407 = vld [vmem:[%s245 + $0x259] sm:$0xff]
      %v408 = vld [vmem:[%s245 + $0x261] sm:$0xff]
      %v409 = vld [vmem:[%s245 + $0x269] sm:$0xff]
      %v410 = vld [vmem:[%s245 + $0x271] sm:$0xff]
      %v411 = vld [vmem:[%s245 + $0x279] sm:$0xff]
      %v412 = vld [vmem:[%s245 + $0x281] sm:$0xff]
      %v413 = vld [vmem:[%s2 + $0x8] sm:$0xff]
      %vm414 = vcmask 64512
      %v416 = vsel %vm414, %v332, 0
      %v419 = vsel %vm414, %v333, 0
      %v422 = vsel %vm414, %v334, 0
      %v425 = vsel %vm414, %v335, 0
      %v428 = vsel %vm414, %v336, 0
      %v431 = vsel %vm414, %v337, 0
      %v434 = vsel %vm414, %v338, 0
      %v437 = vsel %vm414, %v339, 0
      %v440 = vsel %vm414, %v340, 0
      %v443 = vsel %vm414, %v341, 0
      %v446 = vsel %vm414, %v342, 0
      %v449 = vsel %vm414, %v343, 0
      %v452 = vsel %vm414, %v344, 0
      %v455 = vsel %vm414, %v345, 0
      %v458 = vsel %vm414, %v346, 0
      %v461 = vsel %vm414, %v347, 0
      %v464 = vsel %vm414, %v348, 0
      %v467 = vsel %vm414, %v349, 0
      %v470 = vsel %vm414, %v350, 0
      %v473 = vsel %vm414, %v351, 0
      %v476 = vsel %vm414, %v352, 0
      %v479 = vsel %vm414, %v353, 0
      %v482 = vsel %vm414, %v354, 0
      %v485 = vsel %vm414, %v355, 0
      %v488 = vsel %vm414, %v356, 0
      %v491 = vsel %vm414, %v357, 0
      %v494 = vsel %vm414, %v358, 0
      %v497 = vsel %vm414, %v359, 0
      %v500 = vsel %vm414, %v360, 0
      %v503 = vsel %vm414, %v361, 0
      %v506 = vsel %vm414, %v362, 0
      %v509 = vsel %vm414, %v363, 0
      %v512 = vsel %vm414, %v364, 0
      %v515 = vsel %vm414, %v365, 0
      %v518 = vsel %vm414, %v366, 0
      %v521 = vsel %vm414, %v367, 0
      %v524 = vsel %vm414, %v368, 0
      %v527 = vsel %vm414, %v369, 0
      %v530 = vsel %vm414, %v370, 0
      %v533 = vsel %vm414, %v371, 0
      %v536 = vsel %vm414, %v372, 0
      %v539 = vsel %vm414, %v373, 0
      %v542 = vsel %vm414, %v374, 0
      %v545 = vsel %vm414, %v375, 0
      %v548 = vsel %vm414, %v376, 0
      %v551 = vsel %vm414, %v377, 0
      %v554 = vsel %vm414, %v378, 0
      %v557 = vsel %vm414, %v379, 0
      %v560 = vsel %vm414, %v380, 0
      %v563 = vsel %vm414, %v381, 0
      %v566 = vsel %vm414, %v382, 0
      %v569 = vsel %vm414, %v383, 0
      %v572 = vsel %vm414, %v384, 0
      %v575 = vsel %vm414, %v385, 0
      %v578 = vsel %vm414, %v386, 0
      %v581 = vsel %vm414, %v387, 0
      %v584 = vsel %vm414, %v388, 0
      %v587 = vsel %vm414, %v389, 0
      %v590 = vsel %vm414, %v390, 0
      %v593 = vsel %vm414, %v391, 0
      %v596 = vsel %vm414, %v392, 0
      %v599 = vsel %vm414, %v393, 0
      %v602 = vsel %vm414, %v394, 0
      %v605 = vsel %vm414, %v395, 0
      %v608 = vsel %vm414, %v396, 0
      %v611 = vsel %vm414, %v397, 0
      %v614 = vsel %vm414, %v398, 0
      %v617 = vsel %vm414, %v399, 0
      %v620 = vsel %vm414, %v400, 0
      %v623 = vsel %vm414, %v401, 0
      %v626 = vsel %vm414, %v402, 0
      %v629 = vsel %vm414, %v403, 0
      %v632 = vsel %vm414, %v404, 0
      %v635 = vsel %vm414, %v405, 0
      %v638 = vsel %vm414, %v406, 0
      %v641 = vsel %vm414, %v407, 0
      %v644 = vsel %vm414, %v408, 0
      %v647 = vsel %vm414, %v409, 0
      %v650 = vsel %vm414, %v410, 0
      %v653 = vsel %vm414, %v411, 0
      %v656 = vsel %vm414, %v412, 0
      %658 = vmatpush.msra.mxu0 0.0
      %659 = vmatpush.msra.mxu0 0.0
      %660 = vmatpush.msra.mxu0 0.0
      %661 = vmatpush.msra.mxu0 0.0
      %662 = vmatpush.msra.mxu0 0.0
      %663 = vmatpush.msra.mxu0 0.0
      %664 = vmatpush.msra.mxu0 0.0
      %665 = vmatpush.msra.mxu0 0.0
      %666 = vmatpush.msra.mxu0 0.0
      %667 = vmatpush.msra.mxu0 0.0
      %668 = vmatpush.msra.mxu0 0.0
      %669 = vmatpush.msra.mxu0 0.0
      %670 = vmatpush.msra.mxu0 0.0
      %671 = vmatpush.msra.mxu0 0.0
      %672 = vmatpush.msra.mxu0 0.0
      %673 = vmatpush.msra.mxu0 %v413
      %674 = vmatmul.f32.gmra.mxu0 %v416
      %v675 = vpop.f32.mrf.mxu0
      %v676 = vadd.f32 0.0, %v675
      %677 = vmatmul.f32.gmra.mxu0 %v419
      %v678 = vpop.f32.mrf.mxu0
      %v679 = vadd.f32 0.0, %v678
      %680 = vmatmul.f32.gmra.mxu0 %v422
      %v681 = vpop.f32.mrf.mxu0
      %v682 = vadd.f32 0.0, %v681
      %683 = vmatmul.f32.gmra.mxu0 %v425
      %v684 = vpop.f32.mrf.mxu0
      %v685 = vadd.f32 0.0, %v684
      %686 = vmatmul.f32.gmra.mxu0 %v428
      %v687 = vpop.f32.mrf.mxu0
      %v688 = vadd.f32 0.0, %v687
      %689 = vmatmul.f32.gmra.mxu0 %v431
      %v690 = vpop.f32.mrf.mxu0
      %v691 = vadd.f32 0.0, %v690
      %692 = vmatmul.f32.gmra.mxu0 %v434
      %v693 = vpop.f32.mrf.mxu0
      %v694 = vadd.f32 0.0, %v693
      %695 = vmatmul.f32.gmra.mxu0 %v437
      %v696 = vpop.f32.mrf.mxu0
      %v697 = vadd.f32 0.0, %v696
      %698 = vmatmul.f32.gmra.mxu0 %v440
      %v699 = vpop.f32.mrf.mxu0
      %v700 = vadd.f32 0.0, %v699
      %701 = vmatmul.f32.gmra.mxu0 %v443
      %v702 = vpop.f32.mrf.mxu0
      %v703 = vadd.f32 0.0, %v702
      %704 = vmatmul.f32.gmra.mxu0 %v446
      %v705 = vpop.f32.mrf.mxu0
      %v706 = vadd.f32 0.0, %v705
      %707 = vmatmul.f32.gmra.mxu0 %v449
      %v708 = vpop.f32.mrf.mxu0
      %v709 = vadd.f32 0.0, %v708
      %710 = vmatmul.f32.gmra.mxu0 %v452
      %v711 = vpop.f32.mrf.mxu0
      %v712 = vadd.f32 0.0, %v711
      %713 = vmatmul.f32.gmra.mxu0 %v455
      %v714 = vpop.f32.mrf.mxu0
      %v715 = vadd.f32 0.0, %v714
      %716 = vmatmul.f32.gmra.mxu0 %v458
      %v717 = vpop.f32.mrf.mxu0
      %v718 = vadd.f32 0.0, %v717
      %719 = vmatmul.f32.gmra.mxu0 %v461
      %v720 = vpop.f32.mrf.mxu0
      %v721 = vadd.f32 0.0, %v720
      %722 = vmatmul.f32.gmra.mxu0 %v464
      %v723 = vpop.f32.mrf.mxu0
      %v724 = vadd.f32 0.0, %v723
      %725 = vmatmul.f32.gmra.mxu0 %v467
      %v726 = vpop.f32.mrf.mxu0
      %v727 = vadd.f32 0.0, %v726
      %728 = vmatmul.f32.gmra.mxu0 %v470
      %v729 = vpop.f32.mrf.mxu0
      %v730 = vadd.f32 0.0, %v729
      %731 = vmatmul.f32.gmra.mxu0 %v473
      %v732 = vpop.f32.mrf.mxu0
      %v733 = vadd.f32 0.0, %v732
      %734 = vmatmul.f32.gmra.mxu0 %v476
      %v735 = vpop.f32.mrf.mxu0
      %v736 = vadd.f32 0.0, %v735
      %737 = vmatmul.f32.gmra.mxu0 %v479
      %v738 = vpop.f32.mrf.mxu0
      %v739 = vadd.f32 0.0, %v738
      %740 = vmatmul.f32.gmra.mxu0 %v482
      %v741 = vpop.f32.mrf.mxu0
      %v742 = vadd.f32 0.0, %v741
      %743 = vmatmul.f32.gmra.mxu0 %v485
      %v744 = vpop.f32.mrf.mxu0
      %v745 = vadd.f32 0.0, %v744
      %746 = vmatmul.f32.gmra.mxu0 %v488
      %v747 = vpop.f32.mrf.mxu0
      %v748 = vadd.f32 0.0, %v747
      %749 = vmatmul.f32.gmra.mxu0 %v491
      %v750 = vpop.f32.mrf.mxu0
      %v751 = vadd.f32 0.0, %v750
      %752 = vmatmul.f32.gmra.mxu0 %v494
      %v753 = vpop.f32.mrf.mxu0
      %v754 = vadd.f32 0.0, %v753
      %755 = vmatmul.f32.gmra.mxu0 %v497
      %v756 = vpop.f32.mrf.mxu0
      %v757 = vadd.f32 0.0, %v756
      %758 = vmatmul.f32.gmra.mxu0 %v500
      %v759 = vpop.f32.mrf.mxu0
      %v760 = vadd.f32 0.0, %v759
      %761 = vmatmul.f32.gmra.mxu0 %v503
      %v762 = vpop.f32.mrf.mxu0
      %v763 = vadd.f32 0.0, %v762
      %764 = vmatmul.f32.gmra.mxu0 %v506
      %v765 = vpop.f32.mrf.mxu0
      %v766 = vadd.f32 0.0, %v765
      %767 = vmatmul.f32.gmra.mxu0 %v509
      %v768 = vpop.f32.mrf.mxu0
      %v769 = vadd.f32 0.0, %v768
      %770 = vmatmul.f32.gmra.mxu0 %v512
      %v771 = vpop.f32.mrf.mxu0
      %v772 = vadd.f32 0.0, %v771
      %773 = vmatmul.f32.gmra.mxu0 %v515
      %v774 = vpop.f32.mrf.mxu0
      %v775 = vadd.f32 0.0, %v774
      %776 = vmatmul.f32.gmra.mxu0 %v518
      %v777 = vpop.f32.mrf.mxu0
      %v778 = vadd.f32 0.0, %v777
      %779 = vmatmul.f32.gmra.mxu0 %v521
      %v780 = vpop.f32.mrf.mxu0
      %v781 = vadd.f32 0.0, %v780
      %782 = vmatmul.f32.gmra.mxu0 %v524
      %v783 = vpop.f32.mrf.mxu0
      %v784 = vadd.f32 0.0, %v783
      %785 = vmatmul.f32.gmra.mxu0 %v527
      %v786 = vpop.f32.mrf.mxu0
      %v787 = vadd.f32 0.0, %v786
      %788 = vmatmul.f32.gmra.mxu0 %v530
      %v789 = vpop.f32.mrf.mxu0
      %v790 = vadd.f32 0.0, %v789
      %791 = vmatmul.f32.gmra.mxu0 %v533
      %v792 = vpop.f32.mrf.mxu0
      %v793 = vadd.f32 0.0, %v792
      %794 = vmatmul.f32.gmra.mxu0 %v536
      %v795 = vpop.f32.mrf.mxu0
      %v796 = vadd.f32 0.0, %v795
      %797 = vmatmul.f32.gmra.mxu0 %v539
      %v798 = vpop.f32.mrf.mxu0
      %v799 = vadd.f32 0.0, %v798
      %800 = vmatmul.f32.gmra.mxu0 %v542
      %v801 = vpop.f32.mrf.mxu0
      %v802 = vadd.f32 0.0, %v801
      %803 = vmatmul.f32.gmra.mxu0 %v545
      %v804 = vpop.f32.mrf.mxu0
      %v805 = vadd.f32 0.0, %v804
      %806 = vmatmul.f32.gmra.mxu0 %v548
      %v807 = vpop.f32.mrf.mxu0
      %v808 = vadd.f32 0.0, %v807
      %809 = vmatmul.f32.gmra.mxu0 %v551
      %v810 = vpop.f32.mrf.mxu0
      %v811 = vadd.f32 0.0, %v810
      %812 = vmatmul.f32.gmra.mxu0 %v554
      %v813 = vpop.f32.mrf.mxu0
      %v814 = vadd.f32 0.0, %v813
      %815 = vmatmul.f32.gmra.mxu0 %v557
      %v816 = vpop.f32.mrf.mxu0
      %v817 = vadd.f32 0.0, %v816
      %818 = vmatmul.f32.gmra.mxu0 %v560
      %v819 = vpop.f32.mrf.mxu0
      %v820 = vadd.f32 0.0, %v819
      %821 = vmatmul.f32.gmra.mxu0 %v563
      %v822 = vpop.f32.mrf.mxu0
      %v823 = vadd.f32 0.0, %v822
      %824 = vmatmul.f32.gmra.mxu0 %v566
      %v825 = vpop.f32.mrf.mxu0
      %v826 = vadd.f32 0.0, %v825
      %827 = vmatmul.f32.gmra.mxu0 %v569
      %v828 = vpop.f32.mrf.mxu0
      %v829 = vadd.f32 0.0, %v828
      %830 = vmatmul.f32.gmra.mxu0 %v572
      %v831 = vpop.f32.mrf.mxu0
      %v832 = vadd.f32 0.0, %v831
      %833 = vmatmul.f32.gmra.mxu0 %v575
      %v834 = vpop.f32.mrf.mxu0
      %v835 = vadd.f32 0.0, %v834
      %836 = vmatmul.f32.gmra.mxu0 %v578
      %v837 = vpop.f32.mrf.mxu0
      %v838 = vadd.f32 0.0, %v837
      %839 = vmatmul.f32.gmra.mxu0 %v581
      %v840 = vpop.f32.mrf.mxu0
      %v841 = vadd.f32 0.0, %v840
      %842 = vmatmul.f32.gmra.mxu0 %v584
      %v843 = vpop.f32.mrf.mxu0
      %v844 = vadd.f32 0.0, %v843
      %845 = vmatmul.f32.gmra.mxu0 %v587
      %v846 = vpop.f32.mrf.mxu0
      %v847 = vadd.f32 0.0, %v846
      %848 = vmatmul.f32.gmra.mxu0 %v590
      %v849 = vpop.f32.mrf.mxu0
      %v850 = vadd.f32 0.0, %v849
      %851 = vmatmul.f32.gmra.mxu0 %v593
      %v852 = vpop.f32.mrf.mxu0
      %v853 = vadd.f32 0.0, %v852
      %854 = vmatmul.f32.gmra.mxu0 %v596
      %v855 = vpop.f32.mrf.mxu0
      %v856 = vadd.f32 0.0, %v855
      %857 = vmatmul.f32.gmra.mxu0 %v599
      %v858 = vpop.f32.mrf.mxu0
      %v859 = vadd.f32 0.0, %v858
      %860 = vmatmul.f32.gmra.mxu0 %v602
      %v861 = vpop.f32.mrf.mxu0
      %v862 = vadd.f32 0.0, %v861
      %863 = vmatmul.f32.gmra.mxu0 %v605
      %v864 = vpop.f32.mrf.mxu0
      %v865 = vadd.f32 0.0, %v864
      %866 = vmatmul.f32.gmra.mxu0 %v608
      %v867 = vpop.f32.mrf.mxu0
      %v868 = vadd.f32 0.0, %v867
      %869 = vmatmul.f32.gmra.mxu0 %v611
      %v870 = vpop.f32.mrf.mxu0
      %v871 = vadd.f32 0.0, %v870
      %872 = vmatmul.f32.gmra.mxu0 %v614
      %v873 = vpop.f32.mrf.mxu0
      %v874 = vadd.f32 0.0, %v873
      %875 = vmatmul.f32.gmra.mxu0 %v617
      %v876 = vpop.f32.mrf.mxu0
      %v877 = vadd.f32 0.0, %v876
      %878 = vmatmul.f32.gmra.mxu0 %v620
      %v879 = vpop.f32.mrf.mxu0
      %v880 = vadd.f32 0.0, %v879
      %881 = vmatmul.f32.gmra.mxu0 %v623
      %v882 = vpop.f32.mrf.mxu0
      %v883 = vadd.f32 0.0, %v882
      %884 = vmatmul.f32.gmra.mxu0 %v626
      %v885 = vpop.f32.mrf.mxu0
      %v886 = vadd.f32 0.0, %v885
      %887 = vmatmul.f32.gmra.mxu0 %v629
      %v888 = vpop.f32.mrf.mxu0
      %v889 = vadd.f32 0.0, %v888
      %890 = vmatmul.f32.gmra.mxu0 %v632
      %v891 = vpop.f32.mrf.mxu0
      %v892 = vadd.f32 0.0, %v891
      %893 = vmatmul.f32.gmra.mxu0 %v635
      %v894 = vpop.f32.mrf.mxu0
      %v895 = vadd.f32 0.0, %v894
      %896 = vmatmul.f32.gmra.mxu0 %v638
      %v897 = vpop.f32.mrf.mxu0
      %v898 = vadd.f32 0.0, %v897
      %899 = vmatmul.f32.gmra.mxu0 %v641
      %v900 = vpop.f32.mrf.mxu0
      %v901 = vadd.f32 0.0, %v900
      %902 = vmatmul.f32.gmra.mxu0 %v644
      %v903 = vpop.f32.mrf.mxu0
      %v904 = vadd.f32 0.0, %v903
      %905 = vmatmul.f32.gmra.mxu0 %v647
      %v906 = vpop.f32.mrf.mxu0
      %v907 = vadd.f32 0.0, %v906
      %908 = vmatmul.f32.gmra.mxu0 %v650
      %v909 = vpop.f32.mrf.mxu0
      %v910 = vadd.f32 0.0, %v909
      %911 = vmatmul.f32.gmra.mxu0 %v653
      %v912 = vpop.f32.mrf.mxu0
      %v913 = vadd.f32 0.0, %v912
      %914 = vmatmul.f32.gmra.mxu0 %v656
      %v915 = vpop.f32.mrf.mxu0
      %v916 = vadd.f32 0.0, %v915
      %917 = vdwg.mxu0
      %v919 = vsel %vm414, %v250, 0
      %v922 = vsel %vm414, %v251, 0
      %v925 = vsel %vm414, %v252, 0
      %v928 = vsel %vm414, %v253, 0
      %v931 = vsel %vm414, %v254, 0
      %v934 = vsel %vm414, %v255, 0
      %v937 = vsel %vm414, %v256, 0
      %v940 = vsel %vm414, %v257, 0
      %v943 = vsel %vm414, %v258, 0
      %v946 = vsel %vm414, %v259, 0
      %v949 = vsel %vm414, %v260, 0
      %v952 = vsel %vm414, %v261, 0
      %v955 = vsel %vm414, %v262, 0
      %v958 = vsel %vm414, %v263, 0
      %v961 = vsel %vm414, %v264, 0
      %v964 = vsel %vm414, %v265, 0
      %v967 = vsel %vm414, %v266, 0
      %v970 = vsel %vm414, %v267, 0
      %v973 = vsel %vm414, %v268, 0
      %v976 = vsel %vm414, %v269, 0
      %v979 = vsel %vm414, %v270, 0
      %v982 = vsel %vm414, %v271, 0
      %v985 = vsel %vm414, %v272, 0
      %v988 = vsel %vm414, %v273, 0
      %v991 = vsel %vm414, %v274, 0
      %v994 = vsel %vm414, %v275, 0
      %v997 = vsel %vm414, %v276, 0
      %v1000 = vsel %vm414, %v277, 0
      %v1003 = vsel %vm414, %v278, 0
      %v1006 = vsel %vm414, %v279, 0
      %v1009 = vsel %vm414, %v280, 0
      %v1012 = vsel %vm414, %v281, 0
      %v1015 = vsel %vm414, %v282, 0
      %v1018 = vsel %vm414, %v283, 0
      %v1021 = vsel %vm414, %v284, 0
      %v1024 = vsel %vm414, %v285, 0
      %v1027 = vsel %vm414, %v286, 0
      %v1030 = vsel %vm414, %v287, 0
      %v1033 = vsel %vm414, %v288, 0
      %v1036 = vsel %vm414, %v289, 0
      %v1039 = vsel %vm414, %v290, 0
      %v1042 = vsel %vm414, %v291, 0
      %v1045 = vsel %vm414, %v292, 0
      %v1048 = vsel %vm414, %v293, 0
      %v1051 = vsel %vm414, %v294, 0
      %v1054 = vsel %vm414, %v295, 0
      %v1057 = vsel %vm414, %v296, 0
      %v1060 = vsel %vm414, %v297, 0
      %v1063 = vsel %vm414, %v298, 0
      %v1066 = vsel %vm414, %v299, 0
      %v1069 = vsel %vm414, %v300, 0
      %v1072 = vsel %vm414, %v301, 0
      %v1075 = vsel %vm414, %v302, 0
      %v1078 = vsel %vm414, %v303, 0
      %v1081 = vsel %vm414, %v304, 0
      %v1084 = vsel %vm414, %v305, 0
      %v1087 = vsel %vm414, %v306, 0
      %v1090 = vsel %vm414, %v307, 0
      %v1093 = vsel %vm414, %v308, 0
      %v1096 = vsel %vm414, %v309, 0
      %v1099 = vsel %vm414, %v310, 0
      %v1102 = vsel %vm414, %v311, 0
      %v1105 = vsel %vm414, %v312, 0
      %v1108 = vsel %vm414, %v313, 0
      %v1111 = vsel %vm414, %v314, 0
      %v1114 = vsel %vm414, %v315, 0
      %v1117 = vsel %vm414, %v316, 0
      %v1120 = vsel %vm414, %v317, 0
      %v1123 = vsel %vm414, %v318, 0
      %v1126 = vsel %vm414, %v319, 0
      %v1129 = vsel %vm414, %v320, 0
      %v1132 = vsel %vm414, %v321, 0
      %v1135 = vsel %vm414, %v322, 0
      %v1138 = vsel %vm414, %v323, 0
      %v1141 = vsel %vm414, %v324, 0
      %v1144 = vsel %vm414, %v325, 0
      %v1147 = vsel %vm414, %v326, 0
      %v1150 = vsel %vm414, %v327, 0
      %v1153 = vsel %vm414, %v328, 0
      %v1156 = vsel %vm414, %v329, 0
      %v1159 = vsel %vm414, %v330, 0
      %1161 = vmatpush.msra.mxu0 0.0
      %1162 = vmatpush.msra.mxu0 0.0
      %1163 = vmatpush.msra.mxu0 0.0
      %1164 = vmatpush.msra.mxu0 0.0
      %1165 = vmatpush.msra.mxu0 0.0
      %1166 = vmatpush.msra.mxu0 0.0
      %1167 = vmatpush.msra.mxu0 0.0
      %1168 = vmatpush.msra.mxu0 0.0
      %1169 = vmatpush.msra.mxu0 0.0
      %1170 = vmatpush.msra.mxu0 0.0
      %1171 = vmatpush.msra.mxu0 0.0
      %1172 = vmatpush.msra.mxu0 0.0
      %1173 = vmatpush.msra.mxu0 0.0
      %1174 = vmatpush.msra.mxu0 0.0
      %1175 = vmatpush.msra.mxu0 0.0
      %1176 = vmatpush.msra.mxu0 %v331
      %1177 = vmatmul.f32.gmra.mxu0 %v919
      %v1178 = vpop.f32.mrf.mxu0
      %v1179 = vadd.f32 %v676, %v1178
      %1180 = vmatmul.f32.gmra.mxu0 %v922
      %v1181 = vpop.f32.mrf.mxu0
      %v1182 = vadd.f32 %v679, %v1181
      %1183 = vmatmul.f32.gmra.mxu0 %v925
      %v1184 = vpop.f32.mrf.mxu0
      %v1185 = vadd.f32 %v682, %v1184
      %1186 = vmatmul.f32.gmra.mxu0 %v928
      %v1187 = vpop.f32.mrf.mxu0
      %v1188 = vadd.f32 %v685, %v1187
      %1189 = vmatmul.f32.gmra.mxu0 %v931
      %v1190 = vpop.f32.mrf.mxu0
      %v1191 = vadd.f32 %v688, %v1190
      %1192 = vmatmul.f32.gmra.mxu0 %v934
      %v1193 = vpop.f32.mrf.mxu0
      %v1194 = vadd.f32 %v691, %v1193
      %1195 = vmatmul.f32.gmra.mxu0 %v937
      %v1196 = vpop.f32.mrf.mxu0
      %v1197 = vadd.f32 %v694, %v1196
      %1198 = vmatmul.f32.gmra.mxu0 %v940
      %v1199 = vpop.f32.mrf.mxu0
      %v1200 = vadd.f32 %v697, %v1199
      %1201 = vmatmul.f32.gmra.mxu0 %v943
      %v1202 = vpop.f32.mrf.mxu0
      %v1203 = vadd.f32 %v700, %v1202
      %1204 = vmatmul.f32.gmra.mxu0 %v946
      %v1205 = vpop.f32.mrf.mxu0
      %v1206 = vadd.f32 %v703, %v1205
      %1207 = vmatmul.f32.gmra.mxu0 %v949
      %v1208 = vpop.f32.mrf.mxu0
      %v1209 = vadd.f32 %v706, %v1208
      %1210 = vmatmul.f32.gmra.mxu0 %v952
      %v1211 = vpop.f32.mrf.mxu0
      %v1212 = vadd.f32 %v709, %v1211
      %1213 = vmatmul.f32.gmra.mxu0 %v955
      %v1214 = vpop.f32.mrf.mxu0
      %v1215 = vadd.f32 %v712, %v1214
      %1216 = vmatmul.f32.gmra.mxu0 %v958
      %v1217 = vpop.f32.mrf.mxu0
      %v1218 = vadd.f32 %v715, %v1217
      %1219 = vmatmul.f32.gmra.mxu0 %v961
      %v1220 = vpop.f32.mrf.mxu0
      %v1221 = vadd.f32 %v718, %v1220
      %1222 = vmatmul.f32.gmra.mxu0 %v964
      %v1223 = vpop.f32.mrf.mxu0
      %v1224 = vadd.f32 %v721, %v1223
      %1225 = vmatmul.f32.gmra.mxu0 %v967
      %v1226 = vpop.f32.mrf.mxu0
      %v1227 = vadd.f32 %v724, %v1226
      %1228 = vmatmul.f32.gmra.mxu0 %v970
      %v1229 = vpop.f32.mrf.mxu0
      %v1230 = vadd.f32 %v727, %v1229
      %1231 = vmatmul.f32.gmra.mxu0 %v973
      %v1232 = vpop.f32.mrf.mxu0
      %v1233 = vadd.f32 %v730, %v1232
      %1234 = vmatmul.f32.gmra.mxu0 %v976
      %v1235 = vpop.f32.mrf.mxu0
      %v1236 = vadd.f32 %v733, %v1235
      %1237 = vmatmul.f32.gmra.mxu0 %v979
      %v1238 = vpop.f32.mrf.mxu0
      %v1239 = vadd.f32 %v736, %v1238
      %1240 = vmatmul.f32.gmra.mxu0 %v982
      %v1241 = vpop.f32.mrf.mxu0
      %v1242 = vadd.f32 %v739, %v1241
      %1243 = vmatmul.f32.gmra.mxu0 %v985
      %v1244 = vpop.f32.mrf.mxu0
      %v1245 = vadd.f32 %v742, %v1244
      %1246 = vmatmul.f32.gmra.mxu0 %v988
      %v1247 = vpop.f32.mrf.mxu0
      %v1248 = vadd.f32 %v745, %v1247
      %1249 = vmatmul.f32.gmra.mxu0 %v991
      %v1250 = vpop.f32.mrf.mxu0
      %v1251 = vadd.f32 %v748, %v1250
      %1252 = vmatmul.f32.gmra.mxu0 %v994
      %v1253 = vpop.f32.mrf.mxu0
      %v1254 = vadd.f32 %v751, %v1253
      %1255 = vmatmul.f32.gmra.mxu0 %v997
      %v1256 = vpop.f32.mrf.mxu0
      %v1257 = vadd.f32 %v754, %v1256
      %1258 = vmatmul.f32.gmra.mxu0 %v1000
      %v1259 = vpop.f32.mrf.mxu0
      %v1260 = vadd.f32 %v757, %v1259
      %1261 = vmatmul.f32.gmra.mxu0 %v1003
      %v1262 = vpop.f32.mrf.mxu0
      %v1263 = vadd.f32 %v760, %v1262
      %1264 = vmatmul.f32.gmra.mxu0 %v1006
      %v1265 = vpop.f32.mrf.mxu0
      %v1266 = vadd.f32 %v763, %v1265
      %1267 = vmatmul.f32.gmra.mxu0 %v1009
      %v1268 = vpop.f32.mrf.mxu0
      %v1269 = vadd.f32 %v766, %v1268
      %1270 = vmatmul.f32.gmra.mxu0 %v1012
      %v1271 = vpop.f32.mrf.mxu0
      %v1272 = vadd.f32 %v769, %v1271
      %1273 = vmatmul.f32.gmra.mxu0 %v1015
      %v1274 = vpop.f32.mrf.mxu0
      %v1275 = vadd.f32 %v772, %v1274
      %1276 = vmatmul.f32.gmra.mxu0 %v1018
      %v1277 = vpop.f32.mrf.mxu0
      %v1278 = vadd.f32 %v775, %v1277
      %1279 = vmatmul.f32.gmra.mxu0 %v1021
      %v1280 = vpop.f32.mrf.mxu0
      %v1281 = vadd.f32 %v778, %v1280
      %1282 = vmatmul.f32.gmra.mxu0 %v1024
      %v1283 = vpop.f32.mrf.mxu0
      %v1284 = vadd.f32 %v781, %v1283
      %1285 = vmatmul.f32.gmra.mxu0 %v1027
      %v1286 = vpop.f32.mrf.mxu0
      %v1287 = vadd.f32 %v784, %v1286
      %1288 = vmatmul.f32.gmra.mxu0 %v1030
      %v1289 = vpop.f32.mrf.mxu0
      %v1290 = vadd.f32 %v787, %v1289
      %1291 = vmatmul.f32.gmra.mxu0 %v1033
      %v1292 = vpop.f32.mrf.mxu0
      %v1293 = vadd.f32 %v790, %v1292
      %1294 = vmatmul.f32.gmra.mxu0 %v1036
      %v1295 = vpop.f32.mrf.mxu0
      %v1296 = vadd.f32 %v793, %v1295
      %1297 = vmatmul.f32.gmra.mxu0 %v1039
      %v1298 = vpop.f32.mrf.mxu0
      %v1299 = vadd.f32 %v796, %v1298
      %1300 = vmatmul.f32.gmra.mxu0 %v1042
      %v1301 = vpop.f32.mrf.mxu0
      %v1302 = vadd.f32 %v799, %v1301
      %1303 = vmatmul.f32.gmra.mxu0 %v1045
      %v1304 = vpop.f32.mrf.mxu0
      %v1305 = vadd.f32 %v802, %v1304
      %1306 = vmatmul.f32.gmra.mxu0 %v1048
      %v1307 = vpop.f32.mrf.mxu0
      %v1308 = vadd.f32 %v805, %v1307
      %1309 = vmatmul.f32.gmra.mxu0 %v1051
      %v1310 = vpop.f32.mrf.mxu0
      %v1311 = vadd.f32 %v808, %v1310
      %1312 = vmatmul.f32.gmra.mxu0 %v1054
      %v1313 = vpop.f32.mrf.mxu0
      %v1314 = vadd.f32 %v811, %v1313
      %1315 = vmatmul.f32.gmra.mxu0 %v1057
      %v1316 = vpop.f32.mrf.mxu0
      %v1317 = vadd.f32 %v814, %v1316
      %1318 = vmatmul.f32.gmra.mxu0 %v1060
      %v1319 = vpop.f32.mrf.mxu0
      %v1320 = vadd.f32 %v817, %v1319
      %1321 = vmatmul.f32.gmra.mxu0 %v1063
      %v1322 = vpop.f32.mrf.mxu0
      %v1323 = vadd.f32 %v820, %v1322
      %1324 = vmatmul.f32.gmra.mxu0 %v1066
      %v1325 = vpop.f32.mrf.mxu0
      %v1326 = vadd.f32 %v823, %v1325
      %1327 = vmatmul.f32.gmra.mxu0 %v1069
      %v1328 = vpop.f32.mrf.mxu0
      %v1329 = vadd.f32 %v826, %v1328
      %1330 = vmatmul.f32.gmra.mxu0 %v1072
      %v1331 = vpop.f32.mrf.mxu0
      %v1332 = vadd.f32 %v829, %v1331
      %1333 = vmatmul.f32.gmra.mxu0 %v1075
      %v1334 = vpop.f32.mrf.mxu0
      %v1335 = vadd.f32 %v832, %v1334
      %1336 = vmatmul.f32.gmra.mxu0 %v1078
      %v1337 = vpop.f32.mrf.mxu0
      %v1338 = vadd.f32 %v835, %v1337
      %1339 = vmatmul.f32.gmra.mxu0 %v1081
      %v1340 = vpop.f32.mrf.mxu0
      %v1341 = vadd.f32 %v838, %v1340
      %1342 = vmatmul.f32.gmra.mxu0 %v1084
      %v1343 = vpop.f32.mrf.mxu0
      %v1344 = vadd.f32 %v841, %v1343
      %1345 = vmatmul.f32.gmra.mxu0 %v1087
      %v1346 = vpop.f32.mrf.mxu0
      %v1347 = vadd.f32 %v844, %v1346
      %1348 = vmatmul.f32.gmra.mxu0 %v1090
      %v1349 = vpop.f32.mrf.mxu0
      %v1350 = vadd.f32 %v847, %v1349
      %1351 = vmatmul.f32.gmra.mxu0 %v1093
      %v1352 = vpop.f32.mrf.mxu0
      %v1353 = vadd.f32 %v850, %v1352
      %1354 = vmatmul.f32.gmra.mxu0 %v1096
      %v1355 = vpop.f32.mrf.mxu0
      %v1356 = vadd.f32 %v853, %v1355
      %1357 = vmatmul.f32.gmra.mxu0 %v1099
      %v1358 = vpop.f32.mrf.mxu0
      %v1359 = vadd.f32 %v856, %v1358
      %1360 = vmatmul.f32.gmra.mxu0 %v1102
      %v1361 = vpop.f32.mrf.mxu0
      %v1362 = vadd.f32 %v859, %v1361
      %1363 = vmatmul.f32.gmra.mxu0 %v1105
      %v1364 = vpop.f32.mrf.mxu0
      %v1365 = vadd.f32 %v862, %v1364
      %1366 = vmatmul.f32.gmra.mxu0 %v1108
      %v1367 = vpop.f32.mrf.mxu0
      %v1368 = vadd.f32 %v865, %v1367
      %1369 = vmatmul.f32.gmra.mxu0 %v1111
      %v1370 = vpop.f32.mrf.mxu0
      %v1371 = vadd.f32 %v868, %v1370
      %1372 = vmatmul.f32.gmra.mxu0 %v1114
      %v1373 = vpop.f32.mrf.mxu0
      %v1374 = vadd.f32 %v871, %v1373
      %1375 = vmatmul.f32.gmra.mxu0 %v1117
      %v1376 = vpop.f32.mrf.mxu0
      %v1377 = vadd.f32 %v874, %v1376
      %1378 = vmatmul.f32.gmra.mxu0 %v1120
      %v1379 = vpop.f32.mrf.mxu0
      %v1380 = vadd.f32 %v877, %v1379
      %1381 = vmatmul.f32.gmra.mxu0 %v1123
      %v1382 = vpop.f32.mrf.mxu0
      %v1383 = vadd.f32 %v880, %v1382
      %1384 = vmatmul.f32.gmra.mxu0 %v1126
      %v1385 = vpop.f32.mrf.mxu0
      %v1386 = vadd.f32 %v883, %v1385
      %1387 = vmatmul.f32.gmra.mxu0 %v1129
      %v1388 = vpop.f32.mrf.mxu0
      %v1389 = vadd.f32 %v886, %v1388
      %1390 = vmatmul.f32.gmra.mxu0 %v1132
      %v1391 = vpop.f32.mrf.mxu0
      %v1392 = vadd.f32 %v889, %v1391
      %1393 = vmatmul.f32.gmra.mxu0 %v1135
      %v1394 = vpop.f32.mrf.mxu0
      %v1395 = vadd.f32 %v892, %v1394
      %1396 = vmatmul.f32.gmra.mxu0 %v1138
      %v1397 = vpop.f32.mrf.mxu0
      %v1398 = vadd.f32 %v895, %v1397
      %1399 = vmatmul.f32.gmra.mxu0 %v1141
      %v1400 = vpop.f32.mrf.mxu0
      %v1401 = vadd.f32 %v898, %v1400
      %1402 = vmatmul.f32.gmra.mxu0 %v1144
      %v1403 = vpop.f32.mrf.mxu0
      %v1404 = vadd.f32 %v901, %v1403
      %1405 = vmatmul.f32.gmra.mxu0 %v1147
      %v1406 = vpop.f32.mrf.mxu0
      %v1407 = vadd.f32 %v904, %v1406
      %1408 = vmatmul.f32.gmra.mxu0 %v1150
      %v1409 = vpop.f32.mrf.mxu0
      %v1410 = vadd.f32 %v907, %v1409
      %1411 = vmatmul.f32.gmra.mxu0 %v1153
      %v1412 = vpop.f32.mrf.mxu0
      %v1413 = vadd.f32 %v910, %v1412
      %1414 = vmatmul.f32.gmra.mxu0 %v1156
      %v1415 = vpop.f32.mrf.mxu0
      %v1416 = vadd.f32 %v913, %v1415
      %1417 = vmatmul.f32.gmra.mxu0 %v1159
      %v1418 = vpop.f32.mrf.mxu0
      %v1419 = vadd.f32 %v916, %v1418
      %1420 = vdwg.mxu0
      %v1421 = vld [vmem:[%s245 + $0x2] sm:$0xff]
      %v1422 = vld [vmem:[%s245 + $0xa] sm:$0xff]
      %v1423 = vld [vmem:[%s245 + $0x12] sm:$0xff]
      %v1424 = vld [vmem:[%s245 + $0x1a] sm:$0xff]
      %v1425 = vld [vmem:[%s245 + $0x22] sm:$0xff]
      %v1426 = vld [vmem:[%s245 + $0x2a] sm:$0xff]
      %v1427 = vld [vmem:[%s245 + $0x32] sm:$0xff]
      %v1428 = vld [vmem:[%s245 + $0x3a] sm:$0xff]
      %v1429 = vld [vmem:[%s245 + $0x42] sm:$0xff]
      %v1430 = vld [vmem:[%s245 + $0x4a] sm:$0xff]
      %v1431 = vld [vmem:[%s245 + $0x52] sm:$0xff]
      %v1432 = vld [vmem:[%s245 + $0x5a] sm:$0xff]
      %v1433 = vld [vmem:[%s245 + $0x62] sm:$0xff]
      %v1434 = vld [vmem:[%s245 + $0x6a] sm:$0xff]
      %v1435 = vld [vmem:[%s245 + $0x72] sm:$0xff]
      %v1436 = vld [vmem:[%s245 + $0x7a] sm:$0xff]
      %v1437 = vld [vmem:[%s245 + $0x82] sm:$0xff]
      %v1438 = vld [vmem:[%s245 + $0x8a] sm:$0xff]
      %v1439 = vld [vmem:[%s245 + $0x92] sm:$0xff]
      %v1440 = vld [vmem:[%s245 + $0x9a] sm:$0xff]
      %v1441 = vld [vmem:[%s245 + $0xa2] sm:$0xff]
      %v1442 = vld [vmem:[%s245 + $0xaa] sm:$0xff]
      %v1443 = vld [vmem:[%s245 + $0xb2] sm:$0xff]
      %v1444 = vld [vmem:[%s245 + $0xba] sm:$0xff]
      %v1445 = vld [vmem:[%s245 + $0xc2] sm:$0xff]
      %v1446 = vld [vmem:[%s245 + $0xca] sm:$0xff]
      %v1447 = vld [vmem:[%s245 + $0xd2] sm:$0xff]
      %v1448 = vld [vmem:[%s245 + $0xda] sm:$0xff]
      %v1449 = vld [vmem:[%s245 + $0xe2] sm:$0xff]
      %v1450 = vld [vmem:[%s245 + $0xea] sm:$0xff]
      %v1451 = vld [vmem:[%s245 + $0xf2] sm:$0xff]
      %v1452 = vld [vmem:[%s245 + $0xfa] sm:$0xff]
      %v1453 = vld [vmem:[%s245 + $0x102] sm:$0xff]
      %v1454 = vld [vmem:[%s245 + $0x10a] sm:$0xff]
      %v1455 = vld [vmem:[%s245 + $0x112] sm:$0xff]
      %v1456 = vld [vmem:[%s245 + $0x11a] sm:$0xff]
      %v1457 = vld [vmem:[%s245 + $0x122] sm:$0xff]
      %v1458 = vld [vmem:[%s245 + $0x12a] sm:$0xff]
      %v1459 = vld [vmem:[%s245 + $0x132] sm:$0xff]
      %v1460 = vld [vmem:[%s245 + $0x13a] sm:$0xff]
      %v1461 = vld [vmem:[%s245 + $0x142] sm:$0xff]
      %v1462 = vld [vmem:[%s245 + $0x14a] sm:$0xff]
      %v1463 = vld [vmem:[%s245 + $0x152] sm:$0xff]
      %v1464 = vld [vmem:[%s245 + $0x15a] sm:$0xff]
      %v1465 = vld [vmem:[%s245 + $0x162] sm:$0xff]
      %v1466 = vld [vmem:[%s245 + $0x16a] sm:$0xff]
      %v1467 = vld [vmem:[%s245 + $0x172] sm:$0xff]
      %v1468 = vld [vmem:[%s245 + $0x17a] sm:$0xff]
      %v1469 = vld [vmem:[%s245 + $0x182] sm:$0xff]
      %v1470 = vld [vmem:[%s245 + $0x18a] sm:$0xff]
      %v1471 = vld [vmem:[%s245 + $0x192] sm:$0xff]
      %v1472 = vld [vmem:[%s245 + $0x19a] sm:$0xff]
      %v1473 = vld [vmem:[%s245 + $0x1a2] sm:$0xff]
      %v1474 = vld [vmem:[%s245 + $0x1aa] sm:$0xff]
      %v1475 = vld [vmem:[%s245 + $0x1b2] sm:$0xff]
      %v1476 = vld [vmem:[%s245 + $0x1ba] sm:$0xff]
      %v1477 = vld [vmem:[%s245 + $0x1c2] sm:$0xff]
      %v1478 = vld [vmem:[%s245 + $0x1ca] sm:$0xff]
      %v1479 = vld [vmem:[%s245 + $0x1d2] sm:$0xff]
      %v1480 = vld [vmem:[%s245 + $0x1da] sm:$0xff]
      %v1481 = vld [vmem:[%s245 + $0x1e2] sm:$0xff]
      %v1482 = vld [vmem:[%s245 + $0x1ea] sm:$0xff]
      %v1483 = vld [vmem:[%s245 + $0x1f2] sm:$0xff]
      %v1484 = vld [vmem:[%s245 + $0x1fa] sm:$0xff]
      %v1485 = vld [vmem:[%s245 + $0x202] sm:$0xff]
      %v1486 = vld [vmem:[%s245 + $0x20a] sm:$0xff]
      %v1487 = vld [vmem:[%s245 + $0x212] sm:$0xff]
      %v1488 = vld [vmem:[%s245 + $0x21a] sm:$0xff]
      %v1489 = vld [vmem:[%s245 + $0x222] sm:$0xff]
      %v1490 = vld [vmem:[%s245 + $0x22a] sm:$0xff]
      %v1491 = vld [vmem:[%s245 + $0x232] sm:$0xff]
      %v1492 = vld [vmem:[%s245 + $0x23a] sm:$0xff]
      %v1493 = vld [vmem:[%s245 + $0x242] sm:$0xff]
      %v1494 = vld [vmem:[%s245 + $0x24a] sm:$0xff]
      %v1495 = vld [vmem:[%s245 + $0x252] sm:$0xff]
      %v1496 = vld [vmem:[%s245 + $0x25a] sm:$0xff]
      %v1497 = vld [vmem:[%s245 + $0x262] sm:$0xff]
      %v1498 = vld [vmem:[%s245 + $0x26a] sm:$0xff]
      %v1499 = vld [vmem:[%s245 + $0x272] sm:$0xff]
      %v1500 = vld [vmem:[%s245 + $0x27a] sm:$0xff]
      %v1501 = vld [vmem:[%s245 + $0x282] sm:$0xff]
      %v1502 = vld [vmem:[%s2 + $0x10] sm:$0xff]
      %v1504 = vsel %vm414, %v1421, 0
      %v1507 = vsel %vm414, %v1422, 0
      %v1510 = vsel %vm414, %v1423, 0
      %v1513 = vsel %vm414, %v1424, 0
      %v1516 = vsel %vm414, %v1425, 0
      %v1519 = vsel %vm414, %v1426, 0
      %v1522 = vsel %vm414, %v1427, 0
      %v1525 = vsel %vm414, %v1428, 0
      %v1528 = vsel %vm414, %v1429, 0
      %v1531 = vsel %vm414, %v1430, 0
      %v1534 = vsel %vm414, %v1431, 0
      %v1537 = vsel %vm414, %v1432, 0
      %v1540 = vsel %vm414, %v1433, 0
      %v1543 = vsel %vm414, %v1434, 0
      %v1546 = vsel %vm414, %v1435, 0
      %v1549 = vsel %vm414, %v1436, 0
      %v1552 = vsel %vm414, %v1437, 0
      %v1555 = vsel %vm414, %v1438, 0
      %v1558 = vsel %vm414, %v1439, 0
      %v1561 = vsel %vm414, %v1440, 0
      %v1564 = vsel %vm414, %v1441, 0
      %v1567 = vsel %vm414, %v1442, 0
      %v1570 = vsel %vm414, %v1443, 0
      %v1573 = vsel %vm414, %v1444, 0
      %v1576 = vsel %vm414, %v1445, 0
      %v1579 = vsel %vm414, %v1446, 0
      %v1582 = vsel %vm414, %v1447, 0
      %v1585 = vsel %vm414, %v1448, 0
      %v1588 = vsel %vm414, %v1449, 0
      %v1591 = vsel %vm414, %v1450, 0
      %v1594 = vsel %vm414, %v1451, 0
      %v1597 = vsel %vm414, %v1452, 0
      %v1600 = vsel %vm414, %v1453, 0
      %v1603 = vsel %vm414, %v1454, 0
      %v1606 = vsel %vm414, %v1455, 0
      %v1609 = vsel %vm414, %v1456, 0
      %v1612 = vsel %vm414, %v1457, 0
      %v1615 = vsel %vm414, %v1458, 0
      %v1618 = vsel %vm414, %v1459, 0
      %v1621 = vsel %vm414, %v1460, 0
      %v1624 = vsel %vm414, %v1461, 0
      %v1627 = vsel %vm414, %v1462, 0
      %v1630 = vsel %vm414, %v1463, 0
      %v1633 = vsel %vm414, %v1464, 0
      %v1636 = vsel %vm414, %v1465, 0
      %v1639 = vsel %vm414, %v1466, 0
      %v1642 = vsel %vm414, %v1467, 0
      %v1645 = vsel %vm414, %v1468, 0
      %v1648 = vsel %vm414, %v1469, 0
      %v1651 = vsel %vm414, %v1470, 0
      %v1654 = vsel %vm414, %v1471, 0
      %v1657 = vsel %vm414, %v1472, 0
      %v1660 = vsel %vm414, %v1473, 0
      %v1663 = vsel %vm414, %v1474, 0
      %v1666 = vsel %vm414, %v1475, 0
      %v1669 = vsel %vm414, %v1476, 0
      %v1672 = vsel %vm414, %v1477, 0
      %v1675 = vsel %vm414, %v1478, 0
      %v1678 = vsel %vm414, %v1479, 0
      %v1681 = vsel %vm414, %v1480, 0
      %v1684 = vsel %vm414, %v1481, 0
      %v1687 = vsel %vm414, %v1482, 0
      %v1690 = vsel %vm414, %v1483, 0
      %v1693 = vsel %vm414, %v1484, 0
      %v1696 = vsel %vm414, %v1485, 0
      %v1699 = vsel %vm414, %v1486, 0
      %v1702 = vsel %vm414, %v1487, 0
      %v1705 = vsel %vm414, %v1488, 0
      %v1708 = vsel %vm414, %v1489, 0
      %v1711 = vsel %vm414, %v1490, 0
      %v1714 = vsel %vm414, %v1491, 0
      %v1717 = vsel %vm414, %v1492, 0
      %v1720 = vsel %vm414, %v1493, 0
      %v1723 = vsel %vm414, %v1494, 0
      %v1726 = vsel %vm414, %v1495, 0
      %v1729 = vsel %vm414, %v1496, 0
      %v1732 = vsel %vm414, %v1497, 0
      %v1735 = vsel %vm414, %v1498, 0
      %v1738 = vsel %vm414, %v1499, 0
      %v1741 = vsel %vm414, %v1500, 0
      %v1744 = vsel %vm414, %v1501, 0
      %1746 = vmatpush.msra.mxu0 0.0
      %1747 = vmatpush.msra.mxu0 0.0
      %1748 = vmatpush.msra.mxu0 0.0
      %1749 = vmatpush.msra.mxu0 0.0
      %1750 = vmatpush.msra.mxu0 0.0
      %1751 = vmatpush.msra.mxu0 0.0
      %1752 = vmatpush.msra.mxu0 0.0
      %1753 = vmatpush.msra.mxu0 0.0
      %1754 = vmatpush.msra.mxu0 0.0
      %1755 = vmatpush.msra.mxu0 0.0
      %1756 = vmatpush.msra.mxu0 0.0
      %1757 = vmatpush.msra.mxu0 0.0
      %1758 = vmatpush.msra.mxu0 0.0
      %1759 = vmatpush.msra.mxu0 0.0
      %1760 = vmatpush.msra.mxu0 0.0
      %1761 = vmatpush.msra.mxu0 %v1502
      %1762 = vmatmul.f32.gmra.mxu0 %v1504
      %v1763 = vpop.f32.mrf.mxu0
      %v1764 = vadd.f32 0.0, %v1763
      %1765 = vmatmul.f32.gmra.mxu0 %v1507
      %v1766 = vpop.f32.mrf.mxu0
      %v1767 = vadd.f32 0.0, %v1766
      %1768 = vmatmul.f32.gmra.mxu0 %v1510
      %v1769 = vpop.f32.mrf.mxu0
      %v1770 = vadd.f32 0.0, %v1769
      %1771 = vmatmul.f32.gmra.mxu0 %v1513
      %v1772 = vpop.f32.mrf.mxu0
      %v1773 = vadd.f32 0.0, %v1772
      %1774 = vmatmul.f32.gmra.mxu0 %v1516
      %v1775 = vpop.f32.mrf.mxu0
      %v1776 = vadd.f32 0.0, %v1775
      %1777 = vmatmul.f32.gmra.mxu0 %v1519
      %v1778 = vpop.f32.mrf.mxu0
      %v1779 = vadd.f32 0.0, %v1778
      %1780 = vmatmul.f32.gmra.mxu0 %v1522
      %v1781 = vpop.f32.mrf.mxu0
      %v1782 = vadd.f32 0.0, %v1781
      %1783 = vmatmul.f32.gmra.mxu0 %v1525
      %v1784 = vpop.f32.mrf.mxu0
      %v1785 = vadd.f32 0.0, %v1784
      %1786 = vmatmul.f32.gmra.mxu0 %v1528
      %v1787 = vpop.f32.mrf.mxu0
      %v1788 = vadd.f32 0.0, %v1787
      %1789 = vmatmul.f32.gmra.mxu0 %v1531
      %v1790 = vpop.f32.mrf.mxu0
      %v1791 = vadd.f32 0.0, %v1790
      %1792 = vmatmul.f32.gmra.mxu0 %v1534
      %v1793 = vpop.f32.mrf.mxu0
      %v1794 = vadd.f32 0.0, %v1793
      %1795 = vmatmul.f32.gmra.mxu0 %v1537
      %v1796 = vpop.f32.mrf.mxu0
      %v1797 = vadd.f32 0.0, %v1796
      %1798 = vmatmul.f32.gmra.mxu0 %v1540
      %v1799 = vpop.f32.mrf.mxu0
      %v1800 = vadd.f32 0.0, %v1799
      %1801 = vmatmul.f32.gmra.mxu0 %v1543
      %v1802 = vpop.f32.mrf.mxu0
      %v1803 = vadd.f32 0.0, %v1802
      %1804 = vmatmul.f32.gmra.mxu0 %v1546
      %v1805 = vpop.f32.mrf.mxu0
      %v1806 = vadd.f32 0.0, %v1805
      %1807 = vmatmul.f32.gmra.mxu0 %v1549
      %v1808 = vpop.f32.mrf.mxu0
      %v1809 = vadd.f32 0.0, %v1808
      %1810 = vmatmul.f32.gmra.mxu0 %v1552
      %v1811 = vpop.f32.mrf.mxu0
      %v1812 = vadd.f32 0.0, %v1811
      %1813 = vmatmul.f32.gmra.mxu0 %v1555
      %v1814 = vpop.f32.mrf.mxu0
      %v1815 = vadd.f32 0.0, %v1814
      %1816 = vmatmul.f32.gmra.mxu0 %v1558
      %v1817 = vpop.f32.mrf.mxu0
      %v1818 = vadd.f32 0.0, %v1817
      %1819 = vmatmul.f32.gmra.mxu0 %v1561
      %v1820 = vpop.f32.mrf.mxu0
      %v1821 = vadd.f32 0.0, %v1820
      %1822 = vmatmul.f32.gmra.mxu0 %v1564
      %v1823 = vpop.f32.mrf.mxu0
      %v1824 = vadd.f32 0.0, %v1823
      %1825 = vmatmul.f32.gmra.mxu0 %v1567
      %v1826 = vpop.f32.mrf.mxu0
      %v1827 = vadd.f32 0.0, %v1826
      %1828 = vmatmul.f32.gmra.mxu0 %v1570
      %v1829 = vpop.f32.mrf.mxu0
      %v1830 = vadd.f32 0.0, %v1829
      %1831 = vmatmul.f32.gmra.mxu0 %v1573
      %v1832 = vpop.f32.mrf.mxu0
      %v1833 = vadd.f32 0.0, %v1832
      %1834 = vmatmul.f32.gmra.mxu0 %v1576
      %v1835 = vpop.f32.mrf.mxu0
      %v1836 = vadd.f32 0.0, %v1835
      %1837 = vmatmul.f32.gmra.mxu0 %v1579
      %v1838 = vpop.f32.mrf.mxu0
      %v1839 = vadd.f32 0.0, %v1838
      %1840 = vmatmul.f32.gmra.mxu0 %v1582
      %v1841 = vpop.f32.mrf.mxu0
      %v1842 = vadd.f32 0.0, %v1841
      %1843 = vmatmul.f32.gmra.mxu0 %v1585
      %v1844 = vpop.f32.mrf.mxu0
      %v1845 = vadd.f32 0.0, %v1844
      %1846 = vmatmul.f32.gmra.mxu0 %v1588
      %v1847 = vpop.f32.mrf.mxu0
      %v1848 = vadd.f32 0.0, %v1847
      %1849 = vmatmul.f32.gmra.mxu0 %v1591
      %v1850 = vpop.f32.mrf.mxu0
      %v1851 = vadd.f32 0.0, %v1850
      %1852 = vmatmul.f32.gmra.mxu0 %v1594
      %v1853 = vpop.f32.mrf.mxu0
      %v1854 = vadd.f32 0.0, %v1853
      %1855 = vmatmul.f32.gmra.mxu0 %v1597
      %v1856 = vpop.f32.mrf.mxu0
      %v1857 = vadd.f32 0.0, %v1856
      %1858 = vmatmul.f32.gmra.mxu0 %v1600
      %v1859 = vpop.f32.mrf.mxu0
      %v1860 = vadd.f32 0.0, %v1859
      %1861 = vmatmul.f32.gmra.mxu0 %v1603
      %v1862 = vpop.f32.mrf.mxu0
      %v1863 = vadd.f32 0.0, %v1862
      %1864 = vmatmul.f32.gmra.mxu0 %v1606
      %v1865 = vpop.f32.mrf.mxu0
      %v1866 = vadd.f32 0.0, %v1865
      %1867 = vmatmul.f32.gmra.mxu0 %v1609
      %v1868 = vpop.f32.mrf.mxu0
      %v1869 = vadd.f32 0.0, %v1868
      %1870 = vmatmul.f32.gmra.mxu0 %v1612
      %v1871 = vpop.f32.mrf.mxu0
      %v1872 = vadd.f32 0.0, %v1871
      %1873 = vmatmul.f32.gmra.mxu0 %v1615
      %v1874 = vpop.f32.mrf.mxu0
      %v1875 = vadd.f32 0.0, %v1874
      %1876 = vmatmul.f32.gmra.mxu0 %v1618
      %v1877 = vpop.f32.mrf.mxu0
      %v1878 = vadd.f32 0.0, %v1877
      %1879 = vmatmul.f32.gmra.mxu0 %v1621
      %v1880 = vpop.f32.mrf.mxu0
      %v1881 = vadd.f32 0.0, %v1880
      %1882 = vmatmul.f32.gmra.mxu0 %v1624
      %v1883 = vpop.f32.mrf.mxu0
      %v1884 = vadd.f32 0.0, %v1883
      %1885 = vmatmul.f32.gmra.mxu0 %v1627
      %v1886 = vpop.f32.mrf.mxu0
      %v1887 = vadd.f32 0.0, %v1886
      %1888 = vmatmul.f32.gmra.mxu0 %v1630
      %v1889 = vpop.f32.mrf.mxu0
      %v1890 = vadd.f32 0.0, %v1889
      %1891 = vmatmul.f32.gmra.mxu0 %v1633
      %v1892 = vpop.f32.mrf.mxu0
      %v1893 = vadd.f32 0.0, %v1892
      %1894 = vmatmul.f32.gmra.mxu0 %v1636
      %v1895 = vpop.f32.mrf.mxu0
      %v1896 = vadd.f32 0.0, %v1895
      %1897 = vmatmul.f32.gmra.mxu0 %v1639
      %v1898 = vpop.f32.mrf.mxu0
      %v1899 = vadd.f32 0.0, %v1898
      %1900 = vmatmul.f32.gmra.mxu0 %v1642
      %v1901 = vpop.f32.mrf.mxu0
      %v1902 = vadd.f32 0.0, %v1901
      %1903 = vmatmul.f32.gmra.mxu0 %v1645
      %v1904 = vpop.f32.mrf.mxu0
      %v1905 = vadd.f32 0.0, %v1904
      %1906 = vmatmul.f32.gmra.mxu0 %v1648
      %v1907 = vpop.f32.mrf.mxu0
      %v1908 = vadd.f32 0.0, %v1907
      %1909 = vmatmul.f32.gmra.mxu0 %v1651
      %v1910 = vpop.f32.mrf.mxu0
      %v1911 = vadd.f32 0.0, %v1910
      %1912 = vmatmul.f32.gmra.mxu0 %v1654
      %v1913 = vpop.f32.mrf.mxu0
      %v1914 = vadd.f32 0.0, %v1913
      %1915 = vmatmul.f32.gmra.mxu0 %v1657
      %v1916 = vpop.f32.mrf.mxu0
      %v1917 = vadd.f32 0.0, %v1916
      %1918 = vmatmul.f32.gmra.mxu0 %v1660
      %v1919 = vpop.f32.mrf.mxu0
      %v1920 = vadd.f32 0.0, %v1919
      %1921 = vmatmul.f32.gmra.mxu0 %v1663
      %v1922 = vpop.f32.mrf.mxu0
      %v1923 = vadd.f32 0.0, %v1922
      %1924 = vmatmul.f32.gmra.mxu0 %v1666
      %v1925 = vpop.f32.mrf.mxu0
      %v1926 = vadd.f32 0.0, %v1925
      %1927 = vmatmul.f32.gmra.mxu0 %v1669
      %v1928 = vpop.f32.mrf.mxu0
      %v1929 = vadd.f32 0.0, %v1928
      %1930 = vmatmul.f32.gmra.mxu0 %v1672
      %v1931 = vpop.f32.mrf.mxu0
      %v1932 = vadd.f32 0.0, %v1931
      %1933 = vmatmul.f32.gmra.mxu0 %v1675
      %v1934 = vpop.f32.mrf.mxu0
      %v1935 = vadd.f32 0.0, %v1934
      %1936 = vmatmul.f32.gmra.mxu0 %v1678
      %v1937 = vpop.f32.mrf.mxu0
      %v1938 = vadd.f32 0.0, %v1937
      %1939 = vmatmul.f32.gmra.mxu0 %v1681
      %v1940 = vpop.f32.mrf.mxu0
      %v1941 = vadd.f32 0.0, %v1940
      %1942 = vmatmul.f32.gmra.mxu0 %v1684
      %v1943 = vpop.f32.mrf.mxu0
      %v1944 = vadd.f32 0.0, %v1943
      %1945 = vmatmul.f32.gmra.mxu0 %v1687
      %v1946 = vpop.f32.mrf.mxu0
      %v1947 = vadd.f32 0.0, %v1946
      %1948 = vmatmul.f32.gmra.mxu0 %v1690
      %v1949 = vpop.f32.mrf.mxu0
      %v1950 = vadd.f32 0.0, %v1949
      %1951 = vmatmul.f32.gmra.mxu0 %v1693
      %v1952 = vpop.f32.mrf.mxu0
      %v1953 = vadd.f32 0.0, %v1952
      %1954 = vmatmul.f32.gmra.mxu0 %v1696
      %v1955 = vpop.f32.mrf.mxu0
      %v1956 = vadd.f32 0.0, %v1955
      %1957 = vmatmul.f32.gmra.mxu0 %v1699
      %v1958 = vpop.f32.mrf.mxu0
      %v1959 = vadd.f32 0.0, %v1958
      %1960 = vmatmul.f32.gmra.mxu0 %v1702
      %v1961 = vpop.f32.mrf.mxu0
      %v1962 = vadd.f32 0.0, %v1961
      %1963 = vmatmul.f32.gmra.mxu0 %v1705
      %v1964 = vpop.f32.mrf.mxu0
      %v1965 = vadd.f32 0.0, %v1964
      %1966 = vmatmul.f32.gmra.mxu0 %v1708
      %v1967 = vpop.f32.mrf.mxu0
      %v1968 = vadd.f32 0.0, %v1967
      %1969 = vmatmul.f32.gmra.mxu0 %v1711
      %v1970 = vpop.f32.mrf.mxu0
      %v1971 = vadd.f32 0.0, %v1970
      %1972 = vmatmul.f32.gmra.mxu0 %v1714
      %v1973 = vpop.f32.mrf.mxu0
      %v1974 = vadd.f32 0.0, %v1973
      %1975 = vmatmul.f32.gmra.mxu0 %v1717
      %v1976 = vpop.f32.mrf.mxu0
      %v1977 = vadd.f32 0.0, %v1976
      %1978 = vmatmul.f32.gmra.mxu0 %v1720
      %v1979 = vpop.f32.mrf.mxu0
      %v1980 = vadd.f32 0.0, %v1979
      %1981 = vmatmul.f32.gmra.mxu0 %v1723
      %v1982 = vpop.f32.mrf.mxu0
      %v1983 = vadd.f32 0.0, %v1982
      %1984 = vmatmul.f32.gmra.mxu0 %v1726
      %v1985 = vpop.f32.mrf.mxu0
      %v1986 = vadd.f32 0.0, %v1985
      %1987 = vmatmul.f32.gmra.mxu0 %v1729
      %v1988 = vpop.f32.mrf.mxu0
      %v1989 = vadd.f32 0.0, %v1988
      %1990 = vmatmul.f32.gmra.mxu0 %v1732
      %v1991 = vpop.f32.mrf.mxu0
      %v1992 = vadd.f32 0.0, %v1991
      %1993 = vmatmul.f32.gmra.mxu0 %v1735
      %v1994 = vpop.f32.mrf.mxu0
      %v1995 = vadd.f32 0.0, %v1994
      %1996 = vmatmul.f32.gmra.mxu0 %v1738
      %v1997 = vpop.f32.mrf.mxu0
      %v1998 = vadd.f32 0.0, %v1997
      %1999 = vmatmul.f32.gmra.mxu0 %v1741
      %v2000 = vpop.f32.mrf.mxu0
      %v2001 = vadd.f32 0.0, %v2000
      %2002 = vmatmul.f32.gmra.mxu0 %v1744
      %v2003 = vpop.f32.mrf.mxu0
      %v2004 = vadd.f32 0.0, %v2003
      %2005 = vdwg.mxu0
      %v2006 = vadd.f32 %v1179, %v1764
      %v2007 = vadd.f32 %v1182, %v1767
      %v2008 = vadd.f32 %v1185, %v1770
      %v2009 = vadd.f32 %v1188, %v1773
      %v2010 = vadd.f32 %v1191, %v1776
      %v2011 = vadd.f32 %v1194, %v1779
      %v2012 = vadd.f32 %v1197, %v1782
      %v2013 = vadd.f32 %v1200, %v1785
      %v2014 = vadd.f32 %v1203, %v1788
      %v2015 = vadd.f32 %v1206, %v1791
      %v2016 = vadd.f32 %v1209, %v1794
      %v2017 = vadd.f32 %v1212, %v1797
      %v2018 = vadd.f32 %v1215, %v1800
      %v2019 = vadd.f32 %v1218, %v1803
      %v2020 = vadd.f32 %v1221, %v1806
      %v2021 = vadd.f32 %v1224, %v1809
      %v2022 = vadd.f32 %v1227, %v1812
      %v2023 = vadd.f32 %v1230, %v1815
      %v2024 = vadd.f32 %v1233, %v1818
      %v2025 = vadd.f32 %v1236, %v1821
      %v2026 = vadd.f32 %v1239, %v1824
      %v2027 = vadd.f32 %v1242, %v1827
      %v2028 = vadd.f32 %v1245, %v1830
      %v2029 = vadd.f32 %v1248, %v1833
      %v2030 = vadd.f32 %v1251, %v1836
      %v2031 = vadd.f32 %v1254, %v1839
      %v2032 = vadd.f32 %v1257, %v1842
      %v2033 = vadd.f32 %v1260, %v1845
      %v2034 = vadd.f32 %v1263, %v1848
      %v2035 = vadd.f32 %v1266, %v1851
      %v2036 = vadd.f32 %v1269, %v1854
      %v2037 = vadd.f32 %v1272, %v1857
      %v2038 = vadd.f32 %v1275, %v1860
      %v2039 = vadd.f32 %v1278, %v1863
      %v2040 = vadd.f32 %v1281, %v1866
      %v2041 = vadd.f32 %v1284, %v1869
      %v2042 = vadd.f32 %v1287, %v1872
      %v2043 = vadd.f32 %v1290, %v1875
      %v2044 = vadd.f32 %v1293, %v1878
      %v2045 = vadd.f32 %v1296, %v1881
      %v2046 = vadd.f32 %v1299, %v1884
      %v2047 = vadd.f32 %v1302, %v1887
      %v2048 = vadd.f32 %v1305, %v1890
      %v2049 = vadd.f32 %v1308, %v1893
      %v2050 = vadd.f32 %v1311, %v1896
      %v2051 = vadd.f32 %v1314, %v1899
      %v2052 = vadd.f32 %v1317, %v1902
      %v2053 = vadd.f32 %v1320, %v1905
      %v2054 = vadd.f32 %v1323, %v1908
      %v2055 = vadd.f32 %v1326, %v1911
      %v2056 = vadd.f32 %v1329, %v1914
      %v2057 = vadd.f32 %v1332, %v1917
      %v2058 = vadd.f32 %v1335, %v1920
      %v2059 = vadd.f32 %v1338, %v1923
      %v2060 = vadd.f32 %v1341, %v1926
      %v2061 = vadd.f32 %v1344, %v1929
      %v2062 = vadd.f32 %v1347, %v1932
      %v2063 = vadd.f32 %v1350, %v1935
      %v2064 = vadd.f32 %v1353, %v1938
      %v2065 = vadd.f32 %v1356, %v1941
      %v2066 = vadd.f32 %v1359, %v1944
      %v2067 = vadd.f32 %v1362, %v1947
      %v2068 = vadd.f32 %v1365, %v1950
      %v2069 = vadd.f32 %v1368, %v1953
      %v2070 = vadd.f32 %v1371, %v1956
      %v2071 = vadd.f32 %v1374, %v1959
      %v2072 = vadd.f32 %v1377, %v1962
      %v2073 = vadd.f32 %v1380, %v1965
      %v2074 = vadd.f32 %v1383, %v1968
      %v2075 = vadd.f32 %v1386, %v1971
      %v2076 = vadd.f32 %v1389, %v1974
      %v2077 = vadd.f32 %v1392, %v1977
      %v2078 = vadd.f32 %v1395, %v1980
      %v2079 = vadd.f32 %v1398, %v1983
      %v2080 = vadd.f32 %v1401, %v1986
      %v2081 = vadd.f32 %v1404, %v1989
      %v2082 = vadd.f32 %v1407, %v1992
      %v2083 = vadd.f32 %v1410, %v1995
      %v2084 = vadd.f32 %v1413, %v1998
      %v2085 = vadd.f32 %v1416, %v2001
      %v2086 = vadd.f32 %v1419, %v2004
      %v2087 = vld [vmem:[%s245 + $0x12] sm:$0xff]
      %v2088 = vld [vmem:[%s245 + $0x1a] sm:$0xff]
      %v2089 = vld [vmem:[%s245 + $0x22] sm:$0xff]
      %v2090 = vld [vmem:[%s245 + $0x2a] sm:$0xff]
      %v2091 = vld [vmem:[%s245 + $0x32] sm:$0xff]
      %v2092 = vld [vmem:[%s245 + $0x3a] sm:$0xff]
      %v2093 = vld [vmem:[%s245 + $0x42] sm:$0xff]
      %v2094 = vld [vmem:[%s245 + $0x4a] sm:$0xff]
      %v2095 = vld [vmem:[%s245 + $0x52] sm:$0xff]
      %v2096 = vld [vmem:[%s245 + $0x5a] sm:$0xff]
      %v2097 = vld [vmem:[%s245 + $0x62] sm:$0xff]
      %v2098 = vld [vmem:[%s245 + $0x6a] sm:$0xff]
      %v2099 = vld [vmem:[%s245 + $0x72] sm:$0xff]
      %v2100 = vld [vmem:[%s245 + $0x7a] sm:$0xff]
      %v2101 = vld [vmem:[%s245 + $0x82] sm:$0xff]
      %v2102 = vld [vmem:[%s245 + $0x8a] sm:$0xff]
      %v2103 = vld [vmem:[%s245 + $0x92] sm:$0xff]
      %v2104 = vld [vmem:[%s245 + $0x9a] sm:$0xff]
      %v2105 = vld [vmem:[%s245 + $0xa2] sm:$0xff]
      %v2106 = vld [vmem:[%s245 + $0xaa] sm:$0xff]
      %v2107 = vld [vmem:[%s245 + $0xb2] sm:$0xff]
      %v2108 = vld [vmem:[%s245 + $0xba] sm:$0xff]
      %v2109 = vld [vmem:[%s245 + $0xc2] sm:$0xff]
      %v2110 = vld [vmem:[%s245 + $0xca] sm:$0xff]
      %v2111 = vld [vmem:[%s245 + $0xd2] sm:$0xff]
      %v2112 = vld [vmem:[%s245 + $0xda] sm:$0xff]
      %v2113 = vld [vmem:[%s245 + $0xe2] sm:$0xff]
      %v2114 = vld [vmem:[%s245 + $0xea] sm:$0xff]
      %v2115 = vld [vmem:[%s245 + $0xf2] sm:$0xff]
      %v2116 = vld [vmem:[%s245 + $0xfa] sm:$0xff]
      %v2117 = vld [vmem:[%s245 + $0x102] sm:$0xff]
      %v2118 = vld [vmem:[%s245 + $0x10a] sm:$0xff]
      %v2119 = vld [vmem:[%s245 + $0x112] sm:$0xff]
      %v2120 = vld [vmem:[%s245 + $0x11a] sm:$0xff]
      %v2121 = vld [vmem:[%s245 + $0x122] sm:$0xff]
      %v2122 = vld [vmem:[%s245 + $0x12a] sm:$0xff]
      %v2123 = vld [vmem:[%s245 + $0x132] sm:$0xff]
      %v2124 = vld [vmem:[%s245 + $0x13a] sm:$0xff]
      %v2125 = vld [vmem:[%s245 + $0x142] sm:$0xff]
      %v2126 = vld [vmem:[%s245 + $0x14a] sm:$0xff]
      %v2127 = vld [vmem:[%s245 + $0x152] sm:$0xff]
      %v2128 = vld [vmem:[%s245 + $0x15a] sm:$0xff]
      %v2129 = vld [vmem:[%s245 + $0x162] sm:$0xff]
      %v2130 = vld [vmem:[%s245 + $0x16a] sm:$0xff]
      %v2131 = vld [vmem:[%s245 + $0x172] sm:$0xff]
      %v2132 = vld [vmem:[%s245 + $0x17a] sm:$0xff]
      %v2133 = vld [vmem:[%s245 + $0x182] sm:$0xff]
      %v2134 = vld [vmem:[%s245 + $0x18a] sm:$0xff]
      %v2135 = vld [vmem:[%s245 + $0x192] sm:$0xff]
      %v2136 = vld [vmem:[%s245 + $0x19a] sm:$0xff]
      %v2137 = vld [vmem:[%s245 + $0x1a2] sm:$0xff]
      %v2138 = vld [vmem:[%s245 + $0x1aa] sm:$0xff]
      %v2139 = vld [vmem:[%s245 + $0x1b2] sm:$0xff]
      %v2140 = vld [vmem:[%s245 + $0x1ba] sm:$0xff]
      %v2141 = vld [vmem:[%s245 + $0x1c2] sm:$0xff]
      %v2142 = vld [vmem:[%s245 + $0x1ca] sm:$0xff]
      %v2143 = vld [vmem:[%s245 + $0x1d2] sm:$0xff]
      %v2144 = vld [vmem:[%s245 + $0x1da] sm:$0xff]
      %v2145 = vld [vmem:[%s245 + $0x1e2] sm:$0xff]
      %v2146 = vld [vmem:[%s245 + $0x1ea] sm:$0xff]
      %v2147 = vld [vmem:[%s245 + $0x1f2] sm:$0xff]
      %v2148 = vld [vmem:[%s245 + $0x1fa] sm:$0xff]
      %v2149 = vld [vmem:[%s245 + $0x202] sm:$0xff]
      %v2150 = vld [vmem:[%s245 + $0x20a] sm:$0xff]
      %v2151 = vld [vmem:[%s245 + $0x212] sm:$0xff]
      %v2152 = vld [vmem:[%s245 + $0x21a] sm:$0xff]
      %v2153 = vld [vmem:[%s245 + $0x222] sm:$0xff]
      %v2154 = vld [vmem:[%s245 + $0x22a] sm:$0xff]
      %v2155 = vld [vmem:[%s245 + $0x232] sm:$0xff]
      %v2156 = vld [vmem:[%s245 + $0x23a] sm:$0xff]
      %v2157 = vld [vmem:[%s245 + $0x242] sm:$0xff]
      %v2158 = vld [vmem:[%s245 + $0x24a] sm:$0xff]
      %v2159 = vld [vmem:[%s245 + $0x252] sm:$0xff]
      %v2160 = vld [vmem:[%s245 + $0x25a] sm:$0xff]
      %v2161 = vld [vmem:[%s245 + $0x262] sm:$0xff]
      %v2162 = vld [vmem:[%s245 + $0x26a] sm:$0xff]
      %v2163 = vld [vmem:[%s245 + $0x272] sm:$0xff]
      %v2164 = vld [vmem:[%s245 + $0x27a] sm:$0xff]
      %v2165 = vld [vmem:[%s245 + $0x282] sm:$0xff]
      %v2166 = vld [vmem:[%s245 + $0x28a] sm:$0xff]
      %v2167 = vld [vmem:[%s245 + $0x292] sm:$0xff]
      %v2168 = vld [vmem:[%s2 + $0x18] sm:$0xff]
      %v2170 = vsel %vm414, %v2087, 0
      %v2173 = vsel %vm414, %v2088, 0
      %v2176 = vsel %vm414, %v2089, 0
      %v2179 = vsel %vm414, %v2090, 0
      %v2182 = vsel %vm414, %v2091, 0
      %v2185 = vsel %vm414, %v2092, 0
      %v2188 = vsel %vm414, %v2093, 0
      %v2191 = vsel %vm414, %v2094, 0
      %v2194 = vsel %vm414, %v2095, 0
      %v2197 = vsel %vm414, %v2096, 0
      %v2200 = vsel %vm414, %v2097, 0
      %v2203 = vsel %vm414, %v2098, 0
      %v2206 = vsel %vm414, %v2099, 0
      %v2209 = vsel %vm414, %v2100, 0
      %v2212 = vsel %vm414, %v2101, 0
      %v2215 = vsel %vm414, %v2102, 0
      %v2218 = vsel %vm414, %v2103, 0
      %v2221 = vsel %vm414, %v2104, 0
      %v2224 = vsel %vm414, %v2105, 0
      %v2227 = vsel %vm414, %v2106, 0
      %v2230 = vsel %vm414, %v2107, 0
      %v2233 = vsel %vm414, %v2108, 0
      %v2236 = vsel %vm414, %v2109, 0
      %v2239 = vsel %vm414, %v2110, 0
      %v2242 = vsel %vm414, %v2111, 0
      %v2245 = vsel %vm414, %v2112, 0
      %v2248 = vsel %vm414, %v2113, 0
      %v2251 = vsel %vm414, %v2114, 0
      %v2254 = vsel %vm414, %v2115, 0
      %v2257 = vsel %vm414, %v2116, 0
      %v2260 = vsel %vm414, %v2117, 0
      %v2263 = vsel %vm414, %v2118, 0
      %v2266 = vsel %vm414, %v2119, 0
      %v2269 = vsel %vm414, %v2120, 0
      %v2272 = vsel %vm414, %v2121, 0
      %v2275 = vsel %vm414, %v2122, 0
      %v2278 = vsel %vm414, %v2123, 0
      %v2281 = vsel %vm414, %v2124, 0
      %v2284 = vsel %vm414, %v2125, 0
      %v2287 = vsel %vm414, %v2126, 0
      %v2290 = vsel %vm414, %v2127, 0
      %v2293 = vsel %vm414, %v2128, 0
      %v2296 = vsel %vm414, %v2129, 0
      %v2299 = vsel %vm414, %v2130, 0
      %v2302 = vsel %vm414, %v2131, 0
      %v2305 = vsel %vm414, %v2132, 0
      %v2308 = vsel %vm414, %v2133, 0
      %v2311 = vsel %vm414, %v2134, 0
      %v2314 = vsel %vm414, %v2135, 0
      %v2317 = vsel %vm414, %v2136, 0
      %v2320 = vsel %vm414, %v2137, 0
      %v2323 = vsel %vm414, %v2138, 0
      %v2326 = vsel %vm414, %v2139, 0
      %v2329 = vsel %vm414, %v2140, 0
      %v2332 = vsel %vm414, %v2141, 0
      %v2335 = vsel %vm414, %v2142, 0
      %v2338 = vsel %vm414, %v2143, 0
      %v2341 = vsel %vm414, %v2144, 0
      %v2344 = vsel %vm414, %v2145, 0
      %v2347 = vsel %vm414, %v2146, 0
      %v2350 = vsel %vm414, %v2147, 0
      %v2353 = vsel %vm414, %v2148, 0
      %v2356 = vsel %vm414, %v2149, 0
      %v2359 = vsel %vm414, %v2150, 0
      %v2362 = vsel %vm414, %v2151, 0
      %v2365 = vsel %vm414, %v2152, 0
      %v2368 = vsel %vm414, %v2153, 0
      %v2371 = vsel %vm414, %v2154, 0
      %v2374 = vsel %vm414, %v2155, 0
      %v2377 = vsel %vm414, %v2156, 0
      %v2380 = vsel %vm414, %v2157, 0
      %v2383 = vsel %vm414, %v2158, 0
      %v2386 = vsel %vm414, %v2159, 0
      %v2389 = vsel %vm414, %v2160, 0
      %v2392 = vsel %vm414, %v2161, 0
      %v2395 = vsel %vm414, %v2162, 0
      %v2398 = vsel %vm414, %v2163, 0
      %v2401 = vsel %vm414, %v2164, 0
      %v2404 = vsel %vm414, %v2165, 0
      %v2407 = vsel %vm414, %v2166, 0
      %v2410 = vsel %vm414, %v2167, 0
      %2412 = vmatpush.msra.mxu0 0.0
      %2413 = vmatpush.msra.mxu0 0.0
      %2414 = vmatpush.msra.mxu0 0.0
      %2415 = vmatpush.msra.mxu0 0.0
      %2416 = vmatpush.msra.mxu0 0.0
      %2417 = vmatpush.msra.mxu0 0.0
      %2418 = vmatpush.msra.mxu0 0.0
      %2419 = vmatpush.msra.mxu0 0.0
      %2420 = vmatpush.msra.mxu0 0.0
      %2421 = vmatpush.msra.mxu0 0.0
      %2422 = vmatpush.msra.mxu0 0.0
      %2423 = vmatpush.msra.mxu0 0.0
      %2424 = vmatpush.msra.mxu0 0.0
      %2425 = vmatpush.msra.mxu0 0.0
      %2426 = vmatpush.msra.mxu0 0.0
      %2427 = vmatpush.msra.mxu0 %v2168
      %2428 = vmatmul.f32.gmra.mxu0 %v2170
      %v2429 = vpop.f32.mrf.mxu0
      %v2430 = vadd.f32 0.0, %v2429
      %2431 = vmatmul.f32.gmra.mxu0 %v2173
      %v2432 = vpop.f32.mrf.mxu0
      %v2433 = vadd.f32 0.0, %v2432
      %2434 = vmatmul.f32.gmra.mxu0 %v2176
      %v2435 = vpop.f32.mrf.mxu0
      %v2436 = vadd.f32 0.0, %v2435
      %2437 = vmatmul.f32.gmra.mxu0 %v2179
      %v2438 = vpop.f32.mrf.mxu0
      %v2439 = vadd.f32 0.0, %v2438
      %2440 = vmatmul.f32.gmra.mxu0 %v2182
      %v2441 = vpop.f32.mrf.mxu0
      %v2442 = vadd.f32 0.0, %v2441
      %2443 = vmatmul.f32.gmra.mxu0 %v2185
      %v2444 = vpop.f32.mrf.mxu0
      %v2445 = vadd.f32 0.0, %v2444
      %2446 = vmatmul.f32.gmra.mxu0 %v2188
      %v2447 = vpop.f32.mrf.mxu0
      %v2448 = vadd.f32 0.0, %v2447
      %2449 = vmatmul.f32.gmra.mxu0 %v2191
      %v2450 = vpop.f32.mrf.mxu0
      %v2451 = vadd.f32 0.0, %v2450
      %2452 = vmatmul.f32.gmra.mxu0 %v2194
      %v2453 = vpop.f32.mrf.mxu0
      %v2454 = vadd.f32 0.0, %v2453
      %2455 = vmatmul.f32.gmra.mxu0 %v2197
      %v2456 = vpop.f32.mrf.mxu0
      %v2457 = vadd.f32 0.0, %v2456
      %2458 = vmatmul.f32.gmra.mxu0 %v2200
      %v2459 = vpop.f32.mrf.mxu0
      %v2460 = vadd.f32 0.0, %v2459
      %2461 = vmatmul.f32.gmra.mxu0 %v2203
      %v2462 = vpop.f32.mrf.mxu0
      %v2463 = vadd.f32 0.0, %v2462
      %2464 = vmatmul.f32.gmra.mxu0 %v2206
      %v2465 = vpop.f32.mrf.mxu0
      %v2466 = vadd.f32 0.0, %v2465
      %2467 = vmatmul.f32.gmra.mxu0 %v2209
      %v2468 = vpop.f32.mrf.mxu0
      %v2469 = vadd.f32 0.0, %v2468
      %2470 = vmatmul.f32.gmra.mxu0 %v2212
      %v2471 = vpop.f32.mrf.mxu0
      %v2472 = vadd.f32 0.0, %v2471
      %2473 = vmatmul.f32.gmra.mxu0 %v2215
      %v2474 = vpop.f32.mrf.mxu0
      %v2475 = vadd.f32 0.0, %v2474
      %2476 = vmatmul.f32.gmra.mxu0 %v2218
      %v2477 = vpop.f32.mrf.mxu0
      %v2478 = vadd.f32 0.0, %v2477
      %2479 = vmatmul.f32.gmra.mxu0 %v2221
      %v2480 = vpop.f32.mrf.mxu0
      %v2481 = vadd.f32 0.0, %v2480
      %2482 = vmatmul.f32.gmra.mxu0 %v2224
      %v2483 = vpop.f32.mrf.mxu0
      %v2484 = vadd.f32 0.0, %v2483
      %2485 = vmatmul.f32.gmra.mxu0 %v2227
      %v2486 = vpop.f32.mrf.mxu0
      %v2487 = vadd.f32 0.0, %v2486
      %2488 = vmatmul.f32.gmra.mxu0 %v2230
      %v2489 = vpop.f32.mrf.mxu0
      %v2490 = vadd.f32 0.0, %v2489
      %2491 = vmatmul.f32.gmra.mxu0 %v2233
      %v2492 = vpop.f32.mrf.mxu0
      %v2493 = vadd.f32 0.0, %v2492
      %2494 = vmatmul.f32.gmra.mxu0 %v2236
      %v2495 = vpop.f32.mrf.mxu0
      %v2496 = vadd.f32 0.0, %v2495
      %2497 = vmatmul.f32.gmra.mxu0 %v2239
      %v2498 = vpop.f32.mrf.mxu0
      %v2499 = vadd.f32 0.0, %v2498
      %2500 = vmatmul.f32.gmra.mxu0 %v2242
      %v2501 = vpop.f32.mrf.mxu0
      %v2502 = vadd.f32 0.0, %v2501
      %2503 = vmatmul.f32.gmra.mxu0 %v2245
      %v2504 = vpop.f32.mrf.mxu0
      %v2505 = vadd.f32 0.0, %v2504
      %2506 = vmatmul.f32.gmra.mxu0 %v2248
      %v2507 = vpop.f32.mrf.mxu0
      %v2508 = vadd.f32 0.0, %v2507
      %2509 = vmatmul.f32.gmra.mxu0 %v2251
      %v2510 = vpop.f32.mrf.mxu0
      %v2511 = vadd.f32 0.0, %v2510
      %2512 = vmatmul.f32.gmra.mxu0 %v2254
      %v2513 = vpop.f32.mrf.mxu0
      %v2514 = vadd.f32 0.0, %v2513
      %2515 = vmatmul.f32.gmra.mxu0 %v2257
      %v2516 = vpop.f32.mrf.mxu0
      %v2517 = vadd.f32 0.0, %v2516
      %2518 = vmatmul.f32.gmra.mxu0 %v2260
      %v2519 = vpop.f32.mrf.mxu0
      %v2520 = vadd.f32 0.0, %v2519
      %2521 = vmatmul.f32.gmra.mxu0 %v2263
      %v2522 = vpop.f32.mrf.mxu0
      %v2523 = vadd.f32 0.0, %v2522
      %2524 = vmatmul.f32.gmra.mxu0 %v2266
      %v2525 = vpop.f32.mrf.mxu0
      %v2526 = vadd.f32 0.0, %v2525
      %2527 = vmatmul.f32.gmra.mxu0 %v2269
      %v2528 = vpop.f32.mrf.mxu0
      %v2529 = vadd.f32 0.0, %v2528
      %2530 = vmatmul.f32.gmra.mxu0 %v2272
      %v2531 = vpop.f32.mrf.mxu0
      %v2532 = vadd.f32 0.0, %v2531
      %2533 = vmatmul.f32.gmra.mxu0 %v2275
      %v2534 = vpop.f32.mrf.mxu0
      %v2535 = vadd.f32 0.0, %v2534
      %2536 = vmatmul.f32.gmra.mxu0 %v2278
      %v2537 = vpop.f32.mrf.mxu0
      %v2538 = vadd.f32 0.0, %v2537
      %2539 = vmatmul.f32.gmra.mxu0 %v2281
      %v2540 = vpop.f32.mrf.mxu0
      %v2541 = vadd.f32 0.0, %v2540
      %2542 = vmatmul.f32.gmra.mxu0 %v2284
      %v2543 = vpop.f32.mrf.mxu0
      %v2544 = vadd.f32 0.0, %v2543
      %2545 = vmatmul.f32.gmra.mxu0 %v2287
      %v2546 = vpop.f32.mrf.mxu0
      %v2547 = vadd.f32 0.0, %v2546
      %2548 = vmatmul.f32.gmra.mxu0 %v2290
      %v2549 = vpop.f32.mrf.mxu0
      %v2550 = vadd.f32 0.0, %v2549
      %2551 = vmatmul.f32.gmra.mxu0 %v2293
      %v2552 = vpop.f32.mrf.mxu0
      %v2553 = vadd.f32 0.0, %v2552
      %2554 = vmatmul.f32.gmra.mxu0 %v2296
      %v2555 = vpop.f32.mrf.mxu0
      %v2556 = vadd.f32 0.0, %v2555
      %2557 = vmatmul.f32.gmra.mxu0 %v2299
      %v2558 = vpop.f32.mrf.mxu0
      %v2559 = vadd.f32 0.0, %v2558
      %2560 = vmatmul.f32.gmra.mxu0 %v2302
      %v2561 = vpop.f32.mrf.mxu0
      %v2562 = vadd.f32 0.0, %v2561
      %2563 = vmatmul.f32.gmra.mxu0 %v2305
      %v2564 = vpop.f32.mrf.mxu0
      %v2565 = vadd.f32 0.0, %v2564
      %2566 = vmatmul.f32.gmra.mxu0 %v2308
      %v2567 = vpop.f32.mrf.mxu0
      %v2568 = vadd.f32 0.0, %v2567
      %2569 = vmatmul.f32.gmra.mxu0 %v2311
      %v2570 = vpop.f32.mrf.mxu0
      %v2571 = vadd.f32 0.0, %v2570
      %2572 = vmatmul.f32.gmra.mxu0 %v2314
      %v2573 = vpop.f32.mrf.mxu0
      %v2574 = vadd.f32 0.0, %v2573
      %2575 = vmatmul.f32.gmra.mxu0 %v2317
      %v2576 = vpop.f32.mrf.mxu0
      %v2577 = vadd.f32 0.0, %v2576
      %2578 = vmatmul.f32.gmra.mxu0 %v2320
      %v2579 = vpop.f32.mrf.mxu0
      %v2580 = vadd.f32 0.0, %v2579
      %2581 = vmatmul.f32.gmra.mxu0 %v2323
      %v2582 = vpop.f32.mrf.mxu0
      %v2583 = vadd.f32 0.0, %v2582
      %2584 = vmatmul.f32.gmra.mxu0 %v2326
      %v2585 = vpop.f32.mrf.mxu0
      %v2586 = vadd.f32 0.0, %v2585
      %2587 = vmatmul.f32.gmra.mxu0 %v2329
      %v2588 = vpop.f32.mrf.mxu0
      %v2589 = vadd.f32 0.0, %v2588
      %2590 = vmatmul.f32.gmra.mxu0 %v2332
      %v2591 = vpop.f32.mrf.mxu0
      %v2592 = vadd.f32 0.0, %v2591
      %2593 = vmatmul.f32.gmra.mxu0 %v2335
      %v2594 = vpop.f32.mrf.mxu0
      %v2595 = vadd.f32 0.0, %v2594
      %2596 = vmatmul.f32.gmra.mxu0 %v2338
      %v2597 = vpop.f32.mrf.mxu0
      %v2598 = vadd.f32 0.0, %v2597
      %2599 = vmatmul.f32.gmra.mxu0 %v2341
      %v2600 = vpop.f32.mrf.mxu0
      %v2601 = vadd.f32 0.0, %v2600
      %2602 = vmatmul.f32.gmra.mxu0 %v2344
      %v2603 = vpop.f32.mrf.mxu0
      %v2604 = vadd.f32 0.0, %v2603
      %2605 = vmatmul.f32.gmra.mxu0 %v2347
      %v2606 = vpop.f32.mrf.mxu0
      %v2607 = vadd.f32 0.0, %v2606
      %2608 = vmatmul.f32.gmra.mxu0 %v2350
      %v2609 = vpop.f32.mrf.mxu0
      %v2610 = vadd.f32 0.0, %v2609
      %2611 = vmatmul.f32.gmra.mxu0 %v2353
      %v2612 = vpop.f32.mrf.mxu0
      %v2613 = vadd.f32 0.0, %v2612
      %2614 = vmatmul.f32.gmra.mxu0 %v2356
      %v2615 = vpop.f32.mrf.mxu0
      %v2616 = vadd.f32 0.0, %v2615
      %2617 = vmatmul.f32.gmra.mxu0 %v2359
      %v2618 = vpop.f32.mrf.mxu0
      %v2619 = vadd.f32 0.0, %v2618
      %2620 = vmatmul.f32.gmra.mxu0 %v2362
      %v2621 = vpop.f32.mrf.mxu0
      %v2622 = vadd.f32 0.0, %v2621
      %2623 = vmatmul.f32.gmra.mxu0 %v2365
      %v2624 = vpop.f32.mrf.mxu0
      %v2625 = vadd.f32 0.0, %v2624
      %2626 = vmatmul.f32.gmra.mxu0 %v2368
      %v2627 = vpop.f32.mrf.mxu0
      %v2628 = vadd.f32 0.0, %v2627
      %2629 = vmatmul.f32.gmra.mxu0 %v2371
      %v2630 = vpop.f32.mrf.mxu0
      %v2631 = vadd.f32 0.0, %v2630
      %2632 = vmatmul.f32.gmra.mxu0 %v2374
      %v2633 = vpop.f32.mrf.mxu0
      %v2634 = vadd.f32 0.0, %v2633
      %2635 = vmatmul.f32.gmra.mxu0 %v2377
      %v2636 = vpop.f32.mrf.mxu0
      %v2637 = vadd.f32 0.0, %v2636
      %2638 = vmatmul.f32.gmra.mxu0 %v2380
      %v2639 = vpop.f32.mrf.mxu0
      %v2640 = vadd.f32 0.0, %v2639
      %2641 = vmatmul.f32.gmra.mxu0 %v2383
      %v2642 = vpop.f32.mrf.mxu0
      %v2643 = vadd.f32 0.0, %v2642
      %2644 = vmatmul.f32.gmra.mxu0 %v2386
      %v2645 = vpop.f32.mrf.mxu0
      %v2646 = vadd.f32 0.0, %v2645
      %2647 = vmatmul.f32.gmra.mxu0 %v2389
      %v2648 = vpop.f32.mrf.mxu0
      %v2649 = vadd.f32 0.0, %v2648
      %2650 = vmatmul.f32.gmra.mxu0 %v2392
      %v2651 = vpop.f32.mrf.mxu0
      %v2652 = vadd.f32 0.0, %v2651
      %2653 = vmatmul.f32.gmra.mxu0 %v2395
      %v2654 = vpop.f32.mrf.mxu0
      %v2655 = vadd.f32 0.0, %v2654
      %2656 = vmatmul.f32.gmra.mxu0 %v2398
      %v2657 = vpop.f32.mrf.mxu0
      %v2658 = vadd.f32 0.0, %v2657
      %2659 = vmatmul.f32.gmra.mxu0 %v2401
      %v2660 = vpop.f32.mrf.mxu0
      %v2661 = vadd.f32 0.0, %v2660
      %2662 = vmatmul.f32.gmra.mxu0 %v2404
      %v2663 = vpop.f32.mrf.mxu0
      %v2664 = vadd.f32 0.0, %v2663
      %2665 = vmatmul.f32.gmra.mxu0 %v2407
      %v2666 = vpop.f32.mrf.mxu0
      %v2667 = vadd.f32 0.0, %v2666
      %2668 = vmatmul.f32.gmra.mxu0 %v2410
      %v2669 = vpop.f32.mrf.mxu0
      %v2670 = vadd.f32 0.0, %v2669
      %2671 = vdwg.mxu0
      %v2672 = vadd.f32 %v2006, %v2430
      %v2673 = vadd.f32 %v2007, %v2433
      %v2674 = vadd.f32 %v2008, %v2436
      %v2675 = vadd.f32 %v2009, %v2439
      %v2676 = vadd.f32 %v2010, %v2442
      %v2677 = vadd.f32 %v2011, %v2445
      %v2678 = vadd.f32 %v2012, %v2448
      %v2679 = vadd.f32 %v2013, %v2451
      %v2680 = vadd.f32 %v2014, %v2454
      %v2681 = vadd.f32 %v2015, %v2457
      %v2682 = vadd.f32 %v2016, %v2460
      %v2683 = vadd.f32 %v2017, %v2463
      %v2684 = vadd.f32 %v2018, %v2466
      %v2685 = vadd.f32 %v2019, %v2469
      %v2686 = vadd.f32 %v2020, %v2472
      %v2687 = vadd.f32 %v2021, %v2475
      %v2688 = vadd.f32 %v2022, %v2478
      %v2689 = vadd.f32 %v2023, %v2481
      %v2690 = vadd.f32 %v2024, %v2484
      %v2691 = vadd.f32 %v2025, %v2487
      %v2692 = vadd.f32 %v2026, %v2490
      %v2693 = vadd.f32 %v2027, %v2493
      %v2694 = vadd.f32 %v2028, %v2496
      %v2695 = vadd.f32 %v2029, %v2499
      %v2696 = vadd.f32 %v2030, %v2502
      %v2697 = vadd.f32 %v2031, %v2505
      %v2698 = vadd.f32 %v2032, %v2508
      %v2699 = vadd.f32 %v2033, %v2511
      %v2700 = vadd.f32 %v2034, %v2514
      %v2701 = vadd.f32 %v2035, %v2517
      %v2702 = vadd.f32 %v2036, %v2520
      %v2703 = vadd.f32 %v2037, %v2523
      %v2704 = vadd.f32 %v2038, %v2526
      %v2705 = vadd.f32 %v2039, %v2529
      %v2706 = vadd.f32 %v2040, %v2532
      %v2707 = vadd.f32 %v2041, %v2535
      %v2708 = vadd.f32 %v2042, %v2538
      %v2709 = vadd.f32 %v2043, %v2541
      %v2710 = vadd.f32 %v2044, %v2544
      %v2711 = vadd.f32 %v2045, %v2547
      %v2712 = vadd.f32 %v2046, %v2550
      %v2713 = vadd.f32 %v2047, %v2553
      %v2714 = vadd.f32 %v2048, %v2556
      %v2715 = vadd.f32 %v2049, %v2559
      %v2716 = vadd.f32 %v2050, %v2562
      %v2717 = vadd.f32 %v2051, %v2565
      %v2718 = vadd.f32 %v2052, %v2568
      %v2719 = vadd.f32 %v2053, %v2571
      %v2720 = vadd.f32 %v2054, %v2574
      %v2721 = vadd.f32 %v2055, %v2577
      %v2722 = vadd.f32 %v2056, %v2580
      %v2723 = vadd.f32 %v2057, %v2583
      %v2724 = vadd.f32 %v2058, %v2586
      %v2725 = vadd.f32 %v2059, %v2589
      %v2726 = vadd.f32 %v2060, %v2592
      %v2727 = vadd.f32 %v2061, %v2595
      %v2728 = vadd.f32 %v2062, %v2598
      %v2729 = vadd.f32 %v2063, %v2601
      %v2730 = vadd.f32 %v2064, %v2604
      %v2731 = vadd.f32 %v2065, %v2607
      %v2732 = vadd.f32 %v2066, %v2610
      %v2733 = vadd.f32 %v2067, %v2613
      %v2734 = vadd.f32 %v2068, %v2616
      %v2735 = vadd.f32 %v2069, %v2619
      %v2736 = vadd.f32 %v2070, %v2622
      %v2737 = vadd.f32 %v2071, %v2625
      %v2738 = vadd.f32 %v2072, %v2628
      %v2739 = vadd.f32 %v2073, %v2631
      %v2740 = vadd.f32 %v2074, %v2634
      %v2741 = vadd.f32 %v2075, %v2637
      %v2742 = vadd.f32 %v2076, %v2640
      %v2743 = vadd.f32 %v2077, %v2643
      %v2744 = vadd.f32 %v2078, %v2646
      %v2745 = vadd.f32 %v2079, %v2649
      %v2746 = vadd.f32 %v2080, %v2652
      %v2747 = vadd.f32 %v2081, %v2655
      %v2748 = vadd.f32 %v2082, %v2658
      %v2749 = vadd.f32 %v2083, %v2661
      %v2750 = vadd.f32 %v2084, %v2664
      %v2751 = vadd.f32 %v2085, %v2667
      %v2752 = vadd.f32 %v2086, %v2670
      %v2753 = vld [vmem:[%s245 + $0x13] sm:$0xff]
      %v2754 = vld [vmem:[%s245 + $0x1b] sm:$0xff]
      %v2755 = vld [vmem:[%s245 + $0x23] sm:$0xff]
      %v2756 = vld [vmem:[%s245 + $0x2b] sm:$0xff]
      %v2757 = vld [vmem:[%s245 + $0x33] sm:$0xff]
      %v2758 = vld [vmem:[%s245 + $0x3b] sm:$0xff]
      %v2759 = vld [vmem:[%s245 + $0x43] sm:$0xff]
      %v2760 = vld [vmem:[%s245 + $0x4b] sm:$0xff]
      %v2761 = vld [vmem:[%s245 + $0x53] sm:$0xff]
      %v2762 = vld [vmem:[%s245 + $0x5b] sm:$0xff]
      %v2763 = vld [vmem:[%s245 + $0x63] sm:$0xff]
      %v2764 = vld [vmem:[%s245 + $0x6b] sm:$0xff]
      %v2765 = vld [vmem:[%s245 + $0x73] sm:$0xff]
      %v2766 = vld [vmem:[%s245 + $0x7b] sm:$0xff]
      %v2767 = vld [vmem:[%s245 + $0x83] sm:$0xff]
      %v2768 = vld [vmem:[%s245 + $0x8b] sm:$0xff]
      %v2769 = vld [vmem:[%s245 + $0x93] sm:$0xff]
      %v2770 = vld [vmem:[%s245 + $0x9b] sm:$0xff]
      %v2771 = vld [vmem:[%s245 + $0xa3] sm:$0xff]
      %v2772 = vld [vmem:[%s245 + $0xab] sm:$0xff]
      %v2773 = vld [vmem:[%s245 + $0xb3] sm:$0xff]
      %v2774 = vld [vmem:[%s245 + $0xbb] sm:$0xff]
      %v2775 = vld [vmem:[%s245 + $0xc3] sm:$0xff]
      %v2776 = vld [vmem:[%s245 + $0xcb] sm:$0xff]
      %v2777 = vld [vmem:[%s245 + $0xd3] sm:$0xff]
      %v2778 = vld [vmem:[%s245 + $0xdb] sm:$0xff]
      %v2779 = vld [vmem:[%s245 + $0xe3] sm:$0xff]
      %v2780 = vld [vmem:[%s245 + $0xeb] sm:$0xff]
      %v2781 = vld [vmem:[%s245 + $0xf3] sm:$0xff]
      %v2782 = vld [vmem:[%s245 + $0xfb] sm:$0xff]
      %v2783 = vld [vmem:[%s245 + $0x103] sm:$0xff]
      %v2784 = vld [vmem:[%s245 + $0x10b] sm:$0xff]
      %v2785 = vld [vmem:[%s245 + $0x113] sm:$0xff]
      %v2786 = vld [vmem:[%s245 + $0x11b] sm:$0xff]
      %v2787 = vld [vmem:[%s245 + $0x123] sm:$0xff]
      %v2788 = vld [vmem:[%s245 + $0x12b] sm:$0xff]
      %v2789 = vld [vmem:[%s245 + $0x133] sm:$0xff]
      %v2790 = vld [vmem:[%s245 + $0x13b] sm:$0xff]
      %v2791 = vld [vmem:[%s245 + $0x143] sm:$0xff]
      %v2792 = vld [vmem:[%s245 + $0x14b] sm:$0xff]
      %v2793 = vld [vmem:[%s245 + $0x153] sm:$0xff]
      %v2794 = vld [vmem:[%s245 + $0x15b] sm:$0xff]
      %v2795 = vld [vmem:[%s245 + $0x163] sm:$0xff]
      %v2796 = vld [vmem:[%s245 + $0x16b] sm:$0xff]
      %v2797 = vld [vmem:[%s245 + $0x173] sm:$0xff]
      %v2798 = vld [vmem:[%s245 + $0x17b] sm:$0xff]
      %v2799 = vld [vmem:[%s245 + $0x183] sm:$0xff]
      %v2800 = vld [vmem:[%s245 + $0x18b] sm:$0xff]
      %v2801 = vld [vmem:[%s245 + $0x193] sm:$0xff]
      %v2802 = vld [vmem:[%s245 + $0x19b] sm:$0xff]
      %v2803 = vld [vmem:[%s245 + $0x1a3] sm:$0xff]
      %v2804 = vld [vmem:[%s245 + $0x1ab] sm:$0xff]
      %v2805 = vld [vmem:[%s245 + $0x1b3] sm:$0xff]
      %v2806 = vld [vmem:[%s245 + $0x1bb] sm:$0xff]
      %v2807 = vld [vmem:[%s245 + $0x1c3] sm:$0xff]
      %v2808 = vld [vmem:[%s245 + $0x1cb] sm:$0xff]
      %v2809 = vld [vmem:[%s245 + $0x1d3] sm:$0xff]
      %v2810 = vld [vmem:[%s245 + $0x1db] sm:$0xff]
      %v2811 = vld [vmem:[%s245 + $0x1e3] sm:$0xff]
      %v2812 = vld [vmem:[%s245 + $0x1eb] sm:$0xff]
      %v2813 = vld [vmem:[%s245 + $0x1f3] sm:$0xff]
      %v2814 = vld [vmem:[%s245 + $0x1fb] sm:$0xff]
      %v2815 = vld [vmem:[%s245 + $0x203] sm:$0xff]
      %v2816 = vld [vmem:[%s245 + $0x20b] sm:$0xff]
      %v2817 = vld [vmem:[%s245 + $0x213] sm:$0xff]
      %v2818 = vld [vmem:[%s245 + $0x21b] sm:$0xff]
      %v2819 = vld [vmem:[%s245 + $0x223] sm:$0xff]
      %v2820 = vld [vmem:[%s245 + $0x22b] sm:$0xff]
      %v2821 = vld [vmem:[%s245 + $0x233] sm:$0xff]
      %v2822 = vld [vmem:[%s245 + $0x23b] sm:$0xff]
      %v2823 = vld [vmem:[%s245 + $0x243] sm:$0xff]
      %v2824 = vld [vmem:[%s245 + $0x24b] sm:$0xff]
      %v2825 = vld [vmem:[%s245 + $0x253] sm:$0xff]
      %v2826 = vld [vmem:[%s245 + $0x25b] sm:$0xff]
      %v2827 = vld [vmem:[%s245 + $0x263] sm:$0xff]
      %v2828 = vld [vmem:[%s245 + $0x26b] sm:$0xff]
      %v2829 = vld [vmem:[%s245 + $0x273] sm:$0xff]
      %v2830 = vld [vmem:[%s245 + $0x27b] sm:$0xff]
      %v2831 = vld [vmem:[%s245 + $0x283] sm:$0xff]
      %v2832 = vld [vmem:[%s245 + $0x28b] sm:$0xff]
      %v2833 = vld [vmem:[%s245 + $0x293] sm:$0xff]
      %v2834 = vld [vmem:[%s2 + $0x20] sm:$0xff]
      %v2836 = vsel %vm414, %v2753, 0
      %v2839 = vsel %vm414, %v2754, 0
      %v2842 = vsel %vm414, %v2755, 0
      %v2845 = vsel %vm414, %v2756, 0
      %v2848 = vsel %vm414, %v2757, 0
      %v2851 = vsel %vm414, %v2758, 0
      %v2854 = vsel %vm414, %v2759, 0
      %v2857 = vsel %vm414, %v2760, 0
      %v2860 = vsel %vm414, %v2761, 0
      %v2863 = vsel %vm414, %v2762, 0
      %v2866 = vsel %vm414, %v2763, 0
      %v2869 = vsel %vm414, %v2764, 0
      %v2872 = vsel %vm414, %v2765, 0
      %v2875 = vsel %vm414, %v2766, 0
      %v2878 = vsel %vm414, %v2767, 0
      %v2881 = vsel %vm414, %v2768, 0
      %v2884 = vsel %vm414, %v2769, 0
      %v2887 = vsel %vm414, %v2770, 0
      %v2890 = vsel %vm414, %v2771, 0
      %v2893 = vsel %vm414, %v2772, 0
      %v2896 = vsel %vm414, %v2773, 0
      %v2899 = vsel %vm414, %v2774, 0
      %v2902 = vsel %vm414, %v2775, 0
      %v2905 = vsel %vm414, %v2776, 0
      %v2908 = vsel %vm414, %v2777, 0
      %v2911 = vsel %vm414, %v2778, 0
      %v2914 = vsel %vm414, %v2779, 0
      %v2917 = vsel %vm414, %v2780, 0
      %v2920 = vsel %vm414, %v2781, 0
      %v2923 = vsel %vm414, %v2782, 0
      %v2926 = vsel %vm414, %v2783, 0
      %v2929 = vsel %vm414, %v2784, 0
      %v2932 = vsel %vm414, %v2785, 0
      %v2935 = vsel %vm414, %v2786, 0
      %v2938 = vsel %vm414, %v2787, 0
      %v2941 = vsel %vm414, %v2788, 0
      %v2944 = vsel %vm414, %v2789, 0
      %v2947 = vsel %vm414, %v2790, 0
      %v2950 = vsel %vm414, %v2791, 0
      %v2953 = vsel %vm414, %v2792, 0
      %v2956 = vsel %vm414, %v2793, 0
      %v2959 = vsel %vm414, %v2794, 0
      %v2962 = vsel %vm414, %v2795, 0
      %v2965 = vsel %vm414, %v2796, 0
      %v2968 = vsel %vm414, %v2797, 0
      %v2971 = vsel %vm414, %v2798, 0
      %v2974 = vsel %vm414, %v2799, 0
      %v2977 = vsel %vm414, %v2800, 0
      %v2980 = vsel %vm414, %v2801, 0
      %v2983 = vsel %vm414, %v2802, 0
      %v2986 = vsel %vm414, %v2803, 0
      %v2989 = vsel %vm414, %v2804, 0
      %v2992 = vsel %vm414, %v2805, 0
      %v2995 = vsel %vm414, %v2806, 0
      %v2998 = vsel %vm414, %v2807, 0
      %v3001 = vsel %vm414, %v2808, 0
      %v3004 = vsel %vm414, %v2809, 0
      %v3007 = vsel %vm414, %v2810, 0
      %v3010 = vsel %vm414, %v2811, 0
      %v3013 = vsel %vm414, %v2812, 0
      %v3016 = vsel %vm414, %v2813, 0
      %v3019 = vsel %vm414, %v2814, 0
      %v3022 = vsel %vm414, %v2815, 0
      %v3025 = vsel %vm414, %v2816, 0
      %v3028 = vsel %vm414, %v2817, 0
      %v3031 = vsel %vm414, %v2818, 0
      %v3034 = vsel %vm414, %v2819, 0
      %v3037 = vsel %vm414, %v2820, 0
      %v3040 = vsel %vm414, %v2821, 0
      %v3043 = vsel %vm414, %v2822, 0
      %v3046 = vsel %vm414, %v2823, 0
      %v3049 = vsel %vm414, %v2824, 0
      %v3052 = vsel %vm414, %v2825, 0
      %v3055 = vsel %vm414, %v2826, 0
      %v3058 = vsel %vm414, %v2827, 0
      %v3061 = vsel %vm414, %v2828, 0
      %v3064 = vsel %vm414, %v2829, 0
      %v3067 = vsel %vm414, %v2830, 0
      %v3070 = vsel %vm414, %v2831, 0
      %v3073 = vsel %vm414, %v2832, 0
      %v3076 = vsel %vm414, %v2833, 0
      %3078 = vmatpush.msra.mxu0 0.0
      %3079 = vmatpush.msra.mxu0 0.0
      %3080 = vmatpush.msra.mxu0 0.0
      %3081 = vmatpush.msra.mxu0 0.0
      %3082 = vmatpush.msra.mxu0 0.0
      %3083 = vmatpush.msra.mxu0 0.0
      %3084 = vmatpush.msra.mxu0 0.0
      %3085 = vmatpush.msra.mxu0 0.0
      %3086 = vmatpush.msra.mxu0 0.0
      %3087 = vmatpush.msra.mxu0 0.0
      %3088 = vmatpush.msra.mxu0 0.0
      %3089 = vmatpush.msra.mxu0 0.0
      %3090 = vmatpush.msra.mxu0 0.0
      %3091 = vmatpush.msra.mxu0 0.0
      %3092 = vmatpush.msra.mxu0 0.0
      %3093 = vmatpush.msra.mxu0 %v2834
      %3094 = vmatmul.f32.gmra.mxu0 %v2836
      %v3095 = vpop.f32.mrf.mxu0
      %v3096 = vadd.f32 0.0, %v3095
      %3097 = vmatmul.f32.gmra.mxu0 %v2839
      %v3098 = vpop.f32.mrf.mxu0
      %v3099 = vadd.f32 0.0, %v3098
      %3100 = vmatmul.f32.gmra.mxu0 %v2842
      %v3101 = vpop.f32.mrf.mxu0
      %v3102 = vadd.f32 0.0, %v3101
      %3103 = vmatmul.f32.gmra.mxu0 %v2845
      %v3104 = vpop.f32.mrf.mxu0
      %v3105 = vadd.f32 0.0, %v3104
      %3106 = vmatmul.f32.gmra.mxu0 %v2848
      %v3107 = vpop.f32.mrf.mxu0
      %v3108 = vadd.f32 0.0, %v3107
      %3109 = vmatmul.f32.gmra.mxu0 %v2851
      %v3110 = vpop.f32.mrf.mxu0
      %v3111 = vadd.f32 0.0, %v3110
      %3112 = vmatmul.f32.gmra.mxu0 %v2854
      %v3113 = vpop.f32.mrf.mxu0
      %v3114 = vadd.f32 0.0, %v3113
      %3115 = vmatmul.f32.gmra.mxu0 %v2857
      %v3116 = vpop.f32.mrf.mxu0
      %v3117 = vadd.f32 0.0, %v3116
      %3118 = vmatmul.f32.gmra.mxu0 %v2860
      %v3119 = vpop.f32.mrf.mxu0
      %v3120 = vadd.f32 0.0, %v3119
      %3121 = vmatmul.f32.gmra.mxu0 %v2863
      %v3122 = vpop.f32.mrf.mxu0
      %v3123 = vadd.f32 0.0, %v3122
      %3124 = vmatmul.f32.gmra.mxu0 %v2866
      %v3125 = vpop.f32.mrf.mxu0
      %v3126 = vadd.f32 0.0, %v3125
      %3127 = vmatmul.f32.gmra.mxu0 %v2869
      %v3128 = vpop.f32.mrf.mxu0
      %v3129 = vadd.f32 0.0, %v3128
      %3130 = vmatmul.f32.gmra.mxu0 %v2872
      %v3131 = vpop.f32.mrf.mxu0
      %v3132 = vadd.f32 0.0, %v3131
      %3133 = vmatmul.f32.gmra.mxu0 %v2875
      %v3134 = vpop.f32.mrf.mxu0
      %v3135 = vadd.f32 0.0, %v3134
      %3136 = vmatmul.f32.gmra.mxu0 %v2878
      %v3137 = vpop.f32.mrf.mxu0
      %v3138 = vadd.f32 0.0, %v3137
      %3139 = vmatmul.f32.gmra.mxu0 %v2881
      %v3140 = vpop.f32.mrf.mxu0
      %v3141 = vadd.f32 0.0, %v3140
      %3142 = vmatmul.f32.gmra.mxu0 %v2884
      %v3143 = vpop.f32.mrf.mxu0
      %v3144 = vadd.f32 0.0, %v3143
      %3145 = vmatmul.f32.gmra.mxu0 %v2887
      %v3146 = vpop.f32.mrf.mxu0
      %v3147 = vadd.f32 0.0, %v3146
      %3148 = vmatmul.f32.gmra.mxu0 %v2890
      %v3149 = vpop.f32.mrf.mxu0
      %v3150 = vadd.f32 0.0, %v3149
      %3151 = vmatmul.f32.gmra.mxu0 %v2893
      %v3152 = vpop.f32.mrf.mxu0
      %v3153 = vadd.f32 0.0, %v3152
      %3154 = vmatmul.f32.gmra.mxu0 %v2896
      %v3155 = vpop.f32.mrf.mxu0
      %v3156 = vadd.f32 0.0, %v3155
      %3157 = vmatmul.f32.gmra.mxu0 %v2899
      %v3158 = vpop.f32.mrf.mxu0
      %v3159 = vadd.f32 0.0, %v3158
      %3160 = vmatmul.f32.gmra.mxu0 %v2902
      %v3161 = vpop.f32.mrf.mxu0
      %v3162 = vadd.f32 0.0, %v3161
      %3163 = vmatmul.f32.gmra.mxu0 %v2905
      %v3164 = vpop.f32.mrf.mxu0
      %v3165 = vadd.f32 0.0, %v3164
      %3166 = vmatmul.f32.gmra.mxu0 %v2908
      %v3167 = vpop.f32.mrf.mxu0
      %v3168 = vadd.f32 0.0, %v3167
      %3169 = vmatmul.f32.gmra.mxu0 %v2911
      %v3170 = vpop.f32.mrf.mxu0
      %v3171 = vadd.f32 0.0, %v3170
      %3172 = vmatmul.f32.gmra.mxu0 %v2914
      %v3173 = vpop.f32.mrf.mxu0
      %v3174 = vadd.f32 0.0, %v3173
      %3175 = vmatmul.f32.gmra.mxu0 %v2917
      %v3176 = vpop.f32.mrf.mxu0
      %v3177 = vadd.f32 0.0, %v3176
      %3178 = vmatmul.f32.gmra.mxu0 %v2920
      %v3179 = vpop.f32.mrf.mxu0
      %v3180 = vadd.f32 0.0, %v3179
      %3181 = vmatmul.f32.gmra.mxu0 %v2923
      %v3182 = vpop.f32.mrf.mxu0
      %v3183 = vadd.f32 0.0, %v3182
      %3184 = vmatmul.f32.gmra.mxu0 %v2926
      %v3185 = vpop.f32.mrf.mxu0
      %v3186 = vadd.f32 0.0, %v3185
      %3187 = vmatmul.f32.gmra.mxu0 %v2929
      %v3188 = vpop.f32.mrf.mxu0
      %v3189 = vadd.f32 0.0, %v3188
      %3190 = vmatmul.f32.gmra.mxu0 %v2932
      %v3191 = vpop.f32.mrf.mxu0
      %v3192 = vadd.f32 0.0, %v3191
      %3193 = vmatmul.f32.gmra.mxu0 %v2935
      %v3194 = vpop.f32.mrf.mxu0
      %v3195 = vadd.f32 0.0, %v3194
      %3196 = vmatmul.f32.gmra.mxu0 %v2938
      %v3197 = vpop.f32.mrf.mxu0
      %v3198 = vadd.f32 0.0, %v3197
      %3199 = vmatmul.f32.gmra.mxu0 %v2941
      %v3200 = vpop.f32.mrf.mxu0
      %v3201 = vadd.f32 0.0, %v3200
      %3202 = vmatmul.f32.gmra.mxu0 %v2944
      %v3203 = vpop.f32.mrf.mxu0
      %v3204 = vadd.f32 0.0, %v3203
      %3205 = vmatmul.f32.gmra.mxu0 %v2947
      %v3206 = vpop.f32.mrf.mxu0
      %v3207 = vadd.f32 0.0, %v3206
      %3208 = vmatmul.f32.gmra.mxu0 %v2950
      %v3209 = vpop.f32.mrf.mxu0
      %v3210 = vadd.f32 0.0, %v3209
      %3211 = vmatmul.f32.gmra.mxu0 %v2953
      %v3212 = vpop.f32.mrf.mxu0
      %v3213 = vadd.f32 0.0, %v3212
      %3214 = vmatmul.f32.gmra.mxu0 %v2956
      %v3215 = vpop.f32.mrf.mxu0
      %v3216 = vadd.f32 0.0, %v3215
      %3217 = vmatmul.f32.gmra.mxu0 %v2959
      %v3218 = vpop.f32.mrf.mxu0
      %v3219 = vadd.f32 0.0, %v3218
      %3220 = vmatmul.f32.gmra.mxu0 %v2962
      %v3221 = vpop.f32.mrf.mxu0
      %v3222 = vadd.f32 0.0, %v3221
      %3223 = vmatmul.f32.gmra.mxu0 %v2965
      %v3224 = vpop.f32.mrf.mxu0
      %v3225 = vadd.f32 0.0, %v3224
      %3226 = vmatmul.f32.gmra.mxu0 %v2968
      %v3227 = vpop.f32.mrf.mxu0
      %v3228 = vadd.f32 0.0, %v3227
      %3229 = vmatmul.f32.gmra.mxu0 %v2971
      %v3230 = vpop.f32.mrf.mxu0
      %v3231 = vadd.f32 0.0, %v3230
      %3232 = vmatmul.f32.gmra.mxu0 %v2974
      %v3233 = vpop.f32.mrf.mxu0
      %v3234 = vadd.f32 0.0, %v3233
      %3235 = vmatmul.f32.gmra.mxu0 %v2977
      %v3236 = vpop.f32.mrf.mxu0
      %v3237 = vadd.f32 0.0, %v3236
      %3238 = vmatmul.f32.gmra.mxu0 %v2980
      %v3239 = vpop.f32.mrf.mxu0
      %v3240 = vadd.f32 0.0, %v3239
      %3241 = vmatmul.f32.gmra.mxu0 %v2983
      %v3242 = vpop.f32.mrf.mxu0
      %v3243 = vadd.f32 0.0, %v3242
      %3244 = vmatmul.f32.gmra.mxu0 %v2986
      %v3245 = vpop.f32.mrf.mxu0
      %v3246 = vadd.f32 0.0, %v3245
      %3247 = vmatmul.f32.gmra.mxu0 %v2989
      %v3248 = vpop.f32.mrf.mxu0
      %v3249 = vadd.f32 0.0, %v3248
      %3250 = vmatmul.f32.gmra.mxu0 %v2992
      %v3251 = vpop.f32.mrf.mxu0
      %v3252 = vadd.f32 0.0, %v3251
      %3253 = vmatmul.f32.gmra.mxu0 %v2995
      %v3254 = vpop.f32.mrf.mxu0
      %v3255 = vadd.f32 0.0, %v3254
      %3256 = vmatmul.f32.gmra.mxu0 %v2998
      %v3257 = vpop.f32.mrf.mxu0
      %v3258 = vadd.f32 0.0, %v3257
      %3259 = vmatmul.f32.gmra.mxu0 %v3001
      %v3260 = vpop.f32.mrf.mxu0
      %v3261 = vadd.f32 0.0, %v3260
      %3262 = vmatmul.f32.gmra.mxu0 %v3004
      %v3263 = vpop.f32.mrf.mxu0
      %v3264 = vadd.f32 0.0, %v3263
      %3265 = vmatmul.f32.gmra.mxu0 %v3007
      %v3266 = vpop.f32.mrf.mxu0
      %v3267 = vadd.f32 0.0, %v3266
      %3268 = vmatmul.f32.gmra.mxu0 %v3010
      %v3269 = vpop.f32.mrf.mxu0
      %v3270 = vadd.f32 0.0, %v3269
      %3271 = vmatmul.f32.gmra.mxu0 %v3013
      %v3272 = vpop.f32.mrf.mxu0
      %v3273 = vadd.f32 0.0, %v3272
      %3274 = vmatmul.f32.gmra.mxu0 %v3016
      %v3275 = vpop.f32.mrf.mxu0
      %v3276 = vadd.f32 0.0, %v3275
      %3277 = vmatmul.f32.gmra.mxu0 %v3019
      %v3278 = vpop.f32.mrf.mxu0
      %v3279 = vadd.f32 0.0, %v3278
      %3280 = vmatmul.f32.gmra.mxu0 %v3022
      %v3281 = vpop.f32.mrf.mxu0
      %v3282 = vadd.f32 0.0, %v3281
      %3283 = vmatmul.f32.gmra.mxu0 %v3025
      %v3284 = vpop.f32.mrf.mxu0
      %v3285 = vadd.f32 0.0, %v3284
      %3286 = vmatmul.f32.gmra.mxu0 %v3028
      %v3287 = vpop.f32.mrf.mxu0
      %v3288 = vadd.f32 0.0, %v3287
      %3289 = vmatmul.f32.gmra.mxu0 %v3031
      %v3290 = vpop.f32.mrf.mxu0
      %v3291 = vadd.f32 0.0, %v3290
      %3292 = vmatmul.f32.gmra.mxu0 %v3034
      %v3293 = vpop.f32.mrf.mxu0
      %v3294 = vadd.f32 0.0, %v3293
      %3295 = vmatmul.f32.gmra.mxu0 %v3037
      %v3296 = vpop.f32.mrf.mxu0
      %v3297 = vadd.f32 0.0, %v3296
      %3298 = vmatmul.f32.gmra.mxu0 %v3040
      %v3299 = vpop.f32.mrf.mxu0
      %v3300 = vadd.f32 0.0, %v3299
      %3301 = vmatmul.f32.gmra.mxu0 %v3043
      %v3302 = vpop.f32.mrf.mxu0
      %v3303 = vadd.f32 0.0, %v3302
      %3304 = vmatmul.f32.gmra.mxu0 %v3046
      %v3305 = vpop.f32.mrf.mxu0
      %v3306 = vadd.f32 0.0, %v3305
      %3307 = vmatmul.f32.gmra.mxu0 %v3049
      %v3308 = vpop.f32.mrf.mxu0
      %v3309 = vadd.f32 0.0, %v3308
      %3310 = vmatmul.f32.gmra.mxu0 %v3052
      %v3311 = vpop.f32.mrf.mxu0
      %v3312 = vadd.f32 0.0, %v3311
      %3313 = vmatmul.f32.gmra.mxu0 %v3055
      %v3314 = vpop.f32.mrf.mxu0
      %v3315 = vadd.f32 0.0, %v3314
      %3316 = vmatmul.f32.gmra.mxu0 %v3058
      %v3317 = vpop.f32.mrf.mxu0
      %v3318 = vadd.f32 0.0, %v3317
      %3319 = vmatmul.f32.gmra.mxu0 %v3061
      %v3320 = vpop.f32.mrf.mxu0
      %v3321 = vadd.f32 0.0, %v3320
      %3322 = vmatmul.f32.gmra.mxu0 %v3064
      %v3323 = vpop.f32.mrf.mxu0
      %v3324 = vadd.f32 0.0, %v3323
      %3325 = vmatmul.f32.gmra.mxu0 %v3067
      %v3326 = vpop.f32.mrf.mxu0
      %v3327 = vadd.f32 0.0, %v3326
      %3328 = vmatmul.f32.gmra.mxu0 %v3070
      %v3329 = vpop.f32.mrf.mxu0
      %v3330 = vadd.f32 0.0, %v3329
      %3331 = vmatmul.f32.gmra.mxu0 %v3073
      %v3332 = vpop.f32.mrf.mxu0
      %v3333 = vadd.f32 0.0, %v3332
      %3334 = vmatmul.f32.gmra.mxu0 %v3076
      %v3335 = vpop.f32.mrf.mxu0
      %v3336 = vadd.f32 0.0, %v3335
      %3337 = vdwg.mxu0
      %v3338 = vadd.f32 %v2672, %v3096
      %v3339 = vadd.f32 %v2673, %v3099
      %v3340 = vadd.f32 %v2674, %v3102
      %v3341 = vadd.f32 %v2675, %v3105
      %v3342 = vadd.f32 %v2676, %v3108
      %v3343 = vadd.f32 %v2677, %v3111
      %v3344 = vadd.f32 %v2678, %v3114
      %v3345 = vadd.f32 %v2679, %v3117
      %v3346 = vadd.f32 %v2680, %v3120
      %v3347 = vadd.f32 %v2681, %v3123
      %v3348 = vadd.f32 %v2682, %v3126
      %v3349 = vadd.f32 %v2683, %v3129
      %v3350 = vadd.f32 %v2684, %v3132
      %v3351 = vadd.f32 %v2685, %v3135
      %v3352 = vadd.f32 %v2686, %v3138
      %v3353 = vadd.f32 %v2687, %v3141
      %v3354 = vadd.f32 %v2688, %v3144
      %v3355 = vadd.f32 %v2689, %v3147
      %v3356 = vadd.f32 %v2690, %v3150
      %v3357 = vadd.f32 %v2691, %v3153
      %v3358 = vadd.f32 %v2692, %v3156
      %v3359 = vadd.f32 %v2693, %v3159
      %v3360 = vadd.f32 %v2694, %v3162
      %v3361 = vadd.f32 %v2695, %v3165
      %v3362 = vadd.f32 %v2696, %v3168
      %v3363 = vadd.f32 %v2697, %v3171
      %v3364 = vadd.f32 %v2698, %v3174
      %v3365 = vadd.f32 %v2699, %v3177
      %v3366 = vadd.f32 %v2700, %v3180
      %v3367 = vadd.f32 %v2701, %v3183
      %v3368 = vadd.f32 %v2702, %v3186
      %v3369 = vadd.f32 %v2703, %v3189
      %v3370 = vadd.f32 %v2704, %v3192
      %v3371 = vadd.f32 %v2705, %v3195
      %v3372 = vadd.f32 %v2706, %v3198
      %v3373 = vadd.f32 %v2707, %v3201
      %v3374 = vadd.f32 %v2708, %v3204
      %v3375 = vadd.f32 %v2709, %v3207
      %v3376 = vadd.f32 %v2710, %v3210
      %v3377 = vadd.f32 %v2711, %v3213
      %v3378 = vadd.f32 %v2712, %v3216
      %v3379 = vadd.f32 %v2713, %v3219
      %v3380 = vadd.f32 %v2714, %v3222
      %v3381 = vadd.f32 %v2715, %v3225
      %v3382 = vadd.f32 %v2716, %v3228
      %v3383 = vadd.f32 %v2717, %v3231
      %v3384 = vadd.f32 %v2718, %v3234
      %v3385 = vadd.f32 %v2719, %v3237
      %v3386 = vadd.f32 %v2720, %v3240
      %v3387 = vadd.f32 %v2721, %v3243
      %v3388 = vadd.f32 %v2722, %v3246
      %v3389 = vadd.f32 %v2723, %v3249
      %v3390 = vadd.f32 %v2724, %v3252
      %v3391 = vadd.f32 %v2725, %v3255
      %v3392 = vadd.f32 %v2726, %v3258
      %v3393 = vadd.f32 %v2727, %v3261
      %v3394 = vadd.f32 %v2728, %v3264
      %v3395 = vadd.f32 %v2729, %v3267
      %v3396 = vadd.f32 %v2730, %v3270
      %v3397 = vadd.f32 %v2731, %v3273
      %v3398 = vadd.f32 %v2732, %v3276
      %v3399 = vadd.f32 %v2733, %v3279
      %v3400 = vadd.f32 %v2734, %v3282
      %v3401 = vadd.f32 %v2735, %v3285
      %v3402 = vadd.f32 %v2736, %v3288
      %v3403 = vadd.f32 %v2737, %v3291
      %v3404 = vadd.f32 %v2738, %v3294
      %v3405 = vadd.f32 %v2739, %v3297
      %v3406 = vadd.f32 %v2740, %v3300
      %v3407 = vadd.f32 %v2741, %v3303
      %v3408 = vadd.f32 %v2742, %v3306
      %v3409 = vadd.f32 %v2743, %v3309
      %v3410 = vadd.f32 %v2744, %v3312
      %v3411 = vadd.f32 %v2745, %v3315
      %v3412 = vadd.f32 %v2746, %v3318
      %v3413 = vadd.f32 %v2747, %v3321
      %v3414 = vadd.f32 %v2748, %v3324
      %v3415 = vadd.f32 %v2749, %v3327
      %v3416 = vadd.f32 %v2750, %v3330
      %v3417 = vadd.f32 %v2751, %v3333
      %v3418 = vadd.f32 %v2752, %v3336
      %v3419 = vld [vmem:[%s245 + $0x14] sm:$0xff]
      %v3420 = vld [vmem:[%s245 + $0x1c] sm:$0xff]
      %v3421 = vld [vmem:[%s245 + $0x24] sm:$0xff]
      %v3422 = vld [vmem:[%s245 + $0x2c] sm:$0xff]
      %v3423 = vld [vmem:[%s245 + $0x34] sm:$0xff]
      %v3424 = vld [vmem:[%s245 + $0x3c] sm:$0xff]
      %v3425 = vld [vmem:[%s245 + $0x44] sm:$0xff]
      %v3426 = vld [vmem:[%s245 + $0x4c] sm:$0xff]
      %v3427 = vld [vmem:[%s245 + $0x54] sm:$0xff]
      %v3428 = vld [vmem:[%s245 + $0x5c] sm:$0xff]
      %v3429 = vld [vmem:[%s245 + $0x64] sm:$0xff]
      %v3430 = vld [vmem:[%s245 + $0x6c] sm:$0xff]
      %v3431 = vld [vmem:[%s245 + $0x74] sm:$0xff]
      %v3432 = vld [vmem:[%s245 + $0x7c] sm:$0xff]
      %v3433 = vld [vmem:[%s245 + $0x84] sm:$0xff]
      %v3434 = vld [vmem:[%s245 + $0x8c] sm:$0xff]
      %v3435 = vld [vmem:[%s245 + $0x94] sm:$0xff]
      %v3436 = vld [vmem:[%s245 + $0x9c] sm:$0xff]
      %v3437 = vld [vmem:[%s245 + $0xa4] sm:$0xff]
      %v3438 = vld [vmem:[%s245 + $0xac] sm:$0xff]
      %v3439 = vld [vmem:[%s245 + $0xb4] sm:$0xff]
      %v3440 = vld [vmem:[%s245 + $0xbc] sm:$0xff]
      %v3441 = vld [vmem:[%s245 + $0xc4] sm:$0xff]
      %v3442 = vld [vmem:[%s245 + $0xcc] sm:$0xff]
      %v3443 = vld [vmem:[%s245 + $0xd4] sm:$0xff]
      %v3444 = vld [vmem:[%s245 + $0xdc] sm:$0xff]
      %v3445 = vld [vmem:[%s245 + $0xe4] sm:$0xff]
      %v3446 = vld [vmem:[%s245 + $0xec] sm:$0xff]
      %v3447 = vld [vmem:[%s245 + $0xf4] sm:$0xff]
      %v3448 = vld [vmem:[%s245 + $0xfc] sm:$0xff]
      %v3449 = vld [vmem:[%s245 + $0x104] sm:$0xff]
      %v3450 = vld [vmem:[%s245 + $0x10c] sm:$0xff]
      %v3451 = vld [vmem:[%s245 + $0x114] sm:$0xff]
      %v3452 = vld [vmem:[%s245 + $0x11c] sm:$0xff]
      %v3453 = vld [vmem:[%s245 + $0x124] sm:$0xff]
      %v3454 = vld [vmem:[%s245 + $0x12c] sm:$0xff]
      %v3455 = vld [vmem:[%s245 + $0x134] sm:$0xff]
      %v3456 = vld [vmem:[%s245 + $0x13c] sm:$0xff]
      %v3457 = vld [vmem:[%s245 + $0x144] sm:$0xff]
      %v3458 = vld [vmem:[%s245 + $0x14c] sm:$0xff]
      %v3459 = vld [vmem:[%s245 + $0x154] sm:$0xff]
      %v3460 = vld [vmem:[%s245 + $0x15c] sm:$0xff]
      %v3461 = vld [vmem:[%s245 + $0x164] sm:$0xff]
      %v3462 = vld [vmem:[%s245 + $0x16c] sm:$0xff]
      %v3463 = vld [vmem:[%s245 + $0x174] sm:$0xff]
      %v3464 = vld [vmem:[%s245 + $0x17c] sm:$0xff]
      %v3465 = vld [vmem:[%s245 + $0x184] sm:$0xff]
      %v3466 = vld [vmem:[%s245 + $0x18c] sm:$0xff]
      %v3467 = vld [vmem:[%s245 + $0x194] sm:$0xff]
      %v3468 = vld [vmem:[%s245 + $0x19c] sm:$0xff]
      %v3469 = vld [vmem:[%s245 + $0x1a4] sm:$0xff]
      %v3470 = vld [vmem:[%s245 + $0x1ac] sm:$0xff]
      %v3471 = vld [vmem:[%s245 + $0x1b4] sm:$0xff]
      %v3472 = vld [vmem:[%s245 + $0x1bc] sm:$0xff]
      %v3473 = vld [vmem:[%s245 + $0x1c4] sm:$0xff]
      %v3474 = vld [vmem:[%s245 + $0x1cc] sm:$0xff]
      %v3475 = vld [vmem:[%s245 + $0x1d4] sm:$0xff]
      %v3476 = vld [vmem:[%s245 + $0x1dc] sm:$0xff]
      %v3477 = vld [vmem:[%s245 + $0x1e4] sm:$0xff]
      %v3478 = vld [vmem:[%s245 + $0x1ec] sm:$0xff]
      %v3479 = vld [vmem:[%s245 + $0x1f4] sm:$0xff]
      %v3480 = vld [vmem:[%s245 + $0x1fc] sm:$0xff]
      %v3481 = vld [vmem:[%s245 + $0x204] sm:$0xff]
      %v3482 = vld [vmem:[%s245 + $0x20c] sm:$0xff]
      %v3483 = vld [vmem:[%s245 + $0x214] sm:$0xff]
      %v3484 = vld [vmem:[%s245 + $0x21c] sm:$0xff]
      %v3485 = vld [vmem:[%s245 + $0x224] sm:$0xff]
      %v3486 = vld [vmem:[%s245 + $0x22c] sm:$0xff]
      %v3487 = vld [vmem:[%s245 + $0x234] sm:$0xff]
      %v3488 = vld [vmem:[%s245 + $0x23c] sm:$0xff]
      %v3489 = vld [vmem:[%s245 + $0x244] sm:$0xff]
      %v3490 = vld [vmem:[%s245 + $0x24c] sm:$0xff]
      %v3491 = vld [vmem:[%s245 + $0x254] sm:$0xff]
      %v3492 = vld [vmem:[%s245 + $0x25c] sm:$0xff]
      %v3493 = vld [vmem:[%s245 + $0x264] sm:$0xff]
      %v3494 = vld [vmem:[%s245 + $0x26c] sm:$0xff]
      %v3495 = vld [vmem:[%s245 + $0x274] sm:$0xff]
      %v3496 = vld [vmem:[%s245 + $0x27c] sm:$0xff]
      %v3497 = vld [vmem:[%s245 + $0x284] sm:$0xff]
      %v3498 = vld [vmem:[%s245 + $0x28c] sm:$0xff]
      %v3499 = vld [vmem:[%s245 + $0x294] sm:$0xff]
      %v3500 = vld [vmem:[%s2 + $0x28] sm:$0xff]
      %v3502 = vsel %vm414, %v3419, 0
      %v3505 = vsel %vm414, %v3420, 0
      %v3508 = vsel %vm414, %v3421, 0
      %v3511 = vsel %vm414, %v3422, 0
      %v3514 = vsel %vm414, %v3423, 0
      %v3517 = vsel %vm414, %v3424, 0
      %v3520 = vsel %vm414, %v3425, 0
      %v3523 = vsel %vm414, %v3426, 0
      %v3526 = vsel %vm414, %v3427, 0
      %v3529 = vsel %vm414, %v3428, 0
      %v3532 = vsel %vm414, %v3429, 0
      %v3535 = vsel %vm414, %v3430, 0
      %v3538 = vsel %vm414, %v3431, 0
      %v3541 = vsel %vm414, %v3432, 0
      %v3544 = vsel %vm414, %v3433, 0
      %v3547 = vsel %vm414, %v3434, 0
      %v3550 = vsel %vm414, %v3435, 0
      %v3553 = vsel %vm414, %v3436, 0
      %v3556 = vsel %vm414, %v3437, 0
      %v3559 = vsel %vm414, %v3438, 0
      %v3562 = vsel %vm414, %v3439, 0
      %v3565 = vsel %vm414, %v3440, 0
      %v3568 = vsel %vm414, %v3441, 0
      %v3571 = vsel %vm414, %v3442, 0
      %v3574 = vsel %vm414, %v3443, 0
      %v3577 = vsel %vm414, %v3444, 0
      %v3580 = vsel %vm414, %v3445, 0
      %v3583 = vsel %vm414, %v3446, 0
      %v3586 = vsel %vm414, %v3447, 0
      %v3589 = vsel %vm414, %v3448, 0
      %v3592 = vsel %vm414, %v3449, 0
      %v3595 = vsel %vm414, %v3450, 0
      %v3598 = vsel %vm414, %v3451, 0
      %v3601 = vsel %vm414, %v3452, 0
      %v3604 = vsel %vm414, %v3453, 0
      %v3607 = vsel %vm414, %v3454, 0
      %v3610 = vsel %vm414, %v3455, 0
      %v3613 = vsel %vm414, %v3456, 0
      %v3616 = vsel %vm414, %v3457, 0
      %v3619 = vsel %vm414, %v3458, 0
      %v3622 = vsel %vm414, %v3459, 0
      %v3625 = vsel %vm414, %v3460, 0
      %v3628 = vsel %vm414, %v3461, 0
      %v3631 = vsel %vm414, %v3462, 0
      %v3634 = vsel %vm414, %v3463, 0
      %v3637 = vsel %vm414, %v3464, 0
      %v3640 = vsel %vm414, %v3465, 0
      %v3643 = vsel %vm414, %v3466, 0
      %v3646 = vsel %vm414, %v3467, 0
      %v3649 = vsel %vm414, %v3468, 0
      %v3652 = vsel %vm414, %v3469, 0
      %v3655 = vsel %vm414, %v3470, 0
      %v3658 = vsel %vm414, %v3471, 0
      %v3661 = vsel %vm414, %v3472, 0
      %v3664 = vsel %vm414, %v3473, 0
      %v3667 = vsel %vm414, %v3474, 0
      %v3670 = vsel %vm414, %v3475, 0
      %v3673 = vsel %vm414, %v3476, 0
      %v3676 = vsel %vm414, %v3477, 0
      %v3679 = vsel %vm414, %v3478, 0
      %v3682 = vsel %vm414, %v3479, 0
      %v3685 = vsel %vm414, %v3480, 0
      %v3688 = vsel %vm414, %v3481, 0
      %v3691 = vsel %vm414, %v3482, 0
      %v3694 = vsel %vm414, %v3483, 0
      %v3697 = vsel %vm414, %v3484, 0
      %v3700 = vsel %vm414, %v3485, 0
      %v3703 = vsel %vm414, %v3486, 0
      %v3706 = vsel %vm414, %v3487, 0
      %v3709 = vsel %vm414, %v3488, 0
      %v3712 = vsel %vm414, %v3489, 0
      %v3715 = vsel %vm414, %v3490, 0
      %v3718 = vsel %vm414, %v3491, 0
      %v3721 = vsel %vm414, %v3492, 0
      %v3724 = vsel %vm414, %v3493, 0
      %v3727 = vsel %vm414, %v3494, 0
      %v3730 = vsel %vm414, %v3495, 0
      %v3733 = vsel %vm414, %v3496, 0
      %v3736 = vsel %vm414, %v3497, 0
      %v3739 = vsel %vm414, %v3498, 0
      %v3742 = vsel %vm414, %v3499, 0
      %3744 = vmatpush.msra.mxu0 0.0
      %3745 = vmatpush.msra.mxu0 0.0
      %3746 = vmatpush.msra.mxu0 0.0
      %3747 = vmatpush.msra.mxu0 0.0
      %3748 = vmatpush.msra.mxu0 0.0
      %3749 = vmatpush.msra.mxu0 0.0
      %3750 = vmatpush.msra.mxu0 0.0
      %3751 = vmatpush.msra.mxu0 0.0
      %3752 = vmatpush.msra.mxu0 0.0
      %3753 = vmatpush.msra.mxu0 0.0
      %3754 = vmatpush.msra.mxu0 0.0
      %3755 = vmatpush.msra.mxu0 0.0
      %3756 = vmatpush.msra.mxu0 0.0
      %3757 = vmatpush.msra.mxu0 0.0
      %3758 = vmatpush.msra.mxu0 0.0
      %3759 = vmatpush.msra.mxu0 %v3500
      %3760 = vmatmul.f32.gmra.mxu0 %v3502
      %v3761 = vpop.f32.mrf.mxu0
      %v3762 = vadd.f32 0.0, %v3761
      %3763 = vmatmul.f32.gmra.mxu0 %v3505
      %v3764 = vpop.f32.mrf.mxu0
      %v3765 = vadd.f32 0.0, %v3764
      %3766 = vmatmul.f32.gmra.mxu0 %v3508
      %v3767 = vpop.f32.mrf.mxu0
      %v3768 = vadd.f32 0.0, %v3767
      %3769 = vmatmul.f32.gmra.mxu0 %v3511
      %v3770 = vpop.f32.mrf.mxu0
      %v3771 = vadd.f32 0.0, %v3770
      %3772 = vmatmul.f32.gmra.mxu0 %v3514
      %v3773 = vpop.f32.mrf.mxu0
      %v3774 = vadd.f32 0.0, %v3773
      %3775 = vmatmul.f32.gmra.mxu0 %v3517
      %v3776 = vpop.f32.mrf.mxu0
      %v3777 = vadd.f32 0.0, %v3776
      %3778 = vmatmul.f32.gmra.mxu0 %v3520
      %v3779 = vpop.f32.mrf.mxu0
      %v3780 = vadd.f32 0.0, %v3779
      %3781 = vmatmul.f32.gmra.mxu0 %v3523
      %v3782 = vpop.f32.mrf.mxu0
      %v3783 = vadd.f32 0.0, %v3782
      %3784 = vmatmul.f32.gmra.mxu0 %v3526
      %v3785 = vpop.f32.mrf.mxu0
      %v3786 = vadd.f32 0.0, %v3785
      %3787 = vmatmul.f32.gmra.mxu0 %v3529
      %v3788 = vpop.f32.mrf.mxu0
      %v3789 = vadd.f32 0.0, %v3788
      %3790 = vmatmul.f32.gmra.mxu0 %v3532
      %v3791 = vpop.f32.mrf.mxu0
      %v3792 = vadd.f32 0.0, %v3791
      %3793 = vmatmul.f32.gmra.mxu0 %v3535
      %v3794 = vpop.f32.mrf.mxu0
      %v3795 = vadd.f32 0.0, %v3794
      %3796 = vmatmul.f32.gmra.mxu0 %v3538
      %v3797 = vpop.f32.mrf.mxu0
      %v3798 = vadd.f32 0.0, %v3797
      %3799 = vmatmul.f32.gmra.mxu0 %v3541
      %v3800 = vpop.f32.mrf.mxu0
      %v3801 = vadd.f32 0.0, %v3800
      %3802 = vmatmul.f32.gmra.mxu0 %v3544
      %v3803 = vpop.f32.mrf.mxu0
      %v3804 = vadd.f32 0.0, %v3803
      %3805 = vmatmul.f32.gmra.mxu0 %v3547
      %v3806 = vpop.f32.mrf.mxu0
      %v3807 = vadd.f32 0.0, %v3806
      %3808 = vmatmul.f32.gmra.mxu0 %v3550
      %v3809 = vpop.f32.mrf.mxu0
      %v3810 = vadd.f32 0.0, %v3809
      %3811 = vmatmul.f32.gmra.mxu0 %v3553
      %v3812 = vpop.f32.mrf.mxu0
      %v3813 = vadd.f32 0.0, %v3812
      %3814 = vmatmul.f32.gmra.mxu0 %v3556
      %v3815 = vpop.f32.mrf.mxu0
      %v3816 = vadd.f32 0.0, %v3815
      %3817 = vmatmul.f32.gmra.mxu0 %v3559
      %v3818 = vpop.f32.mrf.mxu0
      %v3819 = vadd.f32 0.0, %v3818
      %3820 = vmatmul.f32.gmra.mxu0 %v3562
      %v3821 = vpop.f32.mrf.mxu0
      %v3822 = vadd.f32 0.0, %v3821
      %3823 = vmatmul.f32.gmra.mxu0 %v3565
      %v3824 = vpop.f32.mrf.mxu0
      %v3825 = vadd.f32 0.0, %v3824
      %3826 = vmatmul.f32.gmra.mxu0 %v3568
      %v3827 = vpop.f32.mrf.mxu0
      %v3828 = vadd.f32 0.0, %v3827
      %3829 = vmatmul.f32.gmra.mxu0 %v3571
      %v3830 = vpop.f32.mrf.mxu0
      %v3831 = vadd.f32 0.0, %v3830
      %3832 = vmatmul.f32.gmra.mxu0 %v3574
      %v3833 = vpop.f32.mrf.mxu0
      %v3834 = vadd.f32 0.0, %v3833
      %3835 = vmatmul.f32.gmra.mxu0 %v3577
      %v3836 = vpop.f32.mrf.mxu0
      %v3837 = vadd.f32 0.0, %v3836
      %3838 = vmatmul.f32.gmra.mxu0 %v3580
      %v3839 = vpop.f32.mrf.mxu0
      %v3840 = vadd.f32 0.0, %v3839
      %3841 = vmatmul.f32.gmra.mxu0 %v3583
      %v3842 = vpop.f32.mrf.mxu0
      %v3843 = vadd.f32 0.0, %v3842
      %3844 = vmatmul.f32.gmra.mxu0 %v3586
      %v3845 = vpop.f32.mrf.mxu0
      %v3846 = vadd.f32 0.0, %v3845
      %3847 = vmatmul.f32.gmra.mxu0 %v3589
      %v3848 = vpop.f32.mrf.mxu0
      %v3849 = vadd.f32 0.0, %v3848
      %3850 = vmatmul.f32.gmra.mxu0 %v3592
      %v3851 = vpop.f32.mrf.mxu0
      %v3852 = vadd.f32 0.0, %v3851
      %3853 = vmatmul.f32.gmra.mxu0 %v3595
      %v3854 = vpop.f32.mrf.mxu0
      %v3855 = vadd.f32 0.0, %v3854
      %3856 = vmatmul.f32.gmra.mxu0 %v3598
      %v3857 = vpop.f32.mrf.mxu0
      %v3858 = vadd.f32 0.0, %v3857
      %3859 = vmatmul.f32.gmra.mxu0 %v3601
      %v3860 = vpop.f32.mrf.mxu0
      %v3861 = vadd.f32 0.0, %v3860
      %3862 = vmatmul.f32.gmra.mxu0 %v3604
      %v3863 = vpop.f32.mrf.mxu0
      %v3864 = vadd.f32 0.0, %v3863
      %3865 = vmatmul.f32.gmra.mxu0 %v3607
      %v3866 = vpop.f32.mrf.mxu0
      %v3867 = vadd.f32 0.0, %v3866
      %3868 = vmatmul.f32.gmra.mxu0 %v3610
      %v3869 = vpop.f32.mrf.mxu0
      %v3870 = vadd.f32 0.0, %v3869
      %3871 = vmatmul.f32.gmra.mxu0 %v3613
      %v3872 = vpop.f32.mrf.mxu0
      %v3873 = vadd.f32 0.0, %v3872
      %3874 = vmatmul.f32.gmra.mxu0 %v3616
      %v3875 = vpop.f32.mrf.mxu0
      %v3876 = vadd.f32 0.0, %v3875
      %3877 = vmatmul.f32.gmra.mxu0 %v3619
      %v3878 = vpop.f32.mrf.mxu0
      %v3879 = vadd.f32 0.0, %v3878
      %3880 = vmatmul.f32.gmra.mxu0 %v3622
      %v3881 = vpop.f32.mrf.mxu0
      %v3882 = vadd.f32 0.0, %v3881
      %3883 = vmatmul.f32.gmra.mxu0 %v3625
      %v3884 = vpop.f32.mrf.mxu0
      %v3885 = vadd.f32 0.0, %v3884
      %3886 = vmatmul.f32.gmra.mxu0 %v3628
      %v3887 = vpop.f32.mrf.mxu0
      %v3888 = vadd.f32 0.0, %v3887
      %3889 = vmatmul.f32.gmra.mxu0 %v3631
      %v3890 = vpop.f32.mrf.mxu0
      %v3891 = vadd.f32 0.0, %v3890
      %3892 = vmatmul.f32.gmra.mxu0 %v3634
      %v3893 = vpop.f32.mrf.mxu0
      %v3894 = vadd.f32 0.0, %v3893
      %3895 = vmatmul.f32.gmra.mxu0 %v3637
      %v3896 = vpop.f32.mrf.mxu0
      %v3897 = vadd.f32 0.0, %v3896
      %3898 = vmatmul.f32.gmra.mxu0 %v3640
      %v3899 = vpop.f32.mrf.mxu0
      %v3900 = vadd.f32 0.0, %v3899
      %3901 = vmatmul.f32.gmra.mxu0 %v3643
      %v3902 = vpop.f32.mrf.mxu0
      %v3903 = vadd.f32 0.0, %v3902
      %3904 = vmatmul.f32.gmra.mxu0 %v3646
      %v3905 = vpop.f32.mrf.mxu0
      %v3906 = vadd.f32 0.0, %v3905
      %3907 = vmatmul.f32.gmra.mxu0 %v3649
      %v3908 = vpop.f32.mrf.mxu0
      %v3909 = vadd.f32 0.0, %v3908
      %3910 = vmatmul.f32.gmra.mxu0 %v3652
      %v3911 = vpop.f32.mrf.mxu0
      %v3912 = vadd.f32 0.0, %v3911
      %3913 = vmatmul.f32.gmra.mxu0 %v3655
      %v3914 = vpop.f32.mrf.mxu0
      %v3915 = vadd.f32 0.0, %v3914
      %3916 = vmatmul.f32.gmra.mxu0 %v3658
      %v3917 = vpop.f32.mrf.mxu0
      %v3918 = vadd.f32 0.0, %v3917
      %3919 = vmatmul.f32.gmra.mxu0 %v3661
      %v3920 = vpop.f32.mrf.mxu0
      %v3921 = vadd.f32 0.0, %v3920
      %3922 = vmatmul.f32.gmra.mxu0 %v3664
      %v3923 = vpop.f32.mrf.mxu0
      %v3924 = vadd.f32 0.0, %v3923
      %3925 = vmatmul.f32.gmra.mxu0 %v3667
      %v3926 = vpop.f32.mrf.mxu0
      %v3927 = vadd.f32 0.0, %v3926
      %3928 = vmatmul.f32.gmra.mxu0 %v3670
      %v3929 = vpop.f32.mrf.mxu0
      %v3930 = vadd.f32 0.0, %v3929
      %3931 = vmatmul.f32.gmra.mxu0 %v3673
      %v3932 = vpop.f32.mrf.mxu0
      %v3933 = vadd.f32 0.0, %v3932
      %3934 = vmatmul.f32.gmra.mxu0 %v3676
      %v3935 = vpop.f32.mrf.mxu0
      %v3936 = vadd.f32 0.0, %v3935
      %3937 = vmatmul.f32.gmra.mxu0 %v3679
      %v3938 = vpop.f32.mrf.mxu0
      %v3939 = vadd.f32 0.0, %v3938
      %3940 = vmatmul.f32.gmra.mxu0 %v3682
      %v3941 = vpop.f32.mrf.mxu0
      %v3942 = vadd.f32 0.0, %v3941
      %3943 = vmatmul.f32.gmra.mxu0 %v3685
      %v3944 = vpop.f32.mrf.mxu0
      %v3945 = vadd.f32 0.0, %v3944
      %3946 = vmatmul.f32.gmra.mxu0 %v3688
      %v3947 = vpop.f32.mrf.mxu0
      %v3948 = vadd.f32 0.0, %v3947
      %3949 = vmatmul.f32.gmra.mxu0 %v3691
      %v3950 = vpop.f32.mrf.mxu0
      %v3951 = vadd.f32 0.0, %v3950
      %3952 = vmatmul.f32.gmra.mxu0 %v3694
      %v3953 = vpop.f32.mrf.mxu0
      %v3954 = vadd.f32 0.0, %v3953
      %3955 = vmatmul.f32.gmra.mxu0 %v3697
      %v3956 = vpop.f32.mrf.mxu0
      %v3957 = vadd.f32 0.0, %v3956
      %3958 = vmatmul.f32.gmra.mxu0 %v3700
      %v3959 = vpop.f32.mrf.mxu0
      %v3960 = vadd.f32 0.0, %v3959
      %3961 = vmatmul.f32.gmra.mxu0 %v3703
      %v3962 = vpop.f32.mrf.mxu0
      %v3963 = vadd.f32 0.0, %v3962
      %3964 = vmatmul.f32.gmra.mxu0 %v3706
      %v3965 = vpop.f32.mrf.mxu0
      %v3966 = vadd.f32 0.0, %v3965
      %3967 = vmatmul.f32.gmra.mxu0 %v3709
      %v3968 = vpop.f32.mrf.mxu0
      %v3969 = vadd.f32 0.0, %v3968
      %3970 = vmatmul.f32.gmra.mxu0 %v3712
      %v3971 = vpop.f32.mrf.mxu0
      %v3972 = vadd.f32 0.0, %v3971
      %3973 = vmatmul.f32.gmra.mxu0 %v3715
      %v3974 = vpop.f32.mrf.mxu0
      %v3975 = vadd.f32 0.0, %v3974
      %3976 = vmatmul.f32.gmra.mxu0 %v3718
      %v3977 = vpop.f32.mrf.mxu0
      %v3978 = vadd.f32 0.0, %v3977
      %3979 = vmatmul.f32.gmra.mxu0 %v3721
      %v3980 = vpop.f32.mrf.mxu0
      %v3981 = vadd.f32 0.0, %v3980
      %3982 = vmatmul.f32.gmra.mxu0 %v3724
      %v3983 = vpop.f32.mrf.mxu0
      %v3984 = vadd.f32 0.0, %v3983
      %3985 = vmatmul.f32.gmra.mxu0 %v3727
      %v3986 = vpop.f32.mrf.mxu0
      %v3987 = vadd.f32 0.0, %v3986
      %3988 = vmatmul.f32.gmra.mxu0 %v3730
      %v3989 = vpop.f32.mrf.mxu0
      %v3990 = vadd.f32 0.0, %v3989
      %3991 = vmatmul.f32.gmra.mxu0 %v3733
      %v3992 = vpop.f32.mrf.mxu0
      %v3993 = vadd.f32 0.0, %v3992
      %3994 = vmatmul.f32.gmra.mxu0 %v3736
      %v3995 = vpop.f32.mrf.mxu0
      %v3996 = vadd.f32 0.0, %v3995
      %3997 = vmatmul.f32.gmra.mxu0 %v3739
      %v3998 = vpop.f32.mrf.mxu0
      %v3999 = vadd.f32 0.0, %v3998
      %4000 = vmatmul.f32.gmra.mxu0 %v3742
      %v4001 = vpop.f32.mrf.mxu0
      %v4002 = vadd.f32 0.0, %v4001
      %4003 = vdwg.mxu0
      %v4004 = vadd.f32 %v3338, %v3762
      %v4005 = vadd.f32 %v3339, %v3765
      %v4006 = vadd.f32 %v3340, %v3768
      %v4007 = vadd.f32 %v3341, %v3771
      %v4008 = vadd.f32 %v3342, %v3774
      %v4009 = vadd.f32 %v3343, %v3777
      %v4010 = vadd.f32 %v3344, %v3780
      %v4011 = vadd.f32 %v3345, %v3783
      %v4012 = vadd.f32 %v3346, %v3786
      %v4013 = vadd.f32 %v3347, %v3789
      %v4014 = vadd.f32 %v3348, %v3792
      %v4015 = vadd.f32 %v3349, %v3795
      %v4016 = vadd.f32 %v3350, %v3798
      %v4017 = vadd.f32 %v3351, %v3801
      %v4018 = vadd.f32 %v3352, %v3804
      %v4019 = vadd.f32 %v3353, %v3807
      %v4020 = vadd.f32 %v3354, %v3810
      %v4021 = vadd.f32 %v3355, %v3813
      %v4022 = vadd.f32 %v3356, %v3816
      %v4023 = vadd.f32 %v3357, %v3819
      %v4024 = vadd.f32 %v3358, %v3822
      %v4025 = vadd.f32 %v3359, %v3825
      %v4026 = vadd.f32 %v3360, %v3828
      %v4027 = vadd.f32 %v3361, %v3831
      %v4028 = vadd.f32 %v3362, %v3834
      %v4029 = vadd.f32 %v3363, %v3837
      %v4030 = vadd.f32 %v3364, %v3840
      %v4031 = vadd.f32 %v3365, %v3843
      %v4032 = vadd.f32 %v3366, %v3846
      %v4033 = vadd.f32 %v3367, %v3849
      %v4034 = vadd.f32 %v3368, %v3852
      %v4035 = vadd.f32 %v3369, %v3855
      %v4036 = vadd.f32 %v3370, %v3858
      %v4037 = vadd.f32 %v3371, %v3861
      %v4038 = vadd.f32 %v3372, %v3864
      %v4039 = vadd.f32 %v3373, %v3867
      %v4040 = vadd.f32 %v3374, %v3870
      %v4041 = vadd.f32 %v3375, %v3873
      %v4042 = vadd.f32 %v3376, %v3876
      %v4043 = vadd.f32 %v3377, %v3879
      %v4044 = vadd.f32 %v3378, %v3882
      %v4045 = vadd.f32 %v3379, %v3885
      %v4046 = vadd.f32 %v3380, %v3888
      %v4047 = vadd.f32 %v3381, %v3891
      %v4048 = vadd.f32 %v3382, %v3894
      %v4049 = vadd.f32 %v3383, %v3897
      %v4050 = vadd.f32 %v3384, %v3900
      %v4051 = vadd.f32 %v3385, %v3903
      %v4052 = vadd.f32 %v3386, %v3906
      %v4053 = vadd.f32 %v3387, %v3909
      %v4054 = vadd.f32 %v3388, %v3912
      %v4055 = vadd.f32 %v3389, %v3915
      %v4056 = vadd.f32 %v3390, %v3918
      %v4057 = vadd.f32 %v3391, %v3921
      %v4058 = vadd.f32 %v3392, %v3924
      %v4059 = vadd.f32 %v3393, %v3927
      %v4060 = vadd.f32 %v3394, %v3930
      %v4061 = vadd.f32 %v3395, %v3933
      %v4062 = vadd.f32 %v3396, %v3936
      %v4063 = vadd.f32 %v3397, %v3939
      %v4064 = vadd.f32 %v3398, %v3942
      %v4065 = vadd.f32 %v3399, %v3945
      %v4066 = vadd.f32 %v3400, %v3948
      %v4067 = vadd.f32 %v3401, %v3951
      %v4068 = vadd.f32 %v3402, %v3954
      %v4069 = vadd.f32 %v3403, %v3957
      %v4070 = vadd.f32 %v3404, %v3960
      %v4071 = vadd.f32 %v3405, %v3963
      %v4072 = vadd.f32 %v3406, %v3966
      %v4073 = vadd.f32 %v3407, %v3969
      %v4074 = vadd.f32 %v3408, %v3972
      %v4075 = vadd.f32 %v3409, %v3975
      %v4076 = vadd.f32 %v3410, %v3978
      %v4077 = vadd.f32 %v3411, %v3981
      %v4078 = vadd.f32 %v3412, %v3984
      %v4079 = vadd.f32 %v3413, %v3987
      %v4080 = vadd.f32 %v3414, %v3990
      %v4081 = vadd.f32 %v3415, %v3993
      %v4082 = vadd.f32 %v3416, %v3996
      %v4083 = vadd.f32 %v3417, %v3999
      %v4084 = vadd.f32 %v3418, %v4002
      %v4085 = vld [vmem:[%s245 + $0x24] sm:$0xff]
      %v4086 = vld [vmem:[%s245 + $0x2c] sm:$0xff]
      %v4087 = vld [vmem:[%s245 + $0x34] sm:$0xff]
      %v4088 = vld [vmem:[%s245 + $0x3c] sm:$0xff]
      %v4089 = vld [vmem:[%s245 + $0x44] sm:$0xff]
      %v4090 = vld [vmem:[%s245 + $0x4c] sm:$0xff]
      %v4091 = vld [vmem:[%s245 + $0x54] sm:$0xff]
      %v4092 = vld [vmem:[%s245 + $0x5c] sm:$0xff]
      %v4093 = vld [vmem:[%s245 + $0x64] sm:$0xff]
      %v4094 = vld [vmem:[%s245 + $0x6c] sm:$0xff]
      %v4095 = vld [vmem:[%s245 + $0x74] sm:$0xff]
      %v4096 = vld [vmem:[%s245 + $0x7c] sm:$0xff]
      %v4097 = vld [vmem:[%s245 + $0x84] sm:$0xff]
      %v4098 = vld [vmem:[%s245 + $0x8c] sm:$0xff]
      %v4099 = vld [vmem:[%s245 + $0x94] sm:$0xff]
      %v4100 = vld [vmem:[%s245 + $0x9c] sm:$0xff]
      %v4101 = vld [vmem:[%s245 + $0xa4] sm:$0xff]
      %v4102 = vld [vmem:[%s245 + $0xac] sm:$0xff]
      %v4103 = vld [vmem:[%s245 + $0xb4] sm:$0xff]
      %v4104 = vld [vmem:[%s245 + $0xbc] sm:$0xff]
      %v4105 = vld [vmem:[%s245 + $0xc4] sm:$0xff]
      %v4106 = vld [vmem:[%s245 + $0xcc] sm:$0xff]
      %v4107 = vld [vmem:[%s245 + $0xd4] sm:$0xff]
      %v4108 = vld [vmem:[%s245 + $0xdc] sm:$0xff]
      %v4109 = vld [vmem:[%s245 + $0xe4] sm:$0xff]
      %v4110 = vld [vmem:[%s245 + $0xec] sm:$0xff]
      %v4111 = vld [vmem:[%s245 + $0xf4] sm:$0xff]
      %v4112 = vld [vmem:[%s245 + $0xfc] sm:$0xff]
      %v4113 = vld [vmem:[%s245 + $0x104] sm:$0xff]
      %v4114 = vld [vmem:[%s245 + $0x10c] sm:$0xff]
      %v4115 = vld [vmem:[%s245 + $0x114] sm:$0xff]
      %v4116 = vld [vmem:[%s245 + $0x11c] sm:$0xff]
      %v4117 = vld [vmem:[%s245 + $0x124] sm:$0xff]
      %v4118 = vld [vmem:[%s245 + $0x12c] sm:$0xff]
      %v4119 = vld [vmem:[%s245 + $0x134] sm:$0xff]
      %v4120 = vld [vmem:[%s245 + $0x13c] sm:$0xff]
      %v4121 = vld [vmem:[%s245 + $0x144] sm:$0xff]
      %v4122 = vld [vmem:[%s245 + $0x14c] sm:$0xff]
      %v4123 = vld [vmem:[%s245 + $0x154] sm:$0xff]
      %v4124 = vld [vmem:[%s245 + $0x15c] sm:$0xff]
      %v4125 = vld [vmem:[%s245 + $0x164] sm:$0xff]
      %v4126 = vld [vmem:[%s245 + $0x16c] sm:$0xff]
      %v4127 = vld [vmem:[%s245 + $0x174] sm:$0xff]
      %v4128 = vld [vmem:[%s245 + $0x17c] sm:$0xff]
      %v4129 = vld [vmem:[%s245 + $0x184] sm:$0xff]
      %v4130 = vld [vmem:[%s245 + $0x18c] sm:$0xff]
      %v4131 = vld [vmem:[%s245 + $0x194] sm:$0xff]
      %v4132 = vld [vmem:[%s245 + $0x19c] sm:$0xff]
      %v4133 = vld [vmem:[%s245 + $0x1a4] sm:$0xff]
      %v4134 = vld [vmem:[%s245 + $0x1ac] sm:$0xff]
      %v4135 = vld [vmem:[%s245 + $0x1b4] sm:$0xff]
      %v4136 = vld [vmem:[%s245 + $0x1bc] sm:$0xff]
      %v4137 = vld [vmem:[%s245 + $0x1c4] sm:$0xff]
      %v4138 = vld [vmem:[%s245 + $0x1cc] sm:$0xff]
      %v4139 = vld [vmem:[%s245 + $0x1d4] sm:$0xff]
      %v4140 = vld [vmem:[%s245 + $0x1dc] sm:$0xff]
      %v4141 = vld [vmem:[%s245 + $0x1e4] sm:$0xff]
      %v4142 = vld [vmem:[%s245 + $0x1ec] sm:$0xff]
      %v4143 = vld [vmem:[%s245 + $0x1f4] sm:$0xff]
      %v4144 = vld [vmem:[%s245 + $0x1fc] sm:$0xff]
      %v4145 = vld [vmem:[%s245 + $0x204] sm:$0xff]
      %v4146 = vld [vmem:[%s245 + $0x20c] sm:$0xff]
      %v4147 = vld [vmem:[%s245 + $0x214] sm:$0xff]
      %v4148 = vld [vmem:[%s245 + $0x21c] sm:$0xff]
      %v4149 = vld [vmem:[%s245 + $0x224] sm:$0xff]
      %v4150 = vld [vmem:[%s245 + $0x22c] sm:$0xff]
      %v4151 = vld [vmem:[%s245 + $0x234] sm:$0xff]
      %v4152 = vld [vmem:[%s245 + $0x23c] sm:$0xff]
      %v4153 = vld [vmem:[%s245 + $0x244] sm:$0xff]
      %v4154 = vld [vmem:[%s245 + $0x24c] sm:$0xff]
      %v4155 = vld [vmem:[%s245 + $0x254] sm:$0xff]
      %v4156 = vld [vmem:[%s245 + $0x25c] sm:$0xff]
      %v4157 = vld [vmem:[%s245 + $0x264] sm:$0xff]
      %v4158 = vld [vmem:[%s245 + $0x26c] sm:$0xff]
      %v4159 = vld [vmem:[%s245 + $0x274] sm:$0xff]
      %v4160 = vld [vmem:[%s245 + $0x27c] sm:$0xff]
      %v4161 = vld [vmem:[%s245 + $0x284] sm:$0xff]
      %v4162 = vld [vmem:[%s245 + $0x28c] sm:$0xff]
      %v4163 = vld [vmem:[%s245 + $0x294] sm:$0xff]
      %v4164 = vld [vmem:[%s245 + $0x29c] sm:$0xff]
      %v4165 = vld [vmem:[%s245 + $0x2a4] sm:$0xff]
      %v4166 = vld [vmem:[%s2 + $0x30] sm:$0xff]
      %v4168 = vsel %vm414, %v4085, 0
      %v4171 = vsel %vm414, %v4086, 0
      %v4174 = vsel %vm414, %v4087, 0
      %v4177 = vsel %vm414, %v4088, 0
      %v4180 = vsel %vm414, %v4089, 0
      %v4183 = vsel %vm414, %v4090, 0
      %v4186 = vsel %vm414, %v4091, 0
      %v4189 = vsel %vm414, %v4092, 0
      %v4192 = vsel %vm414, %v4093, 0
      %v4195 = vsel %vm414, %v4094, 0
      %v4198 = vsel %vm414, %v4095, 0
      %v4201 = vsel %vm414, %v4096, 0
      %v4204 = vsel %vm414, %v4097, 0
      %v4207 = vsel %vm414, %v4098, 0
      %v4210 = vsel %vm414, %v4099, 0
      %v4213 = vsel %vm414, %v4100, 0
      %v4216 = vsel %vm414, %v4101, 0
      %v4219 = vsel %vm414, %v4102, 0
      %v4222 = vsel %vm414, %v4103, 0
      %v4225 = vsel %vm414, %v4104, 0
      %v4228 = vsel %vm414, %v4105, 0
      %v4231 = vsel %vm414, %v4106, 0
      %v4234 = vsel %vm414, %v4107, 0
      %v4237 = vsel %vm414, %v4108, 0
      %v4240 = vsel %vm414, %v4109, 0
      %v4243 = vsel %vm414, %v4110, 0
      %v4246 = vsel %vm414, %v4111, 0
      %v4249 = vsel %vm414, %v4112, 0
      %v4252 = vsel %vm414, %v4113, 0
      %v4255 = vsel %vm414, %v4114, 0
      %v4258 = vsel %vm414, %v4115, 0
      %v4261 = vsel %vm414, %v4116, 0
      %v4264 = vsel %vm414, %v4117, 0
      %v4267 = vsel %vm414, %v4118, 0
      %v4270 = vsel %vm414, %v4119, 0
      %v4273 = vsel %vm414, %v4120, 0
      %v4276 = vsel %vm414, %v4121, 0
      %v4279 = vsel %vm414, %v4122, 0
      %v4282 = vsel %vm414, %v4123, 0
      %v4285 = vsel %vm414, %v4124, 0
      %v4288 = vsel %vm414, %v4125, 0
      %v4291 = vsel %vm414, %v4126, 0
      %v4294 = vsel %vm414, %v4127, 0
      %v4297 = vsel %vm414, %v4128, 0
      %v4300 = vsel %vm414, %v4129, 0
      %v4303 = vsel %vm414, %v4130, 0
      %v4306 = vsel %vm414, %v4131, 0
      %v4309 = vsel %vm414, %v4132, 0
      %v4312 = vsel %vm414, %v4133, 0
      %v4315 = vsel %vm414, %v4134, 0
      %v4318 = vsel %vm414, %v4135, 0
      %v4321 = vsel %vm414, %v4136, 0
      %v4324 = vsel %vm414, %v4137, 0
      %v4327 = vsel %vm414, %v4138, 0
      %v4330 = vsel %vm414, %v4139, 0
      %v4333 = vsel %vm414, %v4140, 0
      %v4336 = vsel %vm414, %v4141, 0
      %v4339 = vsel %vm414, %v4142, 0
      %v4342 = vsel %vm414, %v4143, 0
      %v4345 = vsel %vm414, %v4144, 0
      %v4348 = vsel %vm414, %v4145, 0
      %v4351 = vsel %vm414, %v4146, 0
      %v4354 = vsel %vm414, %v4147, 0
      %v4357 = vsel %vm414, %v4148, 0
      %v4360 = vsel %vm414, %v4149, 0
      %v4363 = vsel %vm414, %v4150, 0
      %v4366 = vsel %vm414, %v4151, 0
      %v4369 = vsel %vm414, %v4152, 0
      %v4372 = vsel %vm414, %v4153, 0
      %v4375 = vsel %vm414, %v4154, 0
      %v4378 = vsel %vm414, %v4155, 0
      %v4381 = vsel %vm414, %v4156, 0
      %v4384 = vsel %vm414, %v4157, 0
      %v4387 = vsel %vm414, %v4158, 0
      %v4390 = vsel %vm414, %v4159, 0
      %v4393 = vsel %vm414, %v4160, 0
      %v4396 = vsel %vm414, %v4161, 0
      %v4399 = vsel %vm414, %v4162, 0
      %v4402 = vsel %vm414, %v4163, 0
      %v4405 = vsel %vm414, %v4164, 0
      %v4408 = vsel %vm414, %v4165, 0
      %4410 = vmatpush.msra.mxu0 0.0
      %4411 = vmatpush.msra.mxu0 0.0
      %4412 = vmatpush.msra.mxu0 0.0
      %4413 = vmatpush.msra.mxu0 0.0
      %4414 = vmatpush.msra.mxu0 0.0
      %4415 = vmatpush.msra.mxu0 0.0
      %4416 = vmatpush.msra.mxu0 0.0
      %4417 = vmatpush.msra.mxu0 0.0
      %4418 = vmatpush.msra.mxu0 0.0
      %4419 = vmatpush.msra.mxu0 0.0
      %4420 = vmatpush.msra.mxu0 0.0
      %4421 = vmatpush.msra.mxu0 0.0
      %4422 = vmatpush.msra.mxu0 0.0
      %4423 = vmatpush.msra.mxu0 0.0
      %4424 = vmatpush.msra.mxu0 0.0
      %4425 = vmatpush.msra.mxu0 %v4166
      %4426 = vmatmul.f32.gmra.mxu0 %v4168
      %v4427 = vpop.f32.mrf.mxu0
      %v4428 = vadd.f32 0.0, %v4427
      %4429 = vmatmul.f32.gmra.mxu0 %v4171
      %v4430 = vpop.f32.mrf.mxu0
      %v4431 = vadd.f32 0.0, %v4430
      %4432 = vmatmul.f32.gmra.mxu0 %v4174
      %v4433 = vpop.f32.mrf.mxu0
      %v4434 = vadd.f32 0.0, %v4433
      %4435 = vmatmul.f32.gmra.mxu0 %v4177
      %v4436 = vpop.f32.mrf.mxu0
      %v4437 = vadd.f32 0.0, %v4436
      %4438 = vmatmul.f32.gmra.mxu0 %v4180
      %v4439 = vpop.f32.mrf.mxu0
      %v4440 = vadd.f32 0.0, %v4439
      %4441 = vmatmul.f32.gmra.mxu0 %v4183
      %v4442 = vpop.f32.mrf.mxu0
      %v4443 = vadd.f32 0.0, %v4442
      %4444 = vmatmul.f32.gmra.mxu0 %v4186
      %v4445 = vpop.f32.mrf.mxu0
      %v4446 = vadd.f32 0.0, %v4445
      %4447 = vmatmul.f32.gmra.mxu0 %v4189
      %v4448 = vpop.f32.mrf.mxu0
      %v4449 = vadd.f32 0.0, %v4448
      %4450 = vmatmul.f32.gmra.mxu0 %v4192
      %v4451 = vpop.f32.mrf.mxu0
      %v4452 = vadd.f32 0.0, %v4451
      %4453 = vmatmul.f32.gmra.mxu0 %v4195
      %v4454 = vpop.f32.mrf.mxu0
      %v4455 = vadd.f32 0.0, %v4454
      %4456 = vmatmul.f32.gmra.mxu0 %v4198
      %v4457 = vpop.f32.mrf.mxu0
      %v4458 = vadd.f32 0.0, %v4457
      %4459 = vmatmul.f32.gmra.mxu0 %v4201
      %v4460 = vpop.f32.mrf.mxu0
      %v4461 = vadd.f32 0.0, %v4460
      %4462 = vmatmul.f32.gmra.mxu0 %v4204
      %v4463 = vpop.f32.mrf.mxu0
      %v4464 = vadd.f32 0.0, %v4463
      %4465 = vmatmul.f32.gmra.mxu0 %v4207
      %v4466 = vpop.f32.mrf.mxu0
      %v4467 = vadd.f32 0.0, %v4466
      %4468 = vmatmul.f32.gmra.mxu0 %v4210
      %v4469 = vpop.f32.mrf.mxu0
      %v4470 = vadd.f32 0.0, %v4469
      %4471 = vmatmul.f32.gmra.mxu0 %v4213
      %v4472 = vpop.f32.mrf.mxu0
      %v4473 = vadd.f32 0.0, %v4472
      %4474 = vmatmul.f32.gmra.mxu0 %v4216
      %v4475 = vpop.f32.mrf.mxu0
      %v4476 = vadd.f32 0.0, %v4475
      %4477 = vmatmul.f32.gmra.mxu0 %v4219
      %v4478 = vpop.f32.mrf.mxu0
      %v4479 = vadd.f32 0.0, %v4478
      %4480 = vmatmul.f32.gmra.mxu0 %v4222
      %v4481 = vpop.f32.mrf.mxu0
      %v4482 = vadd.f32 0.0, %v4481
      %4483 = vmatmul.f32.gmra.mxu0 %v4225
      %v4484 = vpop.f32.mrf.mxu0
      %v4485 = vadd.f32 0.0, %v4484
      %4486 = vmatmul.f32.gmra.mxu0 %v4228
      %v4487 = vpop.f32.mrf.mxu0
      %v4488 = vadd.f32 0.0, %v4487
      %4489 = vmatmul.f32.gmra.mxu0 %v4231
      %v4490 = vpop.f32.mrf.mxu0
      %v4491 = vadd.f32 0.0, %v4490
      %4492 = vmatmul.f32.gmra.mxu0 %v4234
      %v4493 = vpop.f32.mrf.mxu0
      %v4494 = vadd.f32 0.0, %v4493
      %4495 = vmatmul.f32.gmra.mxu0 %v4237
      %v4496 = vpop.f32.mrf.mxu0
      %v4497 = vadd.f32 0.0, %v4496
      %4498 = vmatmul.f32.gmra.mxu0 %v4240
      %v4499 = vpop.f32.mrf.mxu0
      %v4500 = vadd.f32 0.0, %v4499
      %4501 = vmatmul.f32.gmra.mxu0 %v4243
      %v4502 = vpop.f32.mrf.mxu0
      %v4503 = vadd.f32 0.0, %v4502
      %4504 = vmatmul.f32.gmra.mxu0 %v4246
      %v4505 = vpop.f32.mrf.mxu0
      %v4506 = vadd.f32 0.0, %v4505
      %4507 = vmatmul.f32.gmra.mxu0 %v4249
      %v4508 = vpop.f32.mrf.mxu0
      %v4509 = vadd.f32 0.0, %v4508
      %4510 = vmatmul.f32.gmra.mxu0 %v4252
      %v4511 = vpop.f32.mrf.mxu0
      %v4512 = vadd.f32 0.0, %v4511
      %4513 = vmatmul.f32.gmra.mxu0 %v4255
      %v4514 = vpop.f32.mrf.mxu0
      %v4515 = vadd.f32 0.0, %v4514
      %4516 = vmatmul.f32.gmra.mxu0 %v4258
      %v4517 = vpop.f32.mrf.mxu0
      %v4518 = vadd.f32 0.0, %v4517
      %4519 = vmatmul.f32.gmra.mxu0 %v4261
      %v4520 = vpop.f32.mrf.mxu0
      %v4521 = vadd.f32 0.0, %v4520
      %4522 = vmatmul.f32.gmra.mxu0 %v4264
      %v4523 = vpop.f32.mrf.mxu0
      %v4524 = vadd.f32 0.0, %v4523
      %4525 = vmatmul.f32.gmra.mxu0 %v4267
      %v4526 = vpop.f32.mrf.mxu0
      %v4527 = vadd.f32 0.0, %v4526
      %4528 = vmatmul.f32.gmra.mxu0 %v4270
      %v4529 = vpop.f32.mrf.mxu0
      %v4530 = vadd.f32 0.0, %v4529
      %4531 = vmatmul.f32.gmra.mxu0 %v4273
      %v4532 = vpop.f32.mrf.mxu0
      %v4533 = vadd.f32 0.0, %v4532
      %4534 = vmatmul.f32.gmra.mxu0 %v4276
      %v4535 = vpop.f32.mrf.mxu0
      %v4536 = vadd.f32 0.0, %v4535
      %4537 = vmatmul.f32.gmra.mxu0 %v4279
      %v4538 = vpop.f32.mrf.mxu0
      %v4539 = vadd.f32 0.0, %v4538
      %4540 = vmatmul.f32.gmra.mxu0 %v4282
      %v4541 = vpop.f32.mrf.mxu0
      %v4542 = vadd.f32 0.0, %v4541
      %4543 = vmatmul.f32.gmra.mxu0 %v4285
      %v4544 = vpop.f32.mrf.mxu0
      %v4545 = vadd.f32 0.0, %v4544
      %4546 = vmatmul.f32.gmra.mxu0 %v4288
      %v4547 = vpop.f32.mrf.mxu0
      %v4548 = vadd.f32 0.0, %v4547
      %4549 = vmatmul.f32.gmra.mxu0 %v4291
      %v4550 = vpop.f32.mrf.mxu0
      %v4551 = vadd.f32 0.0, %v4550
      %4552 = vmatmul.f32.gmra.mxu0 %v4294
      %v4553 = vpop.f32.mrf.mxu0
      %v4554 = vadd.f32 0.0, %v4553
      %4555 = vmatmul.f32.gmra.mxu0 %v4297
      %v4556 = vpop.f32.mrf.mxu0
      %v4557 = vadd.f32 0.0, %v4556
      %4558 = vmatmul.f32.gmra.mxu0 %v4300
      %v4559 = vpop.f32.mrf.mxu0
      %v4560 = vadd.f32 0.0, %v4559
      %4561 = vmatmul.f32.gmra.mxu0 %v4303
      %v4562 = vpop.f32.mrf.mxu0
      %v4563 = vadd.f32 0.0, %v4562
      %4564 = vmatmul.f32.gmra.mxu0 %v4306
      %v4565 = vpop.f32.mrf.mxu0
      %v4566 = vadd.f32 0.0, %v4565
      %4567 = vmatmul.f32.gmra.mxu0 %v4309
      %v4568 = vpop.f32.mrf.mxu0
      %v4569 = vadd.f32 0.0, %v4568
      %4570 = vmatmul.f32.gmra.mxu0 %v4312
      %v4571 = vpop.f32.mrf.mxu0
      %v4572 = vadd.f32 0.0, %v4571
      %4573 = vmatmul.f32.gmra.mxu0 %v4315
      %v4574 = vpop.f32.mrf.mxu0
      %v4575 = vadd.f32 0.0, %v4574
      %4576 = vmatmul.f32.gmra.mxu0 %v4318
      %v4577 = vpop.f32.mrf.mxu0
      %v4578 = vadd.f32 0.0, %v4577
      %4579 = vmatmul.f32.gmra.mxu0 %v4321
      %v4580 = vpop.f32.mrf.mxu0
      %v4581 = vadd.f32 0.0, %v4580
      %4582 = vmatmul.f32.gmra.mxu0 %v4324
      %v4583 = vpop.f32.mrf.mxu0
      %v4584 = vadd.f32 0.0, %v4583
      %4585 = vmatmul.f32.gmra.mxu0 %v4327
      %v4586 = vpop.f32.mrf.mxu0
      %v4587 = vadd.f32 0.0, %v4586
      %4588 = vmatmul.f32.gmra.mxu0 %v4330
      %v4589 = vpop.f32.mrf.mxu0
      %v4590 = vadd.f32 0.0, %v4589
      %4591 = vmatmul.f32.gmra.mxu0 %v4333
      %v4592 = vpop.f32.mrf.mxu0
      %v4593 = vadd.f32 0.0, %v4592
      %4594 = vmatmul.f32.gmra.mxu0 %v4336
      %v4595 = vpop.f32.mrf.mxu0
      %v4596 = vadd.f32 0.0, %v4595
      %4597 = vmatmul.f32.gmra.mxu0 %v4339
      %v4598 = vpop.f32.mrf.mxu0
      %v4599 = vadd.f32 0.0, %v4598
      %4600 = vmatmul.f32.gmra.mxu0 %v4342
      %v4601 = vpop.f32.mrf.mxu0
      %v4602 = vadd.f32 0.0, %v4601
      %4603 = vmatmul.f32.gmra.mxu0 %v4345
      %v4604 = vpop.f32.mrf.mxu0
      %v4605 = vadd.f32 0.0, %v4604
      %4606 = vmatmul.f32.gmra.mxu0 %v4348
      %v4607 = vpop.f32.mrf.mxu0
      %v4608 = vadd.f32 0.0, %v4607
      %4609 = vmatmul.f32.gmra.mxu0 %v4351
      %v4610 = vpop.f32.mrf.mxu0
      %v4611 = vadd.f32 0.0, %v4610
      %4612 = vmatmul.f32.gmra.mxu0 %v4354
      %v4613 = vpop.f32.mrf.mxu0
      %v4614 = vadd.f32 0.0, %v4613
      %4615 = vmatmul.f32.gmra.mxu0 %v4357
      %v4616 = vpop.f32.mrf.mxu0
      %v4617 = vadd.f32 0.0, %v4616
      %4618 = vmatmul.f32.gmra.mxu0 %v4360
      %v4619 = vpop.f32.mrf.mxu0
      %v4620 = vadd.f32 0.0, %v4619
      %4621 = vmatmul.f32.gmra.mxu0 %v4363
      %v4622 = vpop.f32.mrf.mxu0
      %v4623 = vadd.f32 0.0, %v4622
      %4624 = vmatmul.f32.gmra.mxu0 %v4366
      %v4625 = vpop.f32.mrf.mxu0
      %v4626 = vadd.f32 0.0, %v4625
      %4627 = vmatmul.f32.gmra.mxu0 %v4369
      %v4628 = vpop.f32.mrf.mxu0
      %v4629 = vadd.f32 0.0, %v4628
      %4630 = vmatmul.f32.gmra.mxu0 %v4372
      %v4631 = vpop.f32.mrf.mxu0
      %v4632 = vadd.f32 0.0, %v4631
      %4633 = vmatmul.f32.gmra.mxu0 %v4375
      %v4634 = vpop.f32.mrf.mxu0
      %v4635 = vadd.f32 0.0, %v4634
      %4636 = vmatmul.f32.gmra.mxu0 %v4378
      %v4637 = vpop.f32.mrf.mxu0
      %v4638 = vadd.f32 0.0, %v4637
      %4639 = vmatmul.f32.gmra.mxu0 %v4381
      %v4640 = vpop.f32.mrf.mxu0
      %v4641 = vadd.f32 0.0, %v4640
      %4642 = vmatmul.f32.gmra.mxu0 %v4384
      %v4643 = vpop.f32.mrf.mxu0
      %v4644 = vadd.f32 0.0, %v4643
      %4645 = vmatmul.f32.gmra.mxu0 %v4387
      %v4646 = vpop.f32.mrf.mxu0
      %v4647 = vadd.f32 0.0, %v4646
      %4648 = vmatmul.f32.gmra.mxu0 %v4390
      %v4649 = vpop.f32.mrf.mxu0
      %v4650 = vadd.f32 0.0, %v4649
      %4651 = vmatmul.f32.gmra.mxu0 %v4393
      %v4652 = vpop.f32.mrf.mxu0
      %v4653 = vadd.f32 0.0, %v4652
      %4654 = vmatmul.f32.gmra.mxu0 %v4396
      %v4655 = vpop.f32.mrf.mxu0
      %v4656 = vadd.f32 0.0, %v4655
      %4657 = vmatmul.f32.gmra.mxu0 %v4399
      %v4658 = vpop.f32.mrf.mxu0
      %v4659 = vadd.f32 0.0, %v4658
      %4660 = vmatmul.f32.gmra.mxu0 %v4402
      %v4661 = vpop.f32.mrf.mxu0
      %v4662 = vadd.f32 0.0, %v4661
      %4663 = vmatmul.f32.gmra.mxu0 %v4405
      %v4664 = vpop.f32.mrf.mxu0
      %v4665 = vadd.f32 0.0, %v4664
      %4666 = vmatmul.f32.gmra.mxu0 %v4408
      %v4667 = vpop.f32.mrf.mxu0
      %v4668 = vadd.f32 0.0, %v4667
      %4669 = vdwg.mxu0
      %v4670 = vadd.f32 %v4004, %v4428
      %v4671 = vadd.f32 %v4005, %v4431
      %v4672 = vadd.f32 %v4006, %v4434
      %v4673 = vadd.f32 %v4007, %v4437
      %v4674 = vadd.f32 %v4008, %v4440
      %v4675 = vadd.f32 %v4009, %v4443
      %v4676 = vadd.f32 %v4010, %v4446
      %v4677 = vadd.f32 %v4011, %v4449
      %v4678 = vadd.f32 %v4012, %v4452
      %v4679 = vadd.f32 %v4013, %v4455
      %v4680 = vadd.f32 %v4014, %v4458
      %v4681 = vadd.f32 %v4015, %v4461
      %v4682 = vadd.f32 %v4016, %v4464
      %v4683 = vadd.f32 %v4017, %v4467
      %v4684 = vadd.f32 %v4018, %v4470
      %v4685 = vadd.f32 %v4019, %v4473
      %v4686 = vadd.f32 %v4020, %v4476
      %v4687 = vadd.f32 %v4021, %v4479
      %v4688 = vadd.f32 %v4022, %v4482
      %v4689 = vadd.f32 %v4023, %v4485
      %v4690 = vadd.f32 %v4024, %v4488
      %v4691 = vadd.f32 %v4025, %v4491
      %v4692 = vadd.f32 %v4026, %v4494
      %v4693 = vadd.f32 %v4027, %v4497
      %v4694 = vadd.f32 %v4028, %v4500
      %v4695 = vadd.f32 %v4029, %v4503
      %v4696 = vadd.f32 %v4030, %v4506
      %v4697 = vadd.f32 %v4031, %v4509
      %v4698 = vadd.f32 %v4032, %v4512
      %v4699 = vadd.f32 %v4033, %v4515
      %v4700 = vadd.f32 %v4034, %v4518
      %v4701 = vadd.f32 %v4035, %v4521
      %v4702 = vadd.f32 %v4036, %v4524
      %v4703 = vadd.f32 %v4037, %v4527
      %v4704 = vadd.f32 %v4038, %v4530
      %v4705 = vadd.f32 %v4039, %v4533
      %v4706 = vadd.f32 %v4040, %v4536
      %v4707 = vadd.f32 %v4041, %v4539
      %v4708 = vadd.f32 %v4042, %v4542
      %v4709 = vadd.f32 %v4043, %v4545
      %v4710 = vadd.f32 %v4044, %v4548
      %v4711 = vadd.f32 %v4045, %v4551
      %v4712 = vadd.f32 %v4046, %v4554
      %v4713 = vadd.f32 %v4047, %v4557
      %v4714 = vadd.f32 %v4048, %v4560
      %v4715 = vadd.f32 %v4049, %v4563
      %v4716 = vadd.f32 %v4050, %v4566
      %v4717 = vadd.f32 %v4051, %v4569
      %v4718 = vadd.f32 %v4052, %v4572
      %v4719 = vadd.f32 %v4053, %v4575
      %v4720 = vadd.f32 %v4054, %v4578
      %v4721 = vadd.f32 %v4055, %v4581
      %v4722 = vadd.f32 %v4056, %v4584
      %v4723 = vadd.f32 %v4057, %v4587
      %v4724 = vadd.f32 %v4058, %v4590
      %v4725 = vadd.f32 %v4059, %v4593
      %v4726 = vadd.f32 %v4060, %v4596
      %v4727 = vadd.f32 %v4061, %v4599
      %v4728 = vadd.f32 %v4062, %v4602
      %v4729 = vadd.f32 %v4063, %v4605
      %v4730 = vadd.f32 %v4064, %v4608
      %v4731 = vadd.f32 %v4065, %v4611
      %v4732 = vadd.f32 %v4066, %v4614
      %v4733 = vadd.f32 %v4067, %v4617
      %v4734 = vadd.f32 %v4068, %v4620
      %v4735 = vadd.f32 %v4069, %v4623
      %v4736 = vadd.f32 %v4070, %v4626
      %v4737 = vadd.f32 %v4071, %v4629
      %v4738 = vadd.f32 %v4072, %v4632
      %v4739 = vadd.f32 %v4073, %v4635
      %v4740 = vadd.f32 %v4074, %v4638
      %v4741 = vadd.f32 %v4075, %v4641
      %v4742 = vadd.f32 %v4076, %v4644
      %v4743 = vadd.f32 %v4077, %v4647
      %v4744 = vadd.f32 %v4078, %v4650
      %v4745 = vadd.f32 %v4079, %v4653
      %v4746 = vadd.f32 %v4080, %v4656
      %v4747 = vadd.f32 %v4081, %v4659
      %v4748 = vadd.f32 %v4082, %v4662
      %v4749 = vadd.f32 %v4083, %v4665
      %v4750 = vadd.f32 %v4084, %v4668
      %v4751 = vld [vmem:[%s245 + $0x25] sm:$0xff]
      %v4752 = vld [vmem:[%s245 + $0x2d] sm:$0xff]
      %v4753 = vld [vmem:[%s245 + $0x35] sm:$0xff]
      %v4754 = vld [vmem:[%s245 + $0x3d] sm:$0xff]
      %v4755 = vld [vmem:[%s245 + $0x45] sm:$0xff]
      %v4756 = vld [vmem:[%s245 + $0x4d] sm:$0xff]
      %v4757 = vld [vmem:[%s245 + $0x55] sm:$0xff]
      %v4758 = vld [vmem:[%s245 + $0x5d] sm:$0xff]
      %v4759 = vld [vmem:[%s245 + $0x65] sm:$0xff]
      %v4760 = vld [vmem:[%s245 + $0x6d] sm:$0xff]
      %v4761 = vld [vmem:[%s245 + $0x75] sm:$0xff]
      %v4762 = vld [vmem:[%s245 + $0x7d] sm:$0xff]
      %v4763 = vld [vmem:[%s245 + $0x85] sm:$0xff]
      %v4764 = vld [vmem:[%s245 + $0x8d] sm:$0xff]
      %v4765 = vld [vmem:[%s245 + $0x95] sm:$0xff]
      %v4766 = vld [vmem:[%s245 + $0x9d] sm:$0xff]
      %v4767 = vld [vmem:[%s245 + $0xa5] sm:$0xff]
      %v4768 = vld [vmem:[%s245 + $0xad] sm:$0xff]
      %v4769 = vld [vmem:[%s245 + $0xb5] sm:$0xff]
      %v4770 = vld [vmem:[%s245 + $0xbd] sm:$0xff]
      %v4771 = vld [vmem:[%s245 + $0xc5] sm:$0xff]
      %v4772 = vld [vmem:[%s245 + $0xcd] sm:$0xff]
      %v4773 = vld [vmem:[%s245 + $0xd5] sm:$0xff]
      %v4774 = vld [vmem:[%s245 + $0xdd] sm:$0xff]
      %v4775 = vld [vmem:[%s245 + $0xe5] sm:$0xff]
      %v4776 = vld [vmem:[%s245 + $0xed] sm:$0xff]
      %v4777 = vld [vmem:[%s245 + $0xf5] sm:$0xff]
      %v4778 = vld [vmem:[%s245 + $0xfd] sm:$0xff]
      %v4779 = vld [vmem:[%s245 + $0x105] sm:$0xff]
      %v4780 = vld [vmem:[%s245 + $0x10d] sm:$0xff]
      %v4781 = vld [vmem:[%s245 + $0x115] sm:$0xff]
      %v4782 = vld [vmem:[%s245 + $0x11d] sm:$0xff]
      %v4783 = vld [vmem:[%s245 + $0x125] sm:$0xff]
      %v4784 = vld [vmem:[%s245 + $0x12d] sm:$0xff]
      %v4785 = vld [vmem:[%s245 + $0x135] sm:$0xff]
      %v4786 = vld [vmem:[%s245 + $0x13d] sm:$0xff]
      %v4787 = vld [vmem:[%s245 + $0x145] sm:$0xff]
      %v4788 = vld [vmem:[%s245 + $0x14d] sm:$0xff]
      %v4789 = vld [vmem:[%s245 + $0x155] sm:$0xff]
      %v4790 = vld [vmem:[%s245 + $0x15d] sm:$0xff]
      %v4791 = vld [vmem:[%s245 + $0x165] sm:$0xff]
      %v4792 = vld [vmem:[%s245 + $0x16d] sm:$0xff]
      %v4793 = vld [vmem:[%s245 + $0x175] sm:$0xff]
      %v4794 = vld [vmem:[%s245 + $0x17d] sm:$0xff]
      %v4795 = vld [vmem:[%s245 + $0x185] sm:$0xff]
      %v4796 = vld [vmem:[%s245 + $0x18d] sm:$0xff]
      %v4797 = vld [vmem:[%s245 + $0x195] sm:$0xff]
      %v4798 = vld [vmem:[%s245 + $0x19d] sm:$0xff]
      %v4799 = vld [vmem:[%s245 + $0x1a5] sm:$0xff]
      %v4800 = vld [vmem:[%s245 + $0x1ad] sm:$0xff]
      %v4801 = vld [vmem:[%s245 + $0x1b5] sm:$0xff]
      %v4802 = vld [vmem:[%s245 + $0x1bd] sm:$0xff]
      %v4803 = vld [vmem:[%s245 + $0x1c5] sm:$0xff]
      %v4804 = vld [vmem:[%s245 + $0x1cd] sm:$0xff]
      %v4805 = vld [vmem:[%s245 + $0x1d5] sm:$0xff]
      %v4806 = vld [vmem:[%s245 + $0x1dd] sm:$0xff]
      %v4807 = vld [vmem:[%s245 + $0x1e5] sm:$0xff]
      %v4808 = vld [vmem:[%s245 + $0x1ed] sm:$0xff]
      %v4809 = vld [vmem:[%s245 + $0x1f5] sm:$0xff]
      %v4810 = vld [vmem:[%s245 + $0x1fd] sm:$0xff]
      %v4811 = vld [vmem:[%s245 + $0x205] sm:$0xff]
      %v4812 = vld [vmem:[%s245 + $0x20d] sm:$0xff]
      %v4813 = vld [vmem:[%s245 + $0x215] sm:$0xff]
      %v4814 = vld [vmem:[%s245 + $0x21d] sm:$0xff]
      %v4815 = vld [vmem:[%s245 + $0x225] sm:$0xff]
      %v4816 = vld [vmem:[%s245 + $0x22d] sm:$0xff]
      %v4817 = vld [vmem:[%s245 + $0x235] sm:$0xff]
      %v4818 = vld [vmem:[%s245 + $0x23d] sm:$0xff]
      %v4819 = vld [vmem:[%s245 + $0x245] sm:$0xff]
      %v4820 = vld [vmem:[%s245 + $0x24d] sm:$0xff]
      %v4821 = vld [vmem:[%s245 + $0x255] sm:$0xff]
      %v4822 = vld [vmem:[%s245 + $0x25d] sm:$0xff]
      %v4823 = vld [vmem:[%s245 + $0x265] sm:$0xff]
      %v4824 = vld [vmem:[%s245 + $0x26d] sm:$0xff]
      %v4825 = vld [vmem:[%s245 + $0x275] sm:$0xff]
      %v4826 = vld [vmem:[%s245 + $0x27d] sm:$0xff]
      %v4827 = vld [vmem:[%s245 + $0x285] sm:$0xff]
      %v4828 = vld [vmem:[%s245 + $0x28d] sm:$0xff]
      %v4829 = vld [vmem:[%s245 + $0x295] sm:$0xff]
      %v4830 = vld [vmem:[%s245 + $0x29d] sm:$0xff]
      %v4831 = vld [vmem:[%s245 + $0x2a5] sm:$0xff]
      %v4832 = vld [vmem:[%s2 + $0x38] sm:$0xff]
      %v4834 = vsel %vm414, %v4751, 0
      %v4837 = vsel %vm414, %v4752, 0
      %v4840 = vsel %vm414, %v4753, 0
      %v4843 = vsel %vm414, %v4754, 0
      %v4846 = vsel %vm414, %v4755, 0
      %v4849 = vsel %vm414, %v4756, 0
      %v4852 = vsel %vm414, %v4757, 0
      %v4855 = vsel %vm414, %v4758, 0
      %v4858 = vsel %vm414, %v4759, 0
      %v4861 = vsel %vm414, %v4760, 0
      %v4864 = vsel %vm414, %v4761, 0
      %v4867 = vsel %vm414, %v4762, 0
      %v4870 = vsel %vm414, %v4763, 0
      %v4873 = vsel %vm414, %v4764, 0
      %v4876 = vsel %vm414, %v4765, 0
      %v4879 = vsel %vm414, %v4766, 0
      %v4882 = vsel %vm414, %v4767, 0
      %v4885 = vsel %vm414, %v4768, 0
      %v4888 = vsel %vm414, %v4769, 0
      %v4891 = vsel %vm414, %v4770, 0
      %v4894 = vsel %vm414, %v4771, 0
      %v4897 = vsel %vm414, %v4772, 0
      %v4900 = vsel %vm414, %v4773, 0
      %v4903 = vsel %vm414, %v4774, 0
      %v4906 = vsel %vm414, %v4775, 0
      %v4909 = vsel %vm414, %v4776, 0
      %v4912 = vsel %vm414, %v4777, 0
      %v4915 = vsel %vm414, %v4778, 0
      %v4918 = vsel %vm414, %v4779, 0
      %v4921 = vsel %vm414, %v4780, 0
      %v4924 = vsel %vm414, %v4781, 0
      %v4927 = vsel %vm414, %v4782, 0
      %v4930 = vsel %vm414, %v4783, 0
      %v4933 = vsel %vm414, %v4784, 0
      %v4936 = vsel %vm414, %v4785, 0
      %v4939 = vsel %vm414, %v4786, 0
      %v4942 = vsel %vm414, %v4787, 0
      %v4945 = vsel %vm414, %v4788, 0
      %v4948 = vsel %vm414, %v4789, 0
      %v4951 = vsel %vm414, %v4790, 0
      %v4954 = vsel %vm414, %v4791, 0
      %v4957 = vsel %vm414, %v4792, 0
      %v4960 = vsel %vm414, %v4793, 0
      %v4963 = vsel %vm414, %v4794, 0
      %v4966 = vsel %vm414, %v4795, 0
      %v4969 = vsel %vm414, %v4796, 0
      %v4972 = vsel %vm414, %v4797, 0
      %v4975 = vsel %vm414, %v4798, 0
      %v4978 = vsel %vm414, %v4799, 0
      %v4981 = vsel %vm414, %v4800, 0
      %v4984 = vsel %vm414, %v4801, 0
      %v4987 = vsel %vm414, %v4802, 0
      %v4990 = vsel %vm414, %v4803, 0
      %v4993 = vsel %vm414, %v4804, 0
      %v4996 = vsel %vm414, %v4805, 0
      %v4999 = vsel %vm414, %v4806, 0
      %v5002 = vsel %vm414, %v4807, 0
      %v5005 = vsel %vm414, %v4808, 0
      %v5008 = vsel %vm414, %v4809, 0
      %v5011 = vsel %vm414, %v4810, 0
      %v5014 = vsel %vm414, %v4811, 0
      %v5017 = vsel %vm414, %v4812, 0
      %v5020 = vsel %vm414, %v4813, 0
      %v5023 = vsel %vm414, %v4814, 0
      %v5026 = vsel %vm414, %v4815, 0
      %v5029 = vsel %vm414, %v4816, 0
      %v5032 = vsel %vm414, %v4817, 0
      %v5035 = vsel %vm414, %v4818, 0
      %v5038 = vsel %vm414, %v4819, 0
      %v5041 = vsel %vm414, %v4820, 0
      %v5044 = vsel %vm414, %v4821, 0
      %v5047 = vsel %vm414, %v4822, 0
      %v5050 = vsel %vm414, %v4823, 0
      %v5053 = vsel %vm414, %v4824, 0
      %v5056 = vsel %vm414, %v4825, 0
      %v5059 = vsel %vm414, %v4826, 0
      %v5062 = vsel %vm414, %v4827, 0
      %v5065 = vsel %vm414, %v4828, 0
      %v5068 = vsel %vm414, %v4829, 0
      %v5071 = vsel %vm414, %v4830, 0
      %v5074 = vsel %vm414, %v4831, 0
      %5076 = vmatpush.msra.mxu0 0.0
      %5077 = vmatpush.msra.mxu0 0.0
      %5078 = vmatpush.msra.mxu0 0.0
      %5079 = vmatpush.msra.mxu0 0.0
      %5080 = vmatpush.msra.mxu0 0.0
      %5081 = vmatpush.msra.mxu0 0.0
      %5082 = vmatpush.msra.mxu0 0.0
      %5083 = vmatpush.msra.mxu0 0.0
      %5084 = vmatpush.msra.mxu0 0.0
      %5085 = vmatpush.msra.mxu0 0.0
      %5086 = vmatpush.msra.mxu0 0.0
      %5087 = vmatpush.msra.mxu0 0.0
      %5088 = vmatpush.msra.mxu0 0.0
      %5089 = vmatpush.msra.mxu0 0.0
      %5090 = vmatpush.msra.mxu0 0.0
      %5091 = vmatpush.msra.mxu0 %v4832
      %5092 = vmatmul.f32.gmra.mxu0 %v4834
      %v5093 = vpop.f32.mrf.mxu0
      %v5094 = vadd.f32 0.0, %v5093
      %5095 = vmatmul.f32.gmra.mxu0 %v4837
      %v5096 = vpop.f32.mrf.mxu0
      %v5097 = vadd.f32 0.0, %v5096
      %5098 = vmatmul.f32.gmra.mxu0 %v4840
      %v5099 = vpop.f32.mrf.mxu0
      %v5100 = vadd.f32 0.0, %v5099
      %5101 = vmatmul.f32.gmra.mxu0 %v4843
      %v5102 = vpop.f32.mrf.mxu0
      %v5103 = vadd.f32 0.0, %v5102
      %5104 = vmatmul.f32.gmra.mxu0 %v4846
      %v5105 = vpop.f32.mrf.mxu0
      %v5106 = vadd.f32 0.0, %v5105
      %5107 = vmatmul.f32.gmra.mxu0 %v4849
      %v5108 = vpop.f32.mrf.mxu0
      %v5109 = vadd.f32 0.0, %v5108
      %5110 = vmatmul.f32.gmra.mxu0 %v4852
      %v5111 = vpop.f32.mrf.mxu0
      %v5112 = vadd.f32 0.0, %v5111
      %5113 = vmatmul.f32.gmra.mxu0 %v4855
      %v5114 = vpop.f32.mrf.mxu0
      %v5115 = vadd.f32 0.0, %v5114
      %5116 = vmatmul.f32.gmra.mxu0 %v4858
      %v5117 = vpop.f32.mrf.mxu0
      %v5118 = vadd.f32 0.0, %v5117
      %5119 = vmatmul.f32.gmra.mxu0 %v4861
      %v5120 = vpop.f32.mrf.mxu0
      %v5121 = vadd.f32 0.0, %v5120
      %5122 = vmatmul.f32.gmra.mxu0 %v4864
      %v5123 = vpop.f32.mrf.mxu0
      %v5124 = vadd.f32 0.0, %v5123
      %5125 = vmatmul.f32.gmra.mxu0 %v4867
      %v5126 = vpop.f32.mrf.mxu0
      %v5127 = vadd.f32 0.0, %v5126
      %5128 = vmatmul.f32.gmra.mxu0 %v4870
      %v5129 = vpop.f32.mrf.mxu0
      %v5130 = vadd.f32 0.0, %v5129
      %5131 = vmatmul.f32.gmra.mxu0 %v4873
      %v5132 = vpop.f32.mrf.mxu0
      %v5133 = vadd.f32 0.0, %v5132
      %5134 = vmatmul.f32.gmra.mxu0 %v4876
      %v5135 = vpop.f32.mrf.mxu0
      %v5136 = vadd.f32 0.0, %v5135
      %5137 = vmatmul.f32.gmra.mxu0 %v4879
      %v5138 = vpop.f32.mrf.mxu0
      %v5139 = vadd.f32 0.0, %v5138
      %5140 = vmatmul.f32.gmra.mxu0 %v4882
      %v5141 = vpop.f32.mrf.mxu0
      %v5142 = vadd.f32 0.0, %v5141
      %5143 = vmatmul.f32.gmra.mxu0 %v4885
      %v5144 = vpop.f32.mrf.mxu0
      %v5145 = vadd.f32 0.0, %v5144
      %5146 = vmatmul.f32.gmra.mxu0 %v4888
      %v5147 = vpop.f32.mrf.mxu0
      %v5148 = vadd.f32 0.0, %v5147
      %5149 = vmatmul.f32.gmra.mxu0 %v4891
      %v5150 = vpop.f32.mrf.mxu0
      %v5151 = vadd.f32 0.0, %v5150
      %5152 = vmatmul.f32.gmra.mxu0 %v4894
      %v5153 = vpop.f32.mrf.mxu0
      %v5154 = vadd.f32 0.0, %v5153
      %5155 = vmatmul.f32.gmra.mxu0 %v4897
      %v5156 = vpop.f32.mrf.mxu0
      %v5157 = vadd.f32 0.0, %v5156
      %5158 = vmatmul.f32.gmra.mxu0 %v4900
      %v5159 = vpop.f32.mrf.mxu0
      %v5160 = vadd.f32 0.0, %v5159
      %5161 = vmatmul.f32.gmra.mxu0 %v4903
      %v5162 = vpop.f32.mrf.mxu0
      %v5163 = vadd.f32 0.0, %v5162
      %5164 = vmatmul.f32.gmra.mxu0 %v4906
      %v5165 = vpop.f32.mrf.mxu0
      %v5166 = vadd.f32 0.0, %v5165
      %5167 = vmatmul.f32.gmra.mxu0 %v4909
      %v5168 = vpop.f32.mrf.mxu0
      %v5169 = vadd.f32 0.0, %v5168
      %5170 = vmatmul.f32.gmra.mxu0 %v4912
      %v5171 = vpop.f32.mrf.mxu0
      %v5172 = vadd.f32 0.0, %v5171
      %5173 = vmatmul.f32.gmra.mxu0 %v4915
      %v5174 = vpop.f32.mrf.mxu0
      %v5175 = vadd.f32 0.0, %v5174
      %5176 = vmatmul.f32.gmra.mxu0 %v4918
      %v5177 = vpop.f32.mrf.mxu0
      %v5178 = vadd.f32 0.0, %v5177
      %5179 = vmatmul.f32.gmra.mxu0 %v4921
      %v5180 = vpop.f32.mrf.mxu0
      %v5181 = vadd.f32 0.0, %v5180
      %5182 = vmatmul.f32.gmra.mxu0 %v4924
      %v5183 = vpop.f32.mrf.mxu0
      %v5184 = vadd.f32 0.0, %v5183
      %5185 = vmatmul.f32.gmra.mxu0 %v4927
      %v5186 = vpop.f32.mrf.mxu0
      %v5187 = vadd.f32 0.0, %v5186
      %5188 = vmatmul.f32.gmra.mxu0 %v4930
      %v5189 = vpop.f32.mrf.mxu0
      %v5190 = vadd.f32 0.0, %v5189
      %5191 = vmatmul.f32.gmra.mxu0 %v4933
      %v5192 = vpop.f32.mrf.mxu0
      %v5193 = vadd.f32 0.0, %v5192
      %5194 = vmatmul.f32.gmra.mxu0 %v4936
      %v5195 = vpop.f32.mrf.mxu0
      %v5196 = vadd.f32 0.0, %v5195
      %5197 = vmatmul.f32.gmra.mxu0 %v4939
      %v5198 = vpop.f32.mrf.mxu0
      %v5199 = vadd.f32 0.0, %v5198
      %5200 = vmatmul.f32.gmra.mxu0 %v4942
      %v5201 = vpop.f32.mrf.mxu0
      %v5202 = vadd.f32 0.0, %v5201
      %5203 = vmatmul.f32.gmra.mxu0 %v4945
      %v5204 = vpop.f32.mrf.mxu0
      %v5205 = vadd.f32 0.0, %v5204
      %5206 = vmatmul.f32.gmra.mxu0 %v4948
      %v5207 = vpop.f32.mrf.mxu0
      %v5208 = vadd.f32 0.0, %v5207
      %5209 = vmatmul.f32.gmra.mxu0 %v4951
      %v5210 = vpop.f32.mrf.mxu0
      %v5211 = vadd.f32 0.0, %v5210
      %5212 = vmatmul.f32.gmra.mxu0 %v4954
      %v5213 = vpop.f32.mrf.mxu0
      %v5214 = vadd.f32 0.0, %v5213
      %5215 = vmatmul.f32.gmra.mxu0 %v4957
      %v5216 = vpop.f32.mrf.mxu0
      %v5217 = vadd.f32 0.0, %v5216
      %5218 = vmatmul.f32.gmra.mxu0 %v4960
      %v5219 = vpop.f32.mrf.mxu0
      %v5220 = vadd.f32 0.0, %v5219
      %5221 = vmatmul.f32.gmra.mxu0 %v4963
      %v5222 = vpop.f32.mrf.mxu0
      %v5223 = vadd.f32 0.0, %v5222
      %5224 = vmatmul.f32.gmra.mxu0 %v4966
      %v5225 = vpop.f32.mrf.mxu0
      %v5226 = vadd.f32 0.0, %v5225
      %5227 = vmatmul.f32.gmra.mxu0 %v4969
      %v5228 = vpop.f32.mrf.mxu0
      %v5229 = vadd.f32 0.0, %v5228
      %5230 = vmatmul.f32.gmra.mxu0 %v4972
      %v5231 = vpop.f32.mrf.mxu0
      %v5232 = vadd.f32 0.0, %v5231
      %5233 = vmatmul.f32.gmra.mxu0 %v4975
      %v5234 = vpop.f32.mrf.mxu0
      %v5235 = vadd.f32 0.0, %v5234
      %5236 = vmatmul.f32.gmra.mxu0 %v4978
      %v5237 = vpop.f32.mrf.mxu0
      %v5238 = vadd.f32 0.0, %v5237
      %5239 = vmatmul.f32.gmra.mxu0 %v4981
      %v5240 = vpop.f32.mrf.mxu0
      %v5241 = vadd.f32 0.0, %v5240
      %5242 = vmatmul.f32.gmra.mxu0 %v4984
      %v5243 = vpop.f32.mrf.mxu0
      %v5244 = vadd.f32 0.0, %v5243
      %5245 = vmatmul.f32.gmra.mxu0 %v4987
      %v5246 = vpop.f32.mrf.mxu0
      %v5247 = vadd.f32 0.0, %v5246
      %5248 = vmatmul.f32.gmra.mxu0 %v4990
      %v5249 = vpop.f32.mrf.mxu0
      %v5250 = vadd.f32 0.0, %v5249
      %5251 = vmatmul.f32.gmra.mxu0 %v4993
      %v5252 = vpop.f32.mrf.mxu0
      %v5253 = vadd.f32 0.0, %v5252
      %5254 = vmatmul.f32.gmra.mxu0 %v4996
      %v5255 = vpop.f32.mrf.mxu0
      %v5256 = vadd.f32 0.0, %v5255
      %5257 = vmatmul.f32.gmra.mxu0 %v4999
      %v5258 = vpop.f32.mrf.mxu0
      %v5259 = vadd.f32 0.0, %v5258
      %5260 = vmatmul.f32.gmra.mxu0 %v5002
      %v5261 = vpop.f32.mrf.mxu0
      %v5262 = vadd.f32 0.0, %v5261
      %5263 = vmatmul.f32.gmra.mxu0 %v5005
      %v5264 = vpop.f32.mrf.mxu0
      %v5265 = vadd.f32 0.0, %v5264
      %5266 = vmatmul.f32.gmra.mxu0 %v5008
      %v5267 = vpop.f32.mrf.mxu0
      %v5268 = vadd.f32 0.0, %v5267
      %5269 = vmatmul.f32.gmra.mxu0 %v5011
      %v5270 = vpop.f32.mrf.mxu0
      %v5271 = vadd.f32 0.0, %v5270
      %5272 = vmatmul.f32.gmra.mxu0 %v5014
      %v5273 = vpop.f32.mrf.mxu0
      %v5274 = vadd.f32 0.0, %v5273
      %5275 = vmatmul.f32.gmra.mxu0 %v5017
      %v5276 = vpop.f32.mrf.mxu0
      %v5277 = vadd.f32 0.0, %v5276
      %5278 = vmatmul.f32.gmra.mxu0 %v5020
      %v5279 = vpop.f32.mrf.mxu0
      %v5280 = vadd.f32 0.0, %v5279
      %5281 = vmatmul.f32.gmra.mxu0 %v5023
      %v5282 = vpop.f32.mrf.mxu0
      %v5283 = vadd.f32 0.0, %v5282
      %5284 = vmatmul.f32.gmra.mxu0 %v5026
      %v5285 = vpop.f32.mrf.mxu0
      %v5286 = vadd.f32 0.0, %v5285
      %5287 = vmatmul.f32.gmra.mxu0 %v5029
      %v5288 = vpop.f32.mrf.mxu0
      %v5289 = vadd.f32 0.0, %v5288
      %5290 = vmatmul.f32.gmra.mxu0 %v5032
      %v5291 = vpop.f32.mrf.mxu0
      %v5292 = vadd.f32 0.0, %v5291
      %5293 = vmatmul.f32.gmra.mxu0 %v5035
      %v5294 = vpop.f32.mrf.mxu0
      %v5295 = vadd.f32 0.0, %v5294
      %5296 = vmatmul.f32.gmra.mxu0 %v5038
      %v5297 = vpop.f32.mrf.mxu0
      %v5298 = vadd.f32 0.0, %v5297
      %5299 = vmatmul.f32.gmra.mxu0 %v5041
      %v5300 = vpop.f32.mrf.mxu0
      %v5301 = vadd.f32 0.0, %v5300
      %5302 = vmatmul.f32.gmra.mxu0 %v5044
      %v5303 = vpop.f32.mrf.mxu0
      %v5304 = vadd.f32 0.0, %v5303
      %5305 = vmatmul.f32.gmra.mxu0 %v5047
      %v5306 = vpop.f32.mrf.mxu0
      %v5307 = vadd.f32 0.0, %v5306
      %5308 = vmatmul.f32.gmra.mxu0 %v5050
      %v5309 = vpop.f32.mrf.mxu0
      %v5310 = vadd.f32 0.0, %v5309
      %5311 = vmatmul.f32.gmra.mxu0 %v5053
      %v5312 = vpop.f32.mrf.mxu0
      %v5313 = vadd.f32 0.0, %v5312
      %5314 = vmatmul.f32.gmra.mxu0 %v5056
      %v5315 = vpop.f32.mrf.mxu0
      %v5316 = vadd.f32 0.0, %v5315
      %5317 = vmatmul.f32.gmra.mxu0 %v5059
      %v5318 = vpop.f32.mrf.mxu0
      %v5319 = vadd.f32 0.0, %v5318
      %5320 = vmatmul.f32.gmra.mxu0 %v5062
      %v5321 = vpop.f32.mrf.mxu0
      %v5322 = vadd.f32 0.0, %v5321
      %5323 = vmatmul.f32.gmra.mxu0 %v5065
      %v5324 = vpop.f32.mrf.mxu0
      %v5325 = vadd.f32 0.0, %v5324
      %5326 = vmatmul.f32.gmra.mxu0 %v5068
      %v5327 = vpop.f32.mrf.mxu0
      %v5328 = vadd.f32 0.0, %v5327
      %5329 = vmatmul.f32.gmra.mxu0 %v5071
      %v5330 = vpop.f32.mrf.mxu0
      %v5331 = vadd.f32 0.0, %v5330
      %5332 = vmatmul.f32.gmra.mxu0 %v5074
      %v5333 = vpop.f32.mrf.mxu0
      %v5334 = vadd.f32 0.0, %v5333
      %5335 = vdwg.mxu0
      %v5336 = vadd.f32 %v4670, %v5094
      %v5337 = vadd.f32 %v4671, %v5097
      %v5338 = vadd.f32 %v4672, %v5100
      %v5339 = vadd.f32 %v4673, %v5103
      %v5340 = vadd.f32 %v4674, %v5106
      %v5341 = vadd.f32 %v4675, %v5109
      %v5342 = vadd.f32 %v4676, %v5112
      %v5343 = vadd.f32 %v4677, %v5115
      %v5344 = vadd.f32 %v4678, %v5118
      %v5345 = vadd.f32 %v4679, %v5121
      %v5346 = vadd.f32 %v4680, %v5124
      %v5347 = vadd.f32 %v4681, %v5127
      %v5348 = vadd.f32 %v4682, %v5130
      %v5349 = vadd.f32 %v4683, %v5133
      %v5350 = vadd.f32 %v4684, %v5136
      %v5351 = vadd.f32 %v4685, %v5139
      %v5352 = vadd.f32 %v4686, %v5142
      %v5353 = vadd.f32 %v4687, %v5145
      %v5354 = vadd.f32 %v4688, %v5148
      %v5355 = vadd.f32 %v4689, %v5151
      %v5356 = vadd.f32 %v4690, %v5154
      %v5357 = vadd.f32 %v4691, %v5157
      %v5358 = vadd.f32 %v4692, %v5160
      %v5359 = vadd.f32 %v4693, %v5163
      %v5360 = vadd.f32 %v4694, %v5166
      %v5361 = vadd.f32 %v4695, %v5169
      %v5362 = vadd.f32 %v4696, %v5172
      %v5363 = vadd.f32 %v4697, %v5175
      %v5364 = vadd.f32 %v4698, %v5178
      %v5365 = vadd.f32 %v4699, %v5181
      %v5366 = vadd.f32 %v4700, %v5184
      %v5367 = vadd.f32 %v4701, %v5187
      %v5368 = vadd.f32 %v4702, %v5190
      %v5369 = vadd.f32 %v4703, %v5193
      %v5370 = vadd.f32 %v4704, %v5196
      %v5371 = vadd.f32 %v4705, %v5199
      %v5372 = vadd.f32 %v4706, %v5202
      %v5373 = vadd.f32 %v4707, %v5205
      %v5374 = vadd.f32 %v4708, %v5208
      %v5375 = vadd.f32 %v4709, %v5211
      %v5376 = vadd.f32 %v4710, %v5214
      %v5377 = vadd.f32 %v4711, %v5217
      %v5378 = vadd.f32 %v4712, %v5220
      %v5379 = vadd.f32 %v4713, %v5223
      %v5380 = vadd.f32 %v4714, %v5226
      %v5381 = vadd.f32 %v4715, %v5229
      %v5382 = vadd.f32 %v4716, %v5232
      %v5383 = vadd.f32 %v4717, %v5235
      %v5384 = vadd.f32 %v4718, %v5238
      %v5385 = vadd.f32 %v4719, %v5241
      %v5386 = vadd.f32 %v4720, %v5244
      %v5387 = vadd.f32 %v4721, %v5247
      %v5388 = vadd.f32 %v4722, %v5250
      %v5389 = vadd.f32 %v4723, %v5253
      %v5390 = vadd.f32 %v4724, %v5256
      %v5391 = vadd.f32 %v4725, %v5259
      %v5392 = vadd.f32 %v4726, %v5262
      %v5393 = vadd.f32 %v4727, %v5265
      %v5394 = vadd.f32 %v4728, %v5268
      %v5395 = vadd.f32 %v4729, %v5271
      %v5396 = vadd.f32 %v4730, %v5274
      %v5397 = vadd.f32 %v4731, %v5277
      %v5398 = vadd.f32 %v4732, %v5280
      %v5399 = vadd.f32 %v4733, %v5283
      %v5400 = vadd.f32 %v4734, %v5286
      %v5401 = vadd.f32 %v4735, %v5289
      %v5402 = vadd.f32 %v4736, %v5292
      %v5403 = vadd.f32 %v4737, %v5295
      %v5404 = vadd.f32 %v4738, %v5298
      %v5405 = vadd.f32 %v4739, %v5301
      %v5406 = vadd.f32 %v4740, %v5304
      %v5407 = vadd.f32 %v4741, %v5307
      %v5408 = vadd.f32 %v4742, %v5310
      %v5409 = vadd.f32 %v4743, %v5313
      %v5410 = vadd.f32 %v4744, %v5316
      %v5411 = vadd.f32 %v4745, %v5319
      %v5412 = vadd.f32 %v4746, %v5322
      %v5413 = vadd.f32 %v4747, %v5325
      %v5414 = vadd.f32 %v4748, %v5328
      %v5415 = vadd.f32 %v4749, %v5331
      %v5416 = vadd.f32 %v4750, %v5334
      %v5417 = vld [vmem:[%s245 + $0x26] sm:$0xff]
      %v5418 = vld [vmem:[%s245 + $0x2e] sm:$0xff]
      %v5419 = vld [vmem:[%s245 + $0x36] sm:$0xff]
      %v5420 = vld [vmem:[%s245 + $0x3e] sm:$0xff]
      %v5421 = vld [vmem:[%s245 + $0x46] sm:$0xff]
      %v5422 = vld [vmem:[%s245 + $0x4e] sm:$0xff]
      %v5423 = vld [vmem:[%s245 + $0x56] sm:$0xff]
      %v5424 = vld [vmem:[%s245 + $0x5e] sm:$0xff]
      %v5425 = vld [vmem:[%s245 + $0x66] sm:$0xff]
      %v5426 = vld [vmem:[%s245 + $0x6e] sm:$0xff]
      %v5427 = vld [vmem:[%s245 + $0x76] sm:$0xff]
      %v5428 = vld [vmem:[%s245 + $0x7e] sm:$0xff]
      %v5429 = vld [vmem:[%s245 + $0x86] sm:$0xff]
      %v5430 = vld [vmem:[%s245 + $0x8e] sm:$0xff]
      %v5431 = vld [vmem:[%s245 + $0x96] sm:$0xff]
      %v5432 = vld [vmem:[%s245 + $0x9e] sm:$0xff]
      %v5433 = vld [vmem:[%s245 + $0xa6] sm:$0xff]
      %v5434 = vld [vmem:[%s245 + $0xae] sm:$0xff]
      %v5435 = vld [vmem:[%s245 + $0xb6] sm:$0xff]
      %v5436 = vld [vmem:[%s245 + $0xbe] sm:$0xff]
      %v5437 = vld [vmem:[%s245 + $0xc6] sm:$0xff]
      %v5438 = vld [vmem:[%s245 + $0xce] sm:$0xff]
      %v5439 = vld [vmem:[%s245 + $0xd6] sm:$0xff]
      %v5440 = vld [vmem:[%s245 + $0xde] sm:$0xff]
      %v5441 = vld [vmem:[%s245 + $0xe6] sm:$0xff]
      %v5442 = vld [vmem:[%s245 + $0xee] sm:$0xff]
      %v5443 = vld [vmem:[%s245 + $0xf6] sm:$0xff]
      %v5444 = vld [vmem:[%s245 + $0xfe] sm:$0xff]
      %v5445 = vld [vmem:[%s245 + $0x106] sm:$0xff]
      %v5446 = vld [vmem:[%s245 + $0x10e] sm:$0xff]
      %v5447 = vld [vmem:[%s245 + $0x116] sm:$0xff]
      %v5448 = vld [vmem:[%s245 + $0x11e] sm:$0xff]
      %v5449 = vld [vmem:[%s245 + $0x126] sm:$0xff]
      %v5450 = vld [vmem:[%s245 + $0x12e] sm:$0xff]
      %v5451 = vld [vmem:[%s245 + $0x136] sm:$0xff]
      %v5452 = vld [vmem:[%s245 + $0x13e] sm:$0xff]
      %v5453 = vld [vmem:[%s245 + $0x146] sm:$0xff]
      %v5454 = vld [vmem:[%s245 + $0x14e] sm:$0xff]
      %v5455 = vld [vmem:[%s245 + $0x156] sm:$0xff]
      %v5456 = vld [vmem:[%s245 + $0x15e] sm:$0xff]
      %v5457 = vld [vmem:[%s245 + $0x166] sm:$0xff]
      %v5458 = vld [vmem:[%s245 + $0x16e] sm:$0xff]
      %v5459 = vld [vmem:[%s245 + $0x176] sm:$0xff]
      %v5460 = vld [vmem:[%s245 + $0x17e] sm:$0xff]
      %v5461 = vld [vmem:[%s245 + $0x186] sm:$0xff]
      %v5462 = vld [vmem:[%s245 + $0x18e] sm:$0xff]
      %v5463 = vld [vmem:[%s245 + $0x196] sm:$0xff]
      %v5464 = vld [vmem:[%s245 + $0x19e] sm:$0xff]
      %v5465 = vld [vmem:[%s245 + $0x1a6] sm:$0xff]
      %v5466 = vld [vmem:[%s245 + $0x1ae] sm:$0xff]
      %v5467 = vld [vmem:[%s245 + $0x1b6] sm:$0xff]
      %v5468 = vld [vmem:[%s245 + $0x1be] sm:$0xff]
      %v5469 = vld [vmem:[%s245 + $0x1c6] sm:$0xff]
      %v5470 = vld [vmem:[%s245 + $0x1ce] sm:$0xff]
      %v5471 = vld [vmem:[%s245 + $0x1d6] sm:$0xff]
      %v5472 = vld [vmem:[%s245 + $0x1de] sm:$0xff]
      %v5473 = vld [vmem:[%s245 + $0x1e6] sm:$0xff]
      %v5474 = vld [vmem:[%s245 + $0x1ee] sm:$0xff]
      %v5475 = vld [vmem:[%s245 + $0x1f6] sm:$0xff]
      %v5476 = vld [vmem:[%s245 + $0x1fe] sm:$0xff]
      %v5477 = vld [vmem:[%s245 + $0x206] sm:$0xff]
      %v5478 = vld [vmem:[%s245 + $0x20e] sm:$0xff]
      %v5479 = vld [vmem:[%s245 + $0x216] sm:$0xff]
      %v5480 = vld [vmem:[%s245 + $0x21e] sm:$0xff]
      %v5481 = vld [vmem:[%s245 + $0x226] sm:$0xff]
      %v5482 = vld [vmem:[%s245 + $0x22e] sm:$0xff]
      %v5483 = vld [vmem:[%s245 + $0x236] sm:$0xff]
      %v5484 = vld [vmem:[%s245 + $0x23e] sm:$0xff]
      %v5485 = vld [vmem:[%s245 + $0x246] sm:$0xff]
      %v5486 = vld [vmem:[%s245 + $0x24e] sm:$0xff]
      %v5487 = vld [vmem:[%s245 + $0x256] sm:$0xff]
      %v5488 = vld [vmem:[%s245 + $0x25e] sm:$0xff]
      %v5489 = vld [vmem:[%s245 + $0x266] sm:$0xff]
      %v5490 = vld [vmem:[%s245 + $0x26e] sm:$0xff]
      %v5491 = vld [vmem:[%s245 + $0x276] sm:$0xff]
      %v5492 = vld [vmem:[%s245 + $0x27e] sm:$0xff]
      %v5493 = vld [vmem:[%s245 + $0x286] sm:$0xff]
      %v5494 = vld [vmem:[%s245 + $0x28e] sm:$0xff]
      %v5495 = vld [vmem:[%s245 + $0x296] sm:$0xff]
      %v5496 = vld [vmem:[%s245 + $0x29e] sm:$0xff]
      %v5497 = vld [vmem:[%s245 + $0x2a6] sm:$0xff]
      %v5498 = vld [vmem:[%s2 + $0x40] sm:$0xff]
      %v5500 = vsel %vm414, %v5417, 0
      %v5503 = vsel %vm414, %v5418, 0
      %v5506 = vsel %vm414, %v5419, 0
      %v5509 = vsel %vm414, %v5420, 0
      %v5512 = vsel %vm414, %v5421, 0
      %v5515 = vsel %vm414, %v5422, 0
      %v5518 = vsel %vm414, %v5423, 0
      %v5521 = vsel %vm414, %v5424, 0
      %v5524 = vsel %vm414, %v5425, 0
      %v5527 = vsel %vm414, %v5426, 0
      %v5530 = vsel %vm414, %v5427, 0
      %v5533 = vsel %vm414, %v5428, 0
      %v5536 = vsel %vm414, %v5429, 0
      %v5539 = vsel %vm414, %v5430, 0
      %v5542 = vsel %vm414, %v5431, 0
      %v5545 = vsel %vm414, %v5432, 0
      %v5548 = vsel %vm414, %v5433, 0
      %v5551 = vsel %vm414, %v5434, 0
      %v5554 = vsel %vm414, %v5435, 0
      %v5557 = vsel %vm414, %v5436, 0
      %v5560 = vsel %vm414, %v5437, 0
      %v5563 = vsel %vm414, %v5438, 0
      %v5566 = vsel %vm414, %v5439, 0
      %v5569 = vsel %vm414, %v5440, 0
      %v5572 = vsel %vm414, %v5441, 0
      %v5575 = vsel %vm414, %v5442, 0
      %v5578 = vsel %vm414, %v5443, 0
      %v5581 = vsel %vm414, %v5444, 0
      %v5584 = vsel %vm414, %v5445, 0
      %v5587 = vsel %vm414, %v5446, 0
      %v5590 = vsel %vm414, %v5447, 0
      %v5593 = vsel %vm414, %v5448, 0
      %v5596 = vsel %vm414, %v5449, 0
      %v5599 = vsel %vm414, %v5450, 0
      %v5602 = vsel %vm414, %v5451, 0
      %v5605 = vsel %vm414, %v5452, 0
      %v5608 = vsel %vm414, %v5453, 0
      %v5611 = vsel %vm414, %v5454, 0
      %v5614 = vsel %vm414, %v5455, 0
      %v5617 = vsel %vm414, %v5456, 0
      %v5620 = vsel %vm414, %v5457, 0
      %v5623 = vsel %vm414, %v5458, 0
      %v5626 = vsel %vm414, %v5459, 0
      %v5629 = vsel %vm414, %v5460, 0
      %v5632 = vsel %vm414, %v5461, 0
      %v5635 = vsel %vm414, %v5462, 0
      %v5638 = vsel %vm414, %v5463, 0
      %v5641 = vsel %vm414, %v5464, 0
      %v5644 = vsel %vm414, %v5465, 0
      %v5647 = vsel %vm414, %v5466, 0
      %v5650 = vsel %vm414, %v5467, 0
      %v5653 = vsel %vm414, %v5468, 0
      %v5656 = vsel %vm414, %v5469, 0
      %v5659 = vsel %vm414, %v5470, 0
      %v5662 = vsel %vm414, %v5471, 0
      %v5665 = vsel %vm414, %v5472, 0
      %v5668 = vsel %vm414, %v5473, 0
      %v5671 = vsel %vm414, %v5474, 0
      %v5674 = vsel %vm414, %v5475, 0
      %v5677 = vsel %vm414, %v5476, 0
      %v5680 = vsel %vm414, %v5477, 0
      %v5683 = vsel %vm414, %v5478, 0
      %v5686 = vsel %vm414, %v5479, 0
      %v5689 = vsel %vm414, %v5480, 0
      %v5692 = vsel %vm414, %v5481, 0
      %v5695 = vsel %vm414, %v5482, 0
      %v5698 = vsel %vm414, %v5483, 0
      %v5701 = vsel %vm414, %v5484, 0
      %v5704 = vsel %vm414, %v5485, 0
      %v5707 = vsel %vm414, %v5486, 0
      %v5710 = vsel %vm414, %v5487, 0
      %v5713 = vsel %vm414, %v5488, 0
      %v5716 = vsel %vm414, %v5489, 0
      %v5719 = vsel %vm414, %v5490, 0
      %v5722 = vsel %vm414, %v5491, 0
      %v5725 = vsel %vm414, %v5492, 0
      %v5728 = vsel %vm414, %v5493, 0
      %v5731 = vsel %vm414, %v5494, 0
      %v5734 = vsel %vm414, %v5495, 0
      %v5737 = vsel %vm414, %v5496, 0
      %v5740 = vsel %vm414, %v5497, 0
      %5742 = vmatpush.msra.mxu0 0.0
      %5743 = vmatpush.msra.mxu0 0.0
      %5744 = vmatpush.msra.mxu0 0.0
      %5745 = vmatpush.msra.mxu0 0.0
      %5746 = vmatpush.msra.mxu0 0.0
      %5747 = vmatpush.msra.mxu0 0.0
      %5748 = vmatpush.msra.mxu0 0.0
      %5749 = vmatpush.msra.mxu0 0.0
      %5750 = vmatpush.msra.mxu0 0.0
      %5751 = vmatpush.msra.mxu0 0.0
      %5752 = vmatpush.msra.mxu0 0.0
      %5753 = vmatpush.msra.mxu0 0.0
      %5754 = vmatpush.msra.mxu0 0.0
      %5755 = vmatpush.msra.mxu0 0.0
      %5756 = vmatpush.msra.mxu0 0.0
      %5757 = vmatpush.msra.mxu0 %v5498
      %5758 = vmatmul.f32.gmra.mxu0 %v5500
      %v5759 = vpop.f32.mrf.mxu0
      %v5760 = vadd.f32 0.0, %v5759
      %5761 = vmatmul.f32.gmra.mxu0 %v5503
      %v5762 = vpop.f32.mrf.mxu0
      %v5763 = vadd.f32 0.0, %v5762
      %5764 = vmatmul.f32.gmra.mxu0 %v5506
      %v5765 = vpop.f32.mrf.mxu0
      %v5766 = vadd.f32 0.0, %v5765
      %5767 = vmatmul.f32.gmra.mxu0 %v5509
      %v5768 = vpop.f32.mrf.mxu0
      %v5769 = vadd.f32 0.0, %v5768
      %5770 = vmatmul.f32.gmra.mxu0 %v5512
      %v5771 = vpop.f32.mrf.mxu0
      %v5772 = vadd.f32 0.0, %v5771
      %5773 = vmatmul.f32.gmra.mxu0 %v5515
      %v5774 = vpop.f32.mrf.mxu0
      %v5775 = vadd.f32 0.0, %v5774
      %5776 = vmatmul.f32.gmra.mxu0 %v5518
      %v5777 = vpop.f32.mrf.mxu0
      %v5778 = vadd.f32 0.0, %v5777
      %5779 = vmatmul.f32.gmra.mxu0 %v5521
      %v5780 = vpop.f32.mrf.mxu0
      %v5781 = vadd.f32 0.0, %v5780
      %5782 = vmatmul.f32.gmra.mxu0 %v5524
      %v5783 = vpop.f32.mrf.mxu0
      %v5784 = vadd.f32 0.0, %v5783
      %5785 = vmatmul.f32.gmra.mxu0 %v5527
      %v5786 = vpop.f32.mrf.mxu0
      %v5787 = vadd.f32 0.0, %v5786
      %5788 = vmatmul.f32.gmra.mxu0 %v5530
      %v5789 = vpop.f32.mrf.mxu0
      %v5790 = vadd.f32 0.0, %v5789
      %5791 = vmatmul.f32.gmra.mxu0 %v5533
      %v5792 = vpop.f32.mrf.mxu0
      %v5793 = vadd.f32 0.0, %v5792
      %5794 = vmatmul.f32.gmra.mxu0 %v5536
      %v5795 = vpop.f32.mrf.mxu0
      %v5796 = vadd.f32 0.0, %v5795
      %5797 = vmatmul.f32.gmra.mxu0 %v5539
      %v5798 = vpop.f32.mrf.mxu0
      %v5799 = vadd.f32 0.0, %v5798
      %5800 = vmatmul.f32.gmra.mxu0 %v5542
      %v5801 = vpop.f32.mrf.mxu0
      %v5802 = vadd.f32 0.0, %v5801
      %5803 = vmatmul.f32.gmra.mxu0 %v5545
      %v5804 = vpop.f32.mrf.mxu0
      %v5805 = vadd.f32 0.0, %v5804
      %5806 = vmatmul.f32.gmra.mxu0 %v5548
      %v5807 = vpop.f32.mrf.mxu0
      %v5808 = vadd.f32 0.0, %v5807
      %5809 = vmatmul.f32.gmra.mxu0 %v5551
      %v5810 = vpop.f32.mrf.mxu0
      %v5811 = vadd.f32 0.0, %v5810
      %5812 = vmatmul.f32.gmra.mxu0 %v5554
      %v5813 = vpop.f32.mrf.mxu0
      %v5814 = vadd.f32 0.0, %v5813
      %5815 = vmatmul.f32.gmra.mxu0 %v5557
      %v5816 = vpop.f32.mrf.mxu0
      %v5817 = vadd.f32 0.0, %v5816
      %5818 = vmatmul.f32.gmra.mxu0 %v5560
      %v5819 = vpop.f32.mrf.mxu0
      %v5820 = vadd.f32 0.0, %v5819
      %5821 = vmatmul.f32.gmra.mxu0 %v5563
      %v5822 = vpop.f32.mrf.mxu0
      %v5823 = vadd.f32 0.0, %v5822
      %5824 = vmatmul.f32.gmra.mxu0 %v5566
      %v5825 = vpop.f32.mrf.mxu0
      %v5826 = vadd.f32 0.0, %v5825
      %5827 = vmatmul.f32.gmra.mxu0 %v5569
      %v5828 = vpop.f32.mrf.mxu0
      %v5829 = vadd.f32 0.0, %v5828
      %5830 = vmatmul.f32.gmra.mxu0 %v5572
      %v5831 = vpop.f32.mrf.mxu0
      %v5832 = vadd.f32 0.0, %v5831
      %5833 = vmatmul.f32.gmra.mxu0 %v5575
      %v5834 = vpop.f32.mrf.mxu0
      %v5835 = vadd.f32 0.0, %v5834
      %5836 = vmatmul.f32.gmra.mxu0 %v5578
      %v5837 = vpop.f32.mrf.mxu0
      %v5838 = vadd.f32 0.0, %v5837
      %5839 = vmatmul.f32.gmra.mxu0 %v5581
      %v5840 = vpop.f32.mrf.mxu0
      %v5841 = vadd.f32 0.0, %v5840
      %5842 = vmatmul.f32.gmra.mxu0 %v5584
      %v5843 = vpop.f32.mrf.mxu0
      %v5844 = vadd.f32 0.0, %v5843
      %5845 = vmatmul.f32.gmra.mxu0 %v5587
      %v5846 = vpop.f32.mrf.mxu0
      %v5847 = vadd.f32 0.0, %v5846
      %5848 = vmatmul.f32.gmra.mxu0 %v5590
      %v5849 = vpop.f32.mrf.mxu0
      %v5850 = vadd.f32 0.0, %v5849
      %5851 = vmatmul.f32.gmra.mxu0 %v5593
      %v5852 = vpop.f32.mrf.mxu0
      %v5853 = vadd.f32 0.0, %v5852
      %5854 = vmatmul.f32.gmra.mxu0 %v5596
      %v5855 = vpop.f32.mrf.mxu0
      %v5856 = vadd.f32 0.0, %v5855
      %5857 = vmatmul.f32.gmra.mxu0 %v5599
      %v5858 = vpop.f32.mrf.mxu0
      %v5859 = vadd.f32 0.0, %v5858
      %5860 = vmatmul.f32.gmra.mxu0 %v5602
      %v5861 = vpop.f32.mrf.mxu0
      %v5862 = vadd.f32 0.0, %v5861
      %5863 = vmatmul.f32.gmra.mxu0 %v5605
      %v5864 = vpop.f32.mrf.mxu0
      %v5865 = vadd.f32 0.0, %v5864
      %5866 = vmatmul.f32.gmra.mxu0 %v5608
      %v5867 = vpop.f32.mrf.mxu0
      %v5868 = vadd.f32 0.0, %v5867
      %5869 = vmatmul.f32.gmra.mxu0 %v5611
      %v5870 = vpop.f32.mrf.mxu0
      %v5871 = vadd.f32 0.0, %v5870
      %5872 = vmatmul.f32.gmra.mxu0 %v5614
      %v5873 = vpop.f32.mrf.mxu0
      %v5874 = vadd.f32 0.0, %v5873
      %5875 = vmatmul.f32.gmra.mxu0 %v5617
      %v5876 = vpop.f32.mrf.mxu0
      %v5877 = vadd.f32 0.0, %v5876
      %5878 = vmatmul.f32.gmra.mxu0 %v5620
      %v5879 = vpop.f32.mrf.mxu0
      %v5880 = vadd.f32 0.0, %v5879
      %5881 = vmatmul.f32.gmra.mxu0 %v5623
      %v5882 = vpop.f32.mrf.mxu0
      %v5883 = vadd.f32 0.0, %v5882
      %5884 = vmatmul.f32.gmra.mxu0 %v5626
      %v5885 = vpop.f32.mrf.mxu0
      %v5886 = vadd.f32 0.0, %v5885
      %5887 = vmatmul.f32.gmra.mxu0 %v5629
      %v5888 = vpop.f32.mrf.mxu0
      %v5889 = vadd.f32 0.0, %v5888
      %5890 = vmatmul.f32.gmra.mxu0 %v5632
      %v5891 = vpop.f32.mrf.mxu0
      %v5892 = vadd.f32 0.0, %v5891
      %5893 = vmatmul.f32.gmra.mxu0 %v5635
      %v5894 = vpop.f32.mrf.mxu0
      %v5895 = vadd.f32 0.0, %v5894
      %5896 = vmatmul.f32.gmra.mxu0 %v5638
      %v5897 = vpop.f32.mrf.mxu0
      %v5898 = vadd.f32 0.0, %v5897
      %5899 = vmatmul.f32.gmra.mxu0 %v5641
      %v5900 = vpop.f32.mrf.mxu0
      %v5901 = vadd.f32 0.0, %v5900
      %5902 = vmatmul.f32.gmra.mxu0 %v5644
      %v5903 = vpop.f32.mrf.mxu0
      %v5904 = vadd.f32 0.0, %v5903
      %5905 = vmatmul.f32.gmra.mxu0 %v5647
      %v5906 = vpop.f32.mrf.mxu0
      %v5907 = vadd.f32 0.0, %v5906
      %5908 = vmatmul.f32.gmra.mxu0 %v5650
      %v5909 = vpop.f32.mrf.mxu0
      %v5910 = vadd.f32 0.0, %v5909
      %5911 = vmatmul.f32.gmra.mxu0 %v5653
      %v5912 = vpop.f32.mrf.mxu0
      %v5913 = vadd.f32 0.0, %v5912
      %5914 = vmatmul.f32.gmra.mxu0 %v5656
      %v5915 = vpop.f32.mrf.mxu0
      %v5916 = vadd.f32 0.0, %v5915
      %5917 = vmatmul.f32.gmra.mxu0 %v5659
      %v5918 = vpop.f32.mrf.mxu0
      %v5919 = vadd.f32 0.0, %v5918
      %5920 = vmatmul.f32.gmra.mxu0 %v5662
      %v5921 = vpop.f32.mrf.mxu0
      %v5922 = vadd.f32 0.0, %v5921
      %5923 = vmatmul.f32.gmra.mxu0 %v5665
      %v5924 = vpop.f32.mrf.mxu0
      %v5925 = vadd.f32 0.0, %v5924
      %5926 = vmatmul.f32.gmra.mxu0 %v5668
      %v5927 = vpop.f32.mrf.mxu0
      %v5928 = vadd.f32 0.0, %v5927
      %5929 = vmatmul.f32.gmra.mxu0 %v5671
      %v5930 = vpop.f32.mrf.mxu0
      %v5931 = vadd.f32 0.0, %v5930
      %5932 = vmatmul.f32.gmra.mxu0 %v5674
      %v5933 = vpop.f32.mrf.mxu0
      %v5934 = vadd.f32 0.0, %v5933
      %5935 = vmatmul.f32.gmra.mxu0 %v5677
      %v5936 = vpop.f32.mrf.mxu0
      %v5937 = vadd.f32 0.0, %v5936
      %5938 = vmatmul.f32.gmra.mxu0 %v5680
      %v5939 = vpop.f32.mrf.mxu0
      %v5940 = vadd.f32 0.0, %v5939
      %5941 = vmatmul.f32.gmra.mxu0 %v5683
      %v5942 = vpop.f32.mrf.mxu0
      %v5943 = vadd.f32 0.0, %v5942
      %5944 = vmatmul.f32.gmra.mxu0 %v5686
      %v5945 = vpop.f32.mrf.mxu0
      %v5946 = vadd.f32 0.0, %v5945
      %5947 = vmatmul.f32.gmra.mxu0 %v5689
      %v5948 = vpop.f32.mrf.mxu0
      %v5949 = vadd.f32 0.0, %v5948
      %5950 = vmatmul.f32.gmra.mxu0 %v5692
      %v5951 = vpop.f32.mrf.mxu0
      %v5952 = vadd.f32 0.0, %v5951
      %5953 = vmatmul.f32.gmra.mxu0 %v5695
      %v5954 = vpop.f32.mrf.mxu0
      %v5955 = vadd.f32 0.0, %v5954
      %5956 = vmatmul.f32.gmra.mxu0 %v5698
      %v5957 = vpop.f32.mrf.mxu0
      %v5958 = vadd.f32 0.0, %v5957
      %5959 = vmatmul.f32.gmra.mxu0 %v5701
      %v5960 = vpop.f32.mrf.mxu0
      %v5961 = vadd.f32 0.0, %v5960
      %5962 = vmatmul.f32.gmra.mxu0 %v5704
      %v5963 = vpop.f32.mrf.mxu0
      %v5964 = vadd.f32 0.0, %v5963
      %5965 = vmatmul.f32.gmra.mxu0 %v5707
      %v5966 = vpop.f32.mrf.mxu0
      %v5967 = vadd.f32 0.0, %v5966
      %5968 = vmatmul.f32.gmra.mxu0 %v5710
      %v5969 = vpop.f32.mrf.mxu0
      %v5970 = vadd.f32 0.0, %v5969
      %5971 = vmatmul.f32.gmra.mxu0 %v5713
      %v5972 = vpop.f32.mrf.mxu0
      %v5973 = vadd.f32 0.0, %v5972
      %5974 = vmatmul.f32.gmra.mxu0 %v5716
      %v5975 = vpop.f32.mrf.mxu0
      %v5976 = vadd.f32 0.0, %v5975
      %5977 = vmatmul.f32.gmra.mxu0 %v5719
      %v5978 = vpop.f32.mrf.mxu0
      %v5979 = vadd.f32 0.0, %v5978
      %5980 = vmatmul.f32.gmra.mxu0 %v5722
      %v5981 = vpop.f32.mrf.mxu0
      %v5982 = vadd.f32 0.0, %v5981
      %5983 = vmatmul.f32.gmra.mxu0 %v5725
      %v5984 = vpop.f32.mrf.mxu0
      %v5985 = vadd.f32 0.0, %v5984
      %5986 = vmatmul.f32.gmra.mxu0 %v5728
      %v5987 = vpop.f32.mrf.mxu0
      %v5988 = vadd.f32 0.0, %v5987
      %5989 = vmatmul.f32.gmra.mxu0 %v5731
      %v5990 = vpop.f32.mrf.mxu0
      %v5991 = vadd.f32 0.0, %v5990
      %5992 = vmatmul.f32.gmra.mxu0 %v5734
      %v5993 = vpop.f32.mrf.mxu0
      %v5994 = vadd.f32 0.0, %v5993
      %5995 = vmatmul.f32.gmra.mxu0 %v5737
      %v5996 = vpop.f32.mrf.mxu0
      %v5997 = vadd.f32 0.0, %v5996
      %5998 = vmatmul.f32.gmra.mxu0 %v5740
      %v5999 = vpop.f32.mrf.mxu0
      %v6000 = vadd.f32 0.0, %v5999
      %6001 = vdwg.mxu0
      %v6002 = vadd.f32 %v5336, %v5760
      %v6003 = vadd.f32 %v5337, %v5763
      %v6004 = vadd.f32 %v5338, %v5766
      %v6005 = vadd.f32 %v5339, %v5769
      %v6006 = vadd.f32 %v5340, %v5772
      %v6007 = vadd.f32 %v5341, %v5775
      %v6008 = vadd.f32 %v5342, %v5778
      %v6009 = vadd.f32 %v5343, %v5781
      %v6010 = vadd.f32 %v5344, %v5784
      %v6011 = vadd.f32 %v5345, %v5787
      %v6012 = vadd.f32 %v5346, %v5790
      %v6013 = vadd.f32 %v5347, %v5793
      %v6014 = vadd.f32 %v5348, %v5796
      %v6015 = vadd.f32 %v5349, %v5799
      %v6016 = vadd.f32 %v5350, %v5802
      %v6017 = vadd.f32 %v5351, %v5805
      %v6018 = vadd.f32 %v5352, %v5808
      %v6019 = vadd.f32 %v5353, %v5811
      %v6020 = vadd.f32 %v5354, %v5814
      %v6021 = vadd.f32 %v5355, %v5817
      %v6022 = vadd.f32 %v5356, %v5820
      %v6023 = vadd.f32 %v5357, %v5823
      %v6024 = vadd.f32 %v5358, %v5826
      %v6025 = vadd.f32 %v5359, %v5829
      %v6026 = vadd.f32 %v5360, %v5832
      %v6027 = vadd.f32 %v5361, %v5835
      %v6028 = vadd.f32 %v5362, %v5838
      %v6029 = vadd.f32 %v5363, %v5841
      %v6030 = vadd.f32 %v5364, %v5844
      %v6031 = vadd.f32 %v5365, %v5847
      %v6032 = vadd.f32 %v5366, %v5850
      %v6033 = vadd.f32 %v5367, %v5853
      %v6034 = vadd.f32 %v5368, %v5856
      %v6035 = vadd.f32 %v5369, %v5859
      %v6036 = vadd.f32 %v5370, %v5862
      %v6037 = vadd.f32 %v5371, %v5865
      %v6038 = vadd.f32 %v5372, %v5868
      %v6039 = vadd.f32 %v5373, %v5871
      %v6040 = vadd.f32 %v5374, %v5874
      %v6041 = vadd.f32 %v5375, %v5877
      %v6042 = vadd.f32 %v5376, %v5880
      %v6043 = vadd.f32 %v5377, %v5883
      %v6044 = vadd.f32 %v5378, %v5886
      %v6045 = vadd.f32 %v5379, %v5889
      %v6046 = vadd.f32 %v5380, %v5892
      %v6047 = vadd.f32 %v5381, %v5895
      %v6048 = vadd.f32 %v5382, %v5898
      %v6049 = vadd.f32 %v5383, %v5901
      %v6050 = vadd.f32 %v5384, %v5904
      %v6051 = vadd.f32 %v5385, %v5907
      %v6052 = vadd.f32 %v5386, %v5910
      %v6053 = vadd.f32 %v5387, %v5913
      %v6054 = vadd.f32 %v5388, %v5916
      %v6055 = vadd.f32 %v5389, %v5919
      %v6056 = vadd.f32 %v5390, %v5922
      %v6057 = vadd.f32 %v5391, %v5925
      %v6058 = vadd.f32 %v5392, %v5928
      %v6059 = vadd.f32 %v5393, %v5931
      %v6060 = vadd.f32 %v5394, %v5934
      %v6061 = vadd.f32 %v5395, %v5937
      %v6062 = vadd.f32 %v5396, %v5940
      %v6063 = vadd.f32 %v5397, %v5943
      %v6064 = vadd.f32 %v5398, %v5946
      %v6065 = vadd.f32 %v5399, %v5949
      %v6066 = vadd.f32 %v5400, %v5952
      %v6067 = vadd.f32 %v5401, %v5955
      %v6068 = vadd.f32 %v5402, %v5958
      %v6069 = vadd.f32 %v5403, %v5961
      %v6070 = vadd.f32 %v5404, %v5964
      %v6071 = vadd.f32 %v5405, %v5967
      %v6072 = vadd.f32 %v5406, %v5970
      %v6073 = vadd.f32 %v5407, %v5973
      %v6074 = vadd.f32 %v5408, %v5976
      %v6075 = vadd.f32 %v5409, %v5979
      %v6076 = vadd.f32 %v5410, %v5982
      %v6077 = vadd.f32 %v5411, %v5985
      %v6078 = vadd.f32 %v5412, %v5988
      %v6079 = vadd.f32 %v5413, %v5991
      %v6080 = vadd.f32 %v5414, %v5994
      %v6081 = vadd.f32 %v5415, %v5997
      %v6082 = vadd.f32 %v5416, %v6000
      %v6083 = vld [vmem:[%s3] sm:$0x1]
      %v6085 = vperm.slane %v6083, 0
      %v6087 = vadd.f32 %v6002, %v6085
      %v6088 = vadd.f32 %v6003, %v6085
      %v6089 = vadd.f32 %v6004, %v6085
      %v6090 = vadd.f32 %v6005, %v6085
      %v6091 = vadd.f32 %v6006, %v6085
      %v6092 = vadd.f32 %v6007, %v6085
      %v6093 = vadd.f32 %v6008, %v6085
      %v6094 = vadd.f32 %v6009, %v6085
      %v6095 = vadd.f32 %v6010, %v6085
      %v6096 = vadd.f32 %v6011, %v6085
      %v6097 = vadd.f32 %v6012, %v6085
      %v6098 = vadd.f32 %v6013, %v6085
      %v6099 = vadd.f32 %v6014, %v6085
      %v6100 = vadd.f32 %v6015, %v6085
      %v6101 = vadd.f32 %v6016, %v6085
      %v6102 = vadd.f32 %v6017, %v6085
      %v6103 = vadd.f32 %v6018, %v6085
      %v6104 = vadd.f32 %v6019, %v6085
      %v6105 = vadd.f32 %v6020, %v6085
      %v6106 = vadd.f32 %v6021, %v6085
      %v6107 = vadd.f32 %v6022, %v6085
      %v6108 = vadd.f32 %v6023, %v6085
      %v6109 = vadd.f32 %v6024, %v6085
      %v6110 = vadd.f32 %v6025, %v6085
      %v6111 = vadd.f32 %v6026, %v6085
      %v6112 = vadd.f32 %v6027, %v6085
      %v6113 = vadd.f32 %v6028, %v6085
      %v6114 = vadd.f32 %v6029, %v6085
      %v6115 = vadd.f32 %v6030, %v6085
      %v6116 = vadd.f32 %v6031, %v6085
      %v6117 = vadd.f32 %v6032, %v6085
      %v6118 = vadd.f32 %v6033, %v6085
      %v6119 = vadd.f32 %v6034, %v6085
      %v6120 = vadd.f32 %v6035, %v6085
      %v6121 = vadd.f32 %v6036, %v6085
      %v6122 = vadd.f32 %v6037, %v6085
      %v6123 = vadd.f32 %v6038, %v6085
      %v6124 = vadd.f32 %v6039, %v6085
      %v6125 = vadd.f32 %v6040, %v6085
      %v6126 = vadd.f32 %v6041, %v6085
      %v6127 = vadd.f32 %v6042, %v6085
      %v6128 = vadd.f32 %v6043, %v6085
      %v6129 = vadd.f32 %v6044, %v6085
      %v6130 = vadd.f32 %v6045, %v6085
      %v6131 = vadd.f32 %v6046, %v6085
      %v6132 = vadd.f32 %v6047, %v6085
      %v6133 = vadd.f32 %v6048, %v6085
      %v6134 = vadd.f32 %v6049, %v6085
      %v6135 = vadd.f32 %v6050, %v6085
      %v6136 = vadd.f32 %v6051, %v6085
      %v6137 = vadd.f32 %v6052, %v6085
      %v6138 = vadd.f32 %v6053, %v6085
      %v6139 = vadd.f32 %v6054, %v6085
      %v6140 = vadd.f32 %v6055, %v6085
      %v6141 = vadd.f32 %v6056, %v6085
      %v6142 = vadd.f32 %v6057, %v6085
      %v6143 = vadd.f32 %v6058, %v6085
      %v6144 = vadd.f32 %v6059, %v6085
      %v6145 = vadd.f32 %v6060, %v6085
      %v6146 = vadd.f32 %v6061, %v6085
      %v6147 = vadd.f32 %v6062, %v6085
      %v6148 = vadd.f32 %v6063, %v6085
      %v6149 = vadd.f32 %v6064, %v6085
      %v6150 = vadd.f32 %v6065, %v6085
      %v6151 = vadd.f32 %v6066, %v6085
      %v6152 = vadd.f32 %v6067, %v6085
      %v6153 = vadd.f32 %v6068, %v6085
      %v6154 = vadd.f32 %v6069, %v6085
      %v6155 = vadd.f32 %v6070, %v6085
      %v6156 = vadd.f32 %v6071, %v6085
      %v6157 = vadd.f32 %v6072, %v6085
      %v6158 = vadd.f32 %v6073, %v6085
      %v6159 = vadd.f32 %v6074, %v6085
      %v6160 = vadd.f32 %v6075, %v6085
      %v6161 = vadd.f32 %v6076, %v6085
      %v6162 = vadd.f32 %v6077, %v6085
      %v6163 = vadd.f32 %v6078, %v6085
      %v6164 = vadd.f32 %v6079, %v6085
      %v6165 = vadd.f32 %v6080, %v6085
      %v6166 = vadd.f32 %v6081, %v6085
      %v6167 = vadd.f32 %v6082, %v6085
      %v6168 = vmax.f32 %v6087, 0.0
      %v6169 = vmax.f32 %v6088, 0.0
      %v6170 = vmax.f32 %v6089, 0.0
      %v6171 = vmax.f32 %v6090, 0.0
      %v6172 = vmax.f32 %v6091, 0.0
      %v6173 = vmax.f32 %v6092, 0.0
      %v6174 = vmax.f32 %v6093, 0.0
      %v6175 = vmax.f32 %v6094, 0.0
      %v6176 = vmax.f32 %v6095, 0.0
      %v6177 = vmax.f32 %v6096, 0.0
      %v6178 = vmax.f32 %v6097, 0.0
      %v6179 = vmax.f32 %v6098, 0.0
      %v6180 = vmax.f32 %v6099, 0.0
      %v6181 = vmax.f32 %v6100, 0.0
      %v6182 = vmax.f32 %v6101, 0.0
      %v6183 = vmax.f32 %v6102, 0.0
      %v6184 = vmax.f32 %v6103, 0.0
      %v6185 = vmax.f32 %v6104, 0.0
      %v6186 = vmax.f32 %v6105, 0.0
      %v6187 = vmax.f32 %v6106, 0.0
      %v6188 = vmax.f32 %v6107, 0.0
      %v6189 = vmax.f32 %v6108, 0.0
      %v6190 = vmax.f32 %v6109, 0.0
      %v6191 = vmax.f32 %v6110, 0.0
      %v6192 = vmax.f32 %v6111, 0.0
      %v6193 = vmax.f32 %v6112, 0.0
      %v6194 = vmax.f32 %v6113, 0.0
      %v6195 = vmax.f32 %v6114, 0.0
      %v6196 = vmax.f32 %v6115, 0.0
      %v6197 = vmax.f32 %v6116, 0.0
      %v6198 = vmax.f32 %v6117, 0.0
      %v6199 = vmax.f32 %v6118, 0.0
      %v6200 = vmax.f32 %v6119, 0.0
      %v6201 = vmax.f32 %v6120, 0.0
      %v6202 = vmax.f32 %v6121, 0.0
      %v6203 = vmax.f32 %v6122, 0.0
      %v6204 = vmax.f32 %v6123, 0.0
      %v6205 = vmax.f32 %v6124, 0.0
      %v6206 = vmax.f32 %v6125, 0.0
      %v6207 = vmax.f32 %v6126, 0.0
      %v6208 = vmax.f32 %v6127, 0.0
      %v6209 = vmax.f32 %v6128, 0.0
      %v6210 = vmax.f32 %v6129, 0.0
      %v6211 = vmax.f32 %v6130, 0.0
      %v6212 = vmax.f32 %v6131, 0.0
      %v6213 = vmax.f32 %v6132, 0.0
      %v6214 = vmax.f32 %v6133, 0.0
      %v6215 = vmax.f32 %v6134, 0.0
      %v6216 = vmax.f32 %v6135, 0.0
      %v6217 = vmax.f32 %v6136, 0.0
      %v6218 = vmax.f32 %v6137, 0.0
      %v6219 = vmax.f32 %v6138, 0.0
      %v6220 = vmax.f32 %v6139, 0.0
      %v6221 = vmax.f32 %v6140, 0.0
      %v6222 = vmax.f32 %v6141, 0.0
      %v6223 = vmax.f32 %v6142, 0.0
      %v6224 = vmax.f32 %v6143, 0.0
      %v6225 = vmax.f32 %v6144, 0.0
      %v6226 = vmax.f32 %v6145, 0.0
      %v6227 = vmax.f32 %v6146, 0.0
      %v6228 = vmax.f32 %v6147, 0.0
      %v6229 = vmax.f32 %v6148, 0.0
      %v6230 = vmax.f32 %v6149, 0.0
      %v6231 = vmax.f32 %v6150, 0.0
      %v6232 = vmax.f32 %v6151, 0.0
      %v6233 = vmax.f32 %v6152, 0.0
      %v6234 = vmax.f32 %v6153, 0.0
      %v6235 = vmax.f32 %v6154, 0.0
      %v6236 = vmax.f32 %v6155, 0.0
      %v6237 = vmax.f32 %v6156, 0.0
      %v6238 = vmax.f32 %v6157, 0.0
      %v6239 = vmax.f32 %v6158, 0.0
      %v6240 = vmax.f32 %v6159, 0.0
      %v6241 = vmax.f32 %v6160, 0.0
      %v6242 = vmax.f32 %v6161, 0.0
      %v6243 = vmax.f32 %v6162, 0.0
      %v6244 = vmax.f32 %v6163, 0.0
      %v6245 = vmax.f32 %v6164, 0.0
      %v6246 = vmax.f32 %v6165, 0.0
      %v6247 = vmax.f32 %v6166, 0.0
      %v6248 = vmax.f32 %v6167, 0.0
      %v6249 = vld [vmem:[%s1] sm:$0xff]
      %v6250 = vld [vmem:[%s1 + $0x8] sm:$0xff]
      %v6251 = vld [vmem:[%s1 + $0x10] sm:$0xff]
      %v6252 = vld [vmem:[%s1 + $0x18] sm:$0xff]
      %v6253 = vld [vmem:[%s1 + $0x20] sm:$0xff]
      %v6254 = vld [vmem:[%s1 + $0x28] sm:$0xff]
      %v6256 = vsel %vm414, %v6254, 0
      %6258 = vmatpush.msra.mxu0 %v6183
      %6259 = vmatpush.msra.mxu0 %v6182
      %6260 = vmatpush.msra.mxu0 %v6181
      %6261 = vmatpush.msra.mxu0 %v6180
      %6262 = vmatpush.msra.mxu0 %v6179
      %6263 = vmatpush.msra.mxu0 %v6178
      %6264 = vmatpush.msra.mxu0 %v6177
      %6265 = vmatpush.msra.mxu0 %v6176
      %6266 = vmatpush.msra.mxu0 %v6175
      %6267 = vmatpush.msra.mxu0 %v6174
      %6268 = vmatpush.msra.mxu0 %v6173
      %6269 = vmatpush.msra.mxu0 %v6172
      %6270 = vmatpush.msra.mxu0 %v6171
      %6271 = vmatpush.msra.mxu0 %v6170
      %6272 = vmatpush.msra.mxu0 %v6169
      %6273 = vmatpush.msra.mxu0 %v6168
      %6274 = vmatmul.f32.gmra.mxu0 %v6249
      %v6275 = vpop.f32.mrf.mxu0
      %v6276 = vadd.f32 0.0, %v6275
      %6277 = vdwg.mxu0
      %6278 = vmatpush.msra.mxu0 %v6199
      %6279 = vmatpush.msra.mxu0 %v6198
      %6280 = vmatpush.msra.mxu0 %v6197
      %6281 = vmatpush.msra.mxu0 %v6196
      %6282 = vmatpush.msra.mxu0 %v6195
      %6283 = vmatpush.msra.mxu0 %v6194
      %6284 = vmatpush.msra.mxu0 %v6193
      %6285 = vmatpush.msra.mxu0 %v6192
      %6286 = vmatpush.msra.mxu0 %v6191
      %6287 = vmatpush.msra.mxu0 %v6190
      %6288 = vmatpush.msra.mxu0 %v6189
      %6289 = vmatpush.msra.mxu0 %v6188
      %6290 = vmatpush.msra.mxu0 %v6187
      %6291 = vmatpush.msra.mxu0 %v6186
      %6292 = vmatpush.msra.mxu0 %v6185
      %6293 = vmatpush.msra.mxu0 %v6184
      %6294 = vmatmul.f32.gmra.mxu0 %v6250
      %v6295 = vpop.f32.mrf.mxu0
      %v6296 = vadd.f32 %v6276, %v6295
      %6297 = vdwg.mxu0
      %6298 = vmatpush.msra.mxu0 %v6215
      %6299 = vmatpush.msra.mxu0 %v6214
      %6300 = vmatpush.msra.mxu0 %v6213
      %6301 = vmatpush.msra.mxu0 %v6212
      %6302 = vmatpush.msra.mxu0 %v6211
      %6303 = vmatpush.msra.mxu0 %v6210
      %6304 = vmatpush.msra.mxu0 %v6209
      %6305 = vmatpush.msra.mxu0 %v6208
      %6306 = vmatpush.msra.mxu0 %v6207
      %6307 = vmatpush.msra.mxu0 %v6206
      %6308 = vmatpush.msra.mxu0 %v6205
      %6309 = vmatpush.msra.mxu0 %v6204
      %6310 = vmatpush.msra.mxu0 %v6203
      %6311 = vmatpush.msra.mxu0 %v6202
      %6312 = vmatpush.msra.mxu0 %v6201
      %6313 = vmatpush.msra.mxu0 %v6200
      %6314 = vmatmul.f32.gmra.mxu0 %v6251
      %v6315 = vpop.f32.mrf.mxu0
      %v6316 = vadd.f32 %v6296, %v6315
      %6317 = vdwg.mxu0
      %6318 = vmatpush.msra.mxu0 %v6231
      %6319 = vmatpush.msra.mxu0 %v6230
      %6320 = vmatpush.msra.mxu0 %v6229
      %6321 = vmatpush.msra.mxu0 %v6228
      %6322 = vmatpush.msra.mxu0 %v6227
      %6323 = vmatpush.msra.mxu0 %v6226
      %6324 = vmatpush.msra.mxu0 %v6225
      %6325 = vmatpush.msra.mxu0 %v6224
      %6326 = vmatpush.msra.mxu0 %v6223
      %6327 = vmatpush.msra.mxu0 %v6222
      %6328 = vmatpush.msra.mxu0 %v6221
      %6329 = vmatpush.msra.mxu0 %v6220
      %6330 = vmatpush.msra.mxu0 %v6219
      %6331 = vmatpush.msra.mxu0 %v6218
      %6332 = vmatpush.msra.mxu0 %v6217
      %6333 = vmatpush.msra.mxu0 %v6216
      %6334 = vmatmul.f32.gmra.mxu0 %v6252
      %v6335 = vpop.f32.mrf.mxu0
      %v6336 = vadd.f32 %v6316, %v6335
      %6337 = vdwg.mxu0
      %6338 = vmatpush.msra.mxu0 %v6247
      %6339 = vmatpush.msra.mxu0 %v6246
      %6340 = vmatpush.msra.mxu0 %v6245
      %6341 = vmatpush.msra.mxu0 %v6244
      %6342 = vmatpush.msra.mxu0 %v6243
      %6343 = vmatpush.msra.mxu0 %v6242
      %6344 = vmatpush.msra.mxu0 %v6241
      %6345 = vmatpush.msra.mxu0 %v6240
      %6346 = vmatpush.msra.mxu0 %v6239
      %6347 = vmatpush.msra.mxu0 %v6238
      %6348 = vmatpush.msra.mxu0 %v6237
      %6349 = vmatpush.msra.mxu0 %v6236
      %6350 = vmatpush.msra.mxu0 %v6235
      %6351 = vmatpush.msra.mxu0 %v6234
      %6352 = vmatpush.msra.mxu0 %v6233
      %6353 = vmatpush.msra.mxu0 %v6232
      %6354 = vmatmul.f32.gmra.mxu0 %v6253
      %v6355 = vpop.f32.mrf.mxu0
      %v6356 = vadd.f32 %v6336, %v6355
      %6357 = vdwg.mxu0
      %6358 = vmatpush.msra.mxu0 0.0
      %6359 = vmatpush.msra.mxu0 0.0
      %6360 = vmatpush.msra.mxu0 0.0
      %6361 = vmatpush.msra.mxu0 0.0
      %6362 = vmatpush.msra.mxu0 0.0
      %6363 = vmatpush.msra.mxu0 0.0
      %6364 = vmatpush.msra.mxu0 0.0
      %6365 = vmatpush.msra.mxu0 0.0
      %6366 = vmatpush.msra.mxu0 0.0
      %6367 = vmatpush.msra.mxu0 0.0
      %6368 = vmatpush.msra.mxu0 0.0
      %6369 = vmatpush.msra.mxu0 0.0
      %6370 = vmatpush.msra.mxu0 0.0
      %6371 = vmatpush.msra.mxu0 0.0
      %6372 = vmatpush.msra.mxu0 0.0
      %6373 = vmatpush.msra.mxu0 %v6248
      %6374 = vmatmul.f32.gmra.mxu0 %v6256
      %v6375 = vpop.f32.mrf.mxu0
      %v6376 = vadd.f32 %v6356, %v6375
      %6377 = vdwg.mxu0
      %v6378 = vld [vmem:[%s4] sm:$0xff]
      %v6379 = vld [vmem:[%s4 + $0x8] sm:$0xff]
      %v6380 = vld [vmem:[%s4 + $0x10] sm:$0xff]
      %v6381 = vld [vmem:[%s4 + $0x18] sm:$0xff]
      %v6382 = vld [vmem:[%s4 + $0x20] sm:$0xff]
      %v6383 = vld [vmem:[%s4 + $0x28] sm:$0xff]
      %v6384 = vld [vmem:[%s4 + $0x30] sm:$0xff]
      %v6385 = vld [vmem:[%s4 + $0x38] sm:$0xff]
      %v6386 = vld [vmem:[%s4 + $0x40] sm:$0xff]
      %v6387 = vld [vmem:[%s4 + $0x48] sm:$0xff]
      %v6388 = vld [vmem:[%s4 + $0x50] sm:$0xff]
      %v6389 = vld [vmem:[%s4 + $0x58] sm:$0xff]
      %v6390 = vld [vmem:[%s4 + $0x60] sm:$0xff]
      %v6391 = vld [vmem:[%s4 + $0x68] sm:$0xff]
      %v6392 = vld [vmem:[%s4 + $0x70] sm:$0xff]
      %v6393 = vld [vmem:[%s4 + $0x78] sm:$0xff]
      %v6394 = vld [vmem:[%s5] sm:$0x1]
      %v6396 = vperm.slane %v6394, 0
      %6398 = vmatpush.msra.mxu0 %v6393
      %6399 = vmatpush.msra.mxu0 %v6392
      %6400 = vmatpush.msra.mxu0 %v6391
      %6401 = vmatpush.msra.mxu0 %v6390
      %6402 = vmatpush.msra.mxu0 %v6389
      %6403 = vmatpush.msra.mxu0 %v6388
      %6404 = vmatpush.msra.mxu0 %v6387
      %6405 = vmatpush.msra.mxu0 %v6386
      %6406 = vmatpush.msra.mxu0 %v6385
      %6407 = vmatpush.msra.mxu0 %v6384
      %6408 = vmatpush.msra.mxu0 %v6383
      %6409 = vmatpush.msra.mxu0 %v6382
      %6410 = vmatpush.msra.mxu0 %v6381
      %6411 = vmatpush.msra.mxu0 %v6380
      %6412 = vmatpush.msra.mxu0 %v6379
      %6413 = vmatpush.msra.mxu0 %v6378
      %6414 = vmatmul.f32.gmra.mxu0 %v6376
      %v6415 = vpop.f32.mrf.mxu0
      %v6416 = vadd.f32 %v6396, %v6415
      %6417 = vdwg.mxu0
      %6418 = vst [vmem:[%s249] sm:$0xff] %v6416
      %p6419 = scmp.lt.s32.totalorder %s17, 1
      %s6420 = scalar_select %p6419, %s17, 1
      %s6421 = smul.addr %s6420, 8
      %s6422 = scalar_lea.vmem %s6, %s6421
      // Predicated region
      $region45: #{siamese_forward.1} parent=43 // pred_check
        %p6423 = pneg %p166
      $region46: #{siamese_forward.1} parent=43 // pred_check_branch
        %6425 = sbr.rel (%p6423) target = $region48
      $region47: #{siamese_forward.1} parent=43 // pred_region
        _
      $region48: #{siamese_forward.1} parent=43 // pred_fallthru
        _
    $region44: #{siamese_forward.1} parent=5 // pred_fallthru
      _
    %p6426 = scmp.le.s32.totalorder 2, %s12
    // Predicated region
    $region49: #{siamese_forward.1} parent=5 // pred_check
      %p6427 = pneg %p6426
    $region50: #{siamese_forward.1} parent=5 // pred_check_branch
      %6429 = sbr.rel (%p6427) target = $region52
    $region51: #{siamese_forward.1} parent=5 // pred_region
      %s6430 = ssub.s32 %s12, 2
      // Predicated region
      $region53: #{siamese_forward.1} parent=51 // pred_check
        %p6431 = pneg %p172
      $region54: #{siamese_forward.1} parent=51 // pred_check_branch
        %6433 = sbr.rel (%p6431) target = $region56
      $region55: #{siamese_forward.1} parent=51 // pred_region
        %p6434 = scmp.lt.s32.totalorder %s18, 1
        %s6435 = scalar_select %p6434, %s18, 1
        %s6436 = smul.addr %s6435, 8
        %s6437 = scalar_lea.vmem %s6, %s6436
      $region56: #{siamese_forward.1} parent=51 // pred_fallthru
        _
    $region52: #{siamese_forward.1} parent=5 // pred_fallthru
      _
  $region6: #{siamese_forward.1} parent=0 // loop_footer
    %s16 = sadd.s32 1, %s12
  $region7: #{siamese_forward.1} parent=0 // loop_footer_branch
    %11 = sbr.rel target = $region3
  $region8: #{siamese_forward.1} parent=0 // loop_exit
    _

</llo_original>
